<compile_context>
chip_gen: v6e
topology: v6e:2x2x1
jax: 0.10.0
libtpu: 0.0.40
codegen_flags: <defaults>
</compile_context>

<pallas_src>
import functools
import math

import jax
import jax.numpy as jnp
import numpy as np
from jax.experimental import pallas as pl
from jax.experimental.pallas import tpu as pltpu

LN_EPS = 1e-5


def _lmodel_kernel(x_ref, lnw_ref, lnb_ref, wqkv_ref, bqkv_ref, wo_ref, bo_ref,
                   out_ref, attn_ref, *, num_heads):
    Bp, S, _ = attn_ref.shape            # this step handles Bp batch elements
    E = x_ref.shape[-1]
    H = num_heads
    Dh = E // H

    x = x_ref[...]                                            # (Bp*S, E) f32

    # ---- norm1 (pre-norm LayerNorm), f32 ----
    mean = jnp.mean(x, axis=-1, keepdims=True)
    xc = x - mean
    var = jnp.mean(xc * xc, axis=-1, keepdims=True)
    y = xc * jax.lax.rsqrt(var + LN_EPS) * lnw_ref[...] + lnb_ref[...]

    # ---- fused QKV projection: one wide MXU matmul (bf16 in, f32 acc) ----
    qkv = jnp.dot(y.astype(wqkv_ref.dtype), wqkv_ref[...],
                  preferred_element_type=jnp.float32) + bqkv_ref[...]   # (Bp*S, 3E)

    inv_h = 1.0 / H
    attn_rows = []
    ctx_rows = []
    for b in range(Bp):                                       # static unroll
        r0 = b * S
        attn_sum = jnp.zeros((S, S), jnp.float32)
        ctx_heads = []
        for h in range(H):                                    # static unroll
            c0 = h * Dh                                       # lane-aligned slice
            q = qkv[r0:r0 + S, c0:c0 + Dh]                    # scale pre-folded
            k = qkv[r0:r0 + S, E + c0:E + c0 + Dh]
            v = qkv[r0:r0 + S, 2 * E + c0:2 * E + c0 + Dh]
            s = jax.lax.dot_general(q, k, (((1,), (1,)), ((), ())),
                                    preferred_element_type=jnp.float32)  # (S, S)
            s = s - jnp.max(s, axis=-1, keepdims=True)
            p = jnp.exp(s)
            p = p * pl.reciprocal(jnp.sum(p, axis=-1, keepdims=True), approx=True)
            attn_sum = attn_sum + p
            ctx_heads.append(jnp.dot(p, v, preferred_element_type=jnp.float32))
        attn_rows.append(attn_sum * inv_h)                    # head-averaged weights
        ctx_rows.append(jnp.concatenate(ctx_heads, axis=-1))  # (S, E)

    attn_ref[...] = jnp.stack(attn_rows, axis=0)              # single store
    ctx = jnp.concatenate(ctx_rows, axis=0)                   # (Bp*S, E)

    # ---- output projection (bf16 in, f32 acc) ----
    out = jnp.dot(ctx.astype(wo_ref.dtype), wo_ref[...],
                  preferred_element_type=jnp.float32) + bo_ref[...]
    # TODO(synk): dropout1 / attention dropout (p=0.1) are identity in eval
    # mode; training-mode dropout would need pltpu.prng_* here.
    out_ref[...] = out


def _two_tensorcore_chip():
    """v7x has 2 TensorCores/chip -> keep a per-batch parallel grid there;
    v5e/v6e have 1 TC -> fold the whole batch into a single grid step."""
    try:
        kind = jax.devices()[0].device_kind.lower()
    except Exception:
        return False
    return ("v7" in kind) or ("7x" in kind)


def lmodel_forward(x, params, num_heads, batch_per_step=None,
                   mm_dtype=jnp.bfloat16):
    B, S, E = x.shape
    H = num_heads
    Dh = E // H
    assert H * Dh == E

    if batch_per_step is None:
        batch_per_step = 1 if _two_tensorcore_chip() else B
    Bp = batch_per_step
    assert B % Bp == 0
    n_steps = B // Bp

    # ---- one-time parameter prep (outside the kernel) ----
    in_w = params["in_proj_weight"].astype(jnp.float32)       # (3E, E) = [Wq; Wk; Wv]
    in_b = params["in_proj_bias"].astype(jnp.float32)         # (3E,)
    # Fold the 1/sqrt(Dh) softmax scale into the query rows of the fused proj.
    scale = jnp.concatenate([jnp.full((E,), 1.0 / math.sqrt(Dh), jnp.float32),
                             jnp.ones((2 * E,), jnp.float32)])
    wqkv = (in_w * scale[:, None]).T.astype(mm_dtype)         # (E, 3E), pre-transposed
    bqkv = (in_b * scale).reshape(1, 3 * E)                   # f32
    wo = params["out_proj_weight"].T.astype(mm_dtype)         # (E, E)
    bo = params["out_proj_bias"].reshape(1, E).astype(jnp.float32)
    lnw = params["norm1_weight"].reshape(1, E).astype(jnp.float32)
    lnb = params["norm1_bias"].reshape(1, E).astype(jnp.float32)

    x2d = x.reshape(B * S, E).astype(jnp.float32)

    def const(shape):                    # grid-invariant operand
        return pl.BlockSpec(shape, lambda i: (0,) * len(shape))

    kernel = functools.partial(_lmodel_kernel, num_heads=H)

    out2d, attn = pl.pallas_call(
        kernel,
        out_shape=(jax.ShapeDtypeStruct((B * S, E), jnp.float32),
                   jax.ShapeDtypeStruct((B, S, S), jnp.float32)),
        grid=(n_steps,),
        in_specs=[pl.BlockSpec((Bp * S, E), lambda i: (i, 0)),
                  const((1, E)), const((1, E)),
                  const((E, 3 * E)), const((1, 3 * E)),
                  const((E, E)), const((1, E))],
        out_specs=(pl.BlockSpec((Bp * S, E), lambda i: (i, 0)),
                   pl.BlockSpec((Bp, S, S), lambda i: (i, 0, 0))),
        compiler_params=pltpu.CompilerParams(
            dimension_semantics=("parallel",),
            vmem_limit_bytes=32 << 20),
    )(x2d, lnw, lnb, wqkv, bqkv, wo, bo)

    return out2d.reshape(B, S, E), attn


def _reference(x, params, H):
    """Pure-JAX f32 reference mirroring PyTorch MHA (eval mode)."""
    B, S, E = x.shape
    Dh = E // H
    mean = x.mean(-1, keepdims=True)
    var = ((x - mean) ** 2).mean(-1, keepdims=True)
    y = (x - mean) / jnp.sqrt(var + LN_EPS) * params["norm1_weight"] + params["norm1_bias"]
    qkv = y @ params["in_proj_weight"].T + params["in_proj_bias"]
    q, k, v = jnp.split(qkv, 3, axis=-1)

    def split_heads(t):
        return t.reshape(B, S, H, Dh).transpose(0, 2, 1, 3)

    q, k, v = map(split_heads, (q, k, v))
    s = jnp.einsum("bhqd,bhkd->bhqk", q, k) / math.sqrt(Dh)
    p = jax.nn.softmax(s, axis=-1)
    ctx = jnp.einsum("bhqk,bhkd->bhqd", p, v).transpose(0, 2, 1, 3).reshape(B, S, E)
    out = ctx @ params["out_proj_weight"].T + params["out_proj_bias"]
    return out, p.mean(axis=1)


if __name__ == "__main__":
    # Small shapes consistent with the module (embed_dim is a ctor arg; chosen
    # TPU-friendly so head_dim = 128): B=2, S=8, E=512, H=4.
    B, S, E, H = 2, 8, 512, 4

    key = jax.random.PRNGKey(0)
    k0, k1, k2, k3, k4 = jax.random.split(key, 5)
    params = {
        "norm1_weight": jnp.ones((E,), jnp.float32),
        "norm1_bias": jnp.zeros((E,), jnp.float32),
        "in_proj_weight": jax.random.normal(k0, (3 * E, E), jnp.float32) * 0.02,
        "in_proj_bias": jax.random.normal(k1, (3 * E,), jnp.float32) * 0.02,
        "out_proj_weight": jax.random.normal(k2, (E, E), jnp.float32) * 0.02,
        "out_proj_bias": jax.random.normal(k3, (E,), jnp.float32) * 0.02,
    }
    x = jax.random.normal(k4, (B, S, E), jnp.float32)

    out, attn = lmodel_forward(x, params, H)
    jax.block_until_ready((out, attn))

    ref_out, ref_attn = _reference(x, params, H)
    # Tolerances account for bf16 MXU operands (f32 accumulation) on the two
    # E-deep matmuls and the approx EUP reciprocal in the softmax; attention
    # weights stay on an f32 score path.
    assert np.allclose(np.asarray(out), np.asarray(ref_out), atol=5e-3, rtol=5e-3)
    assert np.allclose(np.asarray(attn), np.asarray(ref_attn), atol=2e-3, rtol=2e-3)
    print("KERNEL_OK")
</pallas_src>

<mosaic_0001>
module attributes {stable_mosaic.version = 11 : i64} {
  func.func @_lmodel_kernel(%arg0: i32, %arg1: memref<16x512xf32, #tpu.memory_space<vmem>>, %arg2: memref<1x512xf32, #tpu.memory_space<vmem>>, %arg3: memref<1x512xf32, #tpu.memory_space<vmem>>, %arg4: memref<512x1536xbf16, #tpu.memory_space<vmem>>, %arg5: memref<1x1536xf32, #tpu.memory_space<vmem>>, %arg6: memref<512x512xbf16, #tpu.memory_space<vmem>>, %arg7: memref<1x512xf32, #tpu.memory_space<vmem>>, %arg8: memref<16x512xf32, #tpu.memory_space<vmem>>, %arg9: memref<2x8x8xf32, #tpu.memory_space<vmem>>) attributes {dimension_semantics = [#tpu.dimension_semantics<parallel>], iteration_bounds = array<i64: 1>, scalar_prefetch = 0 : i64, scratch_operands = 0 : i64, tpu.core_type = #tpu.core_type<tc>, window_params = [{transform_indices = @transform_0, window_bounds = array<i64: 16, 512>}, {pipeline_mode = #tpu.pipeline_mode<synchronous>, transform_indices = @transform_1, window_bounds = array<i64: 1, 512>}, {pipeline_mode = #tpu.pipeline_mode<synchronous>, transform_indices = @transform_2, window_bounds = array<i64: 1, 512>}, {pipeline_mode = #tpu.pipeline_mode<synchronous>, transform_indices = @transform_3, window_bounds = array<i64: 512, 1536>}, {pipeline_mode = #tpu.pipeline_mode<synchronous>, transform_indices = @transform_4, window_bounds = array<i64: 1, 1536>}, {pipeline_mode = #tpu.pipeline_mode<synchronous>, transform_indices = @transform_5, window_bounds = array<i64: 512, 512>}, {pipeline_mode = #tpu.pipeline_mode<synchronous>, transform_indices = @transform_6, window_bounds = array<i64: 1, 512>}, {transform_indices = @transform_7, window_bounds = array<i64: 16, 512>}, {transform_indices = @transform_8, window_bounds = array<i64: 2, 8, 8>}]} {
    %c0 = arith.constant 0 : index
    %c0_0 = arith.constant 0 : index
    %0 = vector.load %arg1[%c0, %c0_0] : memref<16x512xf32, #tpu.memory_space<vmem>>, vector<16x512xf32>
    %cst = arith.constant dense<0.000000e+00> : vector<16xf32>
    %1 = vector.multi_reduction <add>, %0, %cst [1] : vector<16x512xf32> to vector<16xf32>
    %2 = vector.shape_cast %1 : vector<16xf32> to vector<16x1xf32>
    %cst_1 = arith.constant 5.120000e+02 : f32
    %3 = vector.broadcast %cst_1 : f32 to vector<16x1xf32>
    %4 = arith.divf %2, %3 : vector<16x1xf32>
    %5 = vector.broadcast %4 : vector<16x1xf32> to vector<16x512xf32>
    %6 = arith.subf %0, %5 : vector<16x512xf32>
    %7 = arith.mulf %6, %6 : vector<16x512xf32>
    %cst_2 = arith.constant dense<0.000000e+00> : vector<16xf32>
    %8 = vector.multi_reduction <add>, %7, %cst_2 [1] : vector<16x512xf32> to vector<16xf32>
    %9 = vector.shape_cast %8 : vector<16xf32> to vector<16x1xf32>
    %cst_3 = arith.constant 5.120000e+02 : f32
    %10 = vector.broadcast %cst_3 : f32 to vector<16x1xf32>
    %11 = arith.divf %9, %10 : vector<16x1xf32>
    %cst_4 = arith.constant 9.99999974E-6 : f32
    %12 = vector.broadcast %cst_4 : f32 to vector<16x1xf32>
    %13 = arith.addf %11, %12 : vector<16x1xf32>
    %14 = math.rsqrt %13 : vector<16x1xf32>
    %15 = vector.broadcast %14 : vector<16x1xf32> to vector<16x512xf32>
    %16 = arith.mulf %6, %15 : vector<16x512xf32>
    %c0_5 = arith.constant 0 : index
    %c0_6 = arith.constant 0 : index
    %17 = vector.load %arg2[%c0_5, %c0_6] : memref<1x512xf32, #tpu.memory_space<vmem>>, vector<1x512xf32>
    %18 = vector.broadcast %17 : vector<1x512xf32> to vector<16x512xf32>
    %19 = arith.mulf %16, %18 : vector<16x512xf32>
    %c0_7 = arith.constant 0 : index
    %c0_8 = arith.constant 0 : index
    %20 = vector.load %arg3[%c0_7, %c0_8] : memref<1x512xf32, #tpu.memory_space<vmem>>, vector<1x512xf32>
    %21 = vector.broadcast %20 : vector<1x512xf32> to vector<16x512xf32>
    %22 = arith.addf %19, %21 : vector<16x512xf32>
    %23 = arith.truncf %22 : vector<16x512xf32> to vector<16x512xbf16>
    %c0_9 = arith.constant 0 : index
    %c0_10 = arith.constant 0 : index
    %24 = vector.load %arg4[%c0_9, %c0_10] : memref<512x1536xbf16, #tpu.memory_space<vmem>>, vector<512x1536xbf16>
    %cst_11 = arith.constant dense<0.000000e+00> : vector<16x1536xf32>
    %25 = tpu.matmul %23, %24, %cst_11 {dimension_numbers = #tpu.dot_dimension_numbers<[1], [0], [0], [1], [0, 0, 1, 1], [], []>} : vector<16x512xbf16>, vector<512x1536xbf16>, vector<16x1536xf32> -> vector<16x1536xf32>
    %c0_12 = arith.constant 0 : index
    %c0_13 = arith.constant 0 : index
    %26 = vector.load %arg5[%c0_12, %c0_13] : memref<1x1536xf32, #tpu.memory_space<vmem>>, vector<1x1536xf32>
    %27 = vector.broadcast %26 : vector<1x1536xf32> to vector<16x1536xf32>
    %28 = arith.addf %25, %27 : vector<16x1536xf32>
    %cst_14 = arith.constant 0.000000e+00 : f32
    %29 = vector.broadcast %cst_14 : f32 to vector<8x8xf32>
    %30 = vector.extract_strided_slice %28 {offsets = [0, 0], sizes = [8, 128], strides = [1, 1]} : vector<16x1536xf32> to vector<8x128xf32>
    %31 = vector.extract_strided_slice %28 {offsets = [0, 512], sizes = [8, 128], strides = [1, 1]} : vector<16x1536xf32> to vector<8x128xf32>
    %32 = vector.extract_strided_slice %28 {offsets = [0, 1024], sizes = [8, 128], strides = [1, 1]} : vector<16x1536xf32> to vector<8x128xf32>
    %cst_15 = arith.constant dense<0.000000e+00> : vector<8x8xf32>
    %33 = tpu.matmul %30, %31, %cst_15 {dimension_numbers = #tpu.dot_dimension_numbers<[1], [1], [0], [0], [0, 0, 1, 0], [], []>} : vector<8x128xf32>, vector<8x128xf32>, vector<8x8xf32> -> vector<8x8xf32>
    %cst_16 = arith.constant dense<0xFF800000> : vector<8xf32>
    %34 = vector.multi_reduction <maximumf>, %33, %cst_16 [1] : vector<8x8xf32> to vector<8xf32>
    %35 = vector.shape_cast %34 : vector<8xf32> to vector<8x1xf32>
    %36 = vector.broadcast %35 : vector<8x1xf32> to vector<8x8xf32>
    %37 = arith.subf %33, %36 : vector<8x8xf32>
    %38 = math.exp %37 : vector<8x8xf32>
    %cst_17 = arith.constant dense<0.000000e+00> : vector<8xf32>
    %39 = vector.multi_reduction <add>, %38, %cst_17 [1] : vector<8x8xf32> to vector<8xf32>
    %40 = vector.shape_cast %39 : vector<8xf32> to vector<8x1xf32>
    %41 = tpu.reciprocal %40 {approx = true} : vector<8x1xf32> -> vector<8x1xf32>
    %42 = vector.broadcast %41 : vector<8x1xf32> to vector<8x8xf32>
    %43 = arith.mulf %38, %42 : vector<8x8xf32>
    %44 = arith.addf %29, %43 : vector<8x8xf32>
    %cst_18 = arith.constant dense<0.000000e+00> : vector<8x128xf32>
    %45 = tpu.matmul %43, %32, %cst_18 {dimension_numbers = #tpu.dot_dimension_numbers<[1], [0], [0], [1], [0, 0, 1, 1], [], []>} : vector<8x8xf32>, vector<8x128xf32>, vector<8x128xf32> -> vector<8x128xf32>
    %46 = vector.extract_strided_slice %28 {offsets = [0, 128], sizes = [8, 128], strides = [1, 1]} : vector<16x1536xf32> to vector<8x128xf32>
    %47 = vector.extract_strided_slice %28 {offsets = [0, 640], sizes = [8, 128], strides = [1, 1]} : vector<16x1536xf32> to vector<8x128xf32>
    %48 = vector.extract_strided_slice %28 {offsets = [0, 1152], sizes = [8, 128], strides = [1, 1]} : vector<16x1536xf32> to vector<8x128xf32>
    %cst_19 = arith.constant dense<0.000000e+00> : vector<8x8xf32>
    %49 = tpu.matmul %46, %47, %cst_19 {dimension_numbers = #tpu.dot_dimension_numbers<[1], [1], [0], [0], [0, 0, 1, 0], [], []>} : vector<8x128xf32>, vector<8x128xf32>, vector<8x8xf32> -> vector<8x8xf32>
    %cst_20 = arith.constant dense<0xFF800000> : vector<8xf32>
    %50 = vector.multi_reduction <maximumf>, %49, %cst_20 [1] : vector<8x8xf32> to vector<8xf32>
    %51 = vector.shape_cast %50 : vector<8xf32> to vector<8x1xf32>
    %52 = vector.broadcast %51 : vector<8x1xf32> to vector<8x8xf32>
    %53 = arith.subf %49, %52 : vector<8x8xf32>
    %54 = math.exp %53 : vector<8x8xf32>
    %cst_21 = arith.constant dense<0.000000e+00> : vector<8xf32>
    %55 = vector.multi_reduction <add>, %54, %cst_21 [1] : vector<8x8xf32> to vector<8xf32>
    %56 = vector.shape_cast %55 : vector<8xf32> to vector<8x1xf32>
    %57 = tpu.reciprocal %56 {approx = true} : vector<8x1xf32> -> vector<8x1xf32>
    %58 = vector.broadcast %57 : vector<8x1xf32> to vector<8x8xf32>
    %59 = arith.mulf %54, %58 : vector<8x8xf32>
    %60 = arith.addf %44, %59 : vector<8x8xf32>
    %cst_22 = arith.constant dense<0.000000e+00> : vector<8x128xf32>
    %61 = tpu.matmul %59, %48, %cst_22 {dimension_numbers = #tpu.dot_dimension_numbers<[1], [0], [0], [1], [0, 0, 1, 1], [], []>} : vector<8x8xf32>, vector<8x128xf32>, vector<8x128xf32> -> vector<8x128xf32>
    %62 = vector.extract_strided_slice %28 {offsets = [0, 256], sizes = [8, 128], strides = [1, 1]} : vector<16x1536xf32> to vector<8x128xf32>
    %63 = vector.extract_strided_slice %28 {offsets = [0, 768], sizes = [8, 128], strides = [1, 1]} : vector<16x1536xf32> to vector<8x128xf32>
    %64 = vector.extract_strided_slice %28 {offsets = [0, 1280], sizes = [8, 128], strides = [1, 1]} : vector<16x1536xf32> to vector<8x128xf32>
    %cst_23 = arith.constant dense<0.000000e+00> : vector<8x8xf32>
    %65 = tpu.matmul %62, %63, %cst_23 {dimension_numbers = #tpu.dot_dimension_numbers<[1], [1], [0], [0], [0, 0, 1, 0], [], []>} : vector<8x128xf32>, vector<8x128xf32>, vector<8x8xf32> -> vector<8x8xf32>
    %cst_24 = arith.constant dense<0xFF800000> : vector<8xf32>
    %66 = vector.multi_reduction <maximumf>, %65, %cst_24 [1] : vector<8x8xf32> to vector<8xf32>
    %67 = vector.shape_cast %66 : vector<8xf32> to vector<8x1xf32>
    %68 = vector.broadcast %67 : vector<8x1xf32> to vector<8x8xf32>
    %69 = arith.subf %65, %68 : vector<8x8xf32>
    %70 = math.exp %69 : vector<8x8xf32>
    %cst_25 = arith.constant dense<0.000000e+00> : vector<8xf32>
    %71 = vector.multi_reduction <add>, %70, %cst_25 [1] : vector<8x8xf32> to vector<8xf32>
    %72 = vector.shape_cast %71 : vector<8xf32> to vector<8x1xf32>
    %73 = tpu.reciprocal %72 {approx = true} : vector<8x1xf32> -> vector<8x1xf32>
    %74 = vector.broadcast %73 : vector<8x1xf32> to vector<8x8xf32>
    %75 = arith.mulf %70, %74 : vector<8x8xf32>
    %76 = arith.addf %60, %75 : vector<8x8xf32>
    %cst_26 = arith.constant dense<0.000000e+00> : vector<8x128xf32>
    %77 = tpu.matmul %75, %64, %cst_26 {dimension_numbers = #tpu.dot_dimension_numbers<[1], [0], [0], [1], [0, 0, 1, 1], [], []>} : vector<8x8xf32>, vector<8x128xf32>, vector<8x128xf32> -> vector<8x128xf32>
    %78 = vector.extract_strided_slice %28 {offsets = [0, 384], sizes = [8, 128], strides = [1, 1]} : vector<16x1536xf32> to vector<8x128xf32>
    %79 = vector.extract_strided_slice %28 {offsets = [0, 896], sizes = [8, 128], strides = [1, 1]} : vector<16x1536xf32> to vector<8x128xf32>
    %80 = vector.extract_strided_slice %28 {offsets = [0, 1408], sizes = [8, 128], strides = [1, 1]} : vector<16x1536xf32> to vector<8x128xf32>
    %cst_27 = arith.constant dense<0.000000e+00> : vector<8x8xf32>
    %81 = tpu.matmul %78, %79, %cst_27 {dimension_numbers = #tpu.dot_dimension_numbers<[1], [1], [0], [0], [0, 0, 1, 0], [], []>} : vector<8x128xf32>, vector<8x128xf32>, vector<8x8xf32> -> vector<8x8xf32>
    %cst_28 = arith.constant dense<0xFF800000> : vector<8xf32>
    %82 = vector.multi_reduction <maximumf>, %81, %cst_28 [1] : vector<8x8xf32> to vector<8xf32>
    %83 = vector.shape_cast %82 : vector<8xf32> to vector<8x1xf32>
    %84 = vector.broadcast %83 : vector<8x1xf32> to vector<8x8xf32>
    %85 = arith.subf %81, %84 : vector<8x8xf32>
    %86 = math.exp %85 : vector<8x8xf32>
    %cst_29 = arith.constant dense<0.000000e+00> : vector<8xf32>
    %87 = vector.multi_reduction <add>, %86, %cst_29 [1] : vector<8x8xf32> to vector<8xf32>
    %88 = vector.shape_cast %87 : vector<8xf32> to vector<8x1xf32>
    %89 = tpu.reciprocal %88 {approx = true} : vector<8x1xf32> -> vector<8x1xf32>
    %90 = vector.broadcast %89 : vector<8x1xf32> to vector<8x8xf32>
    %91 = arith.mulf %86, %90 : vector<8x8xf32>
    %92 = arith.addf %76, %91 : vector<8x8xf32>
    %cst_30 = arith.constant dense<0.000000e+00> : vector<8x128xf32>
    %93 = tpu.matmul %91, %80, %cst_30 {dimension_numbers = #tpu.dot_dimension_numbers<[1], [0], [0], [1], [0, 0, 1, 1], [], []>} : vector<8x8xf32>, vector<8x128xf32>, vector<8x128xf32> -> vector<8x128xf32>
    %cst_31 = arith.constant 2.500000e-01 : f32
    %94 = vector.broadcast %cst_31 : f32 to vector<8x8xf32>
    %95 = arith.mulf %92, %94 : vector<8x8xf32>
    %96 = tpu.concatenate %45, %61, %77, %93 in 1 : vector<8x128xf32>, vector<8x128xf32>, vector<8x128xf32>, vector<8x128xf32> -> vector<8x512xf32>
    %cst_32 = arith.constant 0.000000e+00 : f32
    %97 = vector.broadcast %cst_32 : f32 to vector<8x8xf32>
    %98 = vector.extract_strided_slice %28 {offsets = [8, 0], sizes = [8, 128], strides = [1, 1]} : vector<16x1536xf32> to vector<8x128xf32>
    %99 = vector.extract_strided_slice %28 {offsets = [8, 512], sizes = [8, 128], strides = [1, 1]} : vector<16x1536xf32> to vector<8x128xf32>
    %100 = vector.extract_strided_slice %28 {offsets = [8, 1024], sizes = [8, 128], strides = [1, 1]} : vector<16x1536xf32> to vector<8x128xf32>
    %cst_33 = arith.constant dense<0.000000e+00> : vector<8x8xf32>
    %101 = tpu.matmul %98, %99, %cst_33 {dimension_numbers = #tpu.dot_dimension_numbers<[1], [1], [0], [0], [0, 0, 1, 0], [], []>} : vector<8x128xf32>, vector<8x128xf32>, vector<8x8xf32> -> vector<8x8xf32>
    %cst_34 = arith.constant dense<0xFF800000> : vector<8xf32>
    %102 = vector.multi_reduction <maximumf>, %101, %cst_34 [1] : vector<8x8xf32> to vector<8xf32>
    %103 = vector.shape_cast %102 : vector<8xf32> to vector<8x1xf32>
    %104 = vector.broadcast %103 : vector<8x1xf32> to vector<8x8xf32>
    %105 = arith.subf %101, %104 : vector<8x8xf32>
    %106 = math.exp %105 : vector<8x8xf32>
    %cst_35 = arith.constant dense<0.000000e+00> : vector<8xf32>
    %107 = vector.multi_reduction <add>, %106, %cst_35 [1] : vector<8x8xf32> to vector<8xf32>
    %108 = vector.shape_cast %107 : vector<8xf32> to vector<8x1xf32>
    %109 = tpu.reciprocal %108 {approx = true} : vector<8x1xf32> -> vector<8x1xf32>
    %110 = vector.broadcast %109 : vector<8x1xf32> to vector<8x8xf32>
    %111 = arith.mulf %106, %110 : vector<8x8xf32>
    %112 = arith.addf %97, %111 : vector<8x8xf32>
    %cst_36 = arith.constant dense<0.000000e+00> : vector<8x128xf32>
    %113 = tpu.matmul %111, %100, %cst_36 {dimension_numbers = #tpu.dot_dimension_numbers<[1], [0], [0], [1], [0, 0, 1, 1], [], []>} : vector<8x8xf32>, vector<8x128xf32>, vector<8x128xf32> -> vector<8x128xf32>
    %114 = vector.extract_strided_slice %28 {offsets = [8, 128], sizes = [8, 128], strides = [1, 1]} : vector<16x1536xf32> to vector<8x128xf32>
    %115 = vector.extract_strided_slice %28 {offsets = [8, 640], sizes = [8, 128], strides = [1, 1]} : vector<16x1536xf32> to vector<8x128xf32>
    %116 = vector.extract_strided_slice %28 {offsets = [8, 1152], sizes = [8, 128], strides = [1, 1]} : vector<16x1536xf32> to vector<8x128xf32>
    %cst_37 = arith.constant dense<0.000000e+00> : vector<8x8xf32>
    %117 = tpu.matmul %114, %115, %cst_37 {dimension_numbers = #tpu.dot_dimension_numbers<[1], [1], [0], [0], [0, 0, 1, 0], [], []>} : vector<8x128xf32>, vector<8x128xf32>, vector<8x8xf32> -> vector<8x8xf32>
    %cst_38 = arith.constant dense<0xFF800000> : vector<8xf32>
    %118 = vector.multi_reduction <maximumf>, %117, %cst_38 [1] : vector<8x8xf32> to vector<8xf32>
    %119 = vector.shape_cast %118 : vector<8xf32> to vector<8x1xf32>
    %120 = vector.broadcast %119 : vector<8x1xf32> to vector<8x8xf32>
    %121 = arith.subf %117, %120 : vector<8x8xf32>
    %122 = math.exp %121 : vector<8x8xf32>
    %cst_39 = arith.constant dense<0.000000e+00> : vector<8xf32>
    %123 = vector.multi_reduction <add>, %122, %cst_39 [1] : vector<8x8xf32> to vector<8xf32>
    %124 = vector.shape_cast %123 : vector<8xf32> to vector<8x1xf32>
    %125 = tpu.reciprocal %124 {approx = true} : vector<8x1xf32> -> vector<8x1xf32>
    %126 = vector.broadcast %125 : vector<8x1xf32> to vector<8x8xf32>
    %127 = arith.mulf %122, %126 : vector<8x8xf32>
    %128 = arith.addf %112, %127 : vector<8x8xf32>
    %cst_40 = arith.constant dense<0.000000e+00> : vector<8x128xf32>
    %129 = tpu.matmul %127, %116, %cst_40 {dimension_numbers = #tpu.dot_dimension_numbers<[1], [0], [0], [1], [0, 0, 1, 1], [], []>} : vector<8x8xf32>, vector<8x128xf32>, vector<8x128xf32> -> vector<8x128xf32>
    %130 = vector.extract_strided_slice %28 {offsets = [8, 256], sizes = [8, 128], strides = [1, 1]} : vector<16x1536xf32> to vector<8x128xf32>
    %131 = vector.extract_strided_slice %28 {offsets = [8, 768], sizes = [8, 128], strides = [1, 1]} : vector<16x1536xf32> to vector<8x128xf32>
    %132 = vector.extract_strided_slice %28 {offsets = [8, 1280], sizes = [8, 128], strides = [1, 1]} : vector<16x1536xf32> to vector<8x128xf32>
    %cst_41 = arith.constant dense<0.000000e+00> : vector<8x8xf32>
    %133 = tpu.matmul %130, %131, %cst_41 {dimension_numbers = #tpu.dot_dimension_numbers<[1], [1], [0], [0], [0, 0, 1, 0], [], []>} : vector<8x128xf32>, vector<8x128xf32>, vector<8x8xf32> -> vector<8x8xf32>
    %cst_42 = arith.constant dense<0xFF800000> : vector<8xf32>
    %134 = vector.multi_reduction <maximumf>, %133, %cst_42 [1] : vector<8x8xf32> to vector<8xf32>
    %135 = vector.shape_cast %134 : vector<8xf32> to vector<8x1xf32>
    %136 = vector.broadcast %135 : vector<8x1xf32> to vector<8x8xf32>
    %137 = arith.subf %133, %136 : vector<8x8xf32>
    %138 = math.exp %137 : vector<8x8xf32>
    %cst_43 = arith.constant dense<0.000000e+00> : vector<8xf32>
    %139 = vector.multi_reduction <add>, %138, %cst_43 [1] : vector<8x8xf32> to vector<8xf32>
    %140 = vector.shape_cast %139 : vector<8xf32> to vector<8x1xf32>
    %141 = tpu.reciprocal %140 {approx = true} : vector<8x1xf32> -> vector<8x1xf32>
    %142 = vector.broadcast %141 : vector<8x1xf32> to vector<8x8xf32>
    %143 = arith.mulf %138, %142 : vector<8x8xf32>
    %144 = arith.addf %128, %143 : vector<8x8xf32>
    %cst_44 = arith.constant dense<0.000000e+00> : vector<8x128xf32>
    %145 = tpu.matmul %143, %132, %cst_44 {dimension_numbers = #tpu.dot_dimension_numbers<[1], [0], [0], [1], [0, 0, 1, 1], [], []>} : vector<8x8xf32>, vector<8x128xf32>, vector<8x128xf32> -> vector<8x128xf32>
    %146 = vector.extract_strided_slice %28 {offsets = [8, 384], sizes = [8, 128], strides = [1, 1]} : vector<16x1536xf32> to vector<8x128xf32>
    %147 = vector.extract_strided_slice %28 {offsets = [8, 896], sizes = [8, 128], strides = [1, 1]} : vector<16x1536xf32> to vector<8x128xf32>
    %148 = vector.extract_strided_slice %28 {offsets = [8, 1408], sizes = [8, 128], strides = [1, 1]} : vector<16x1536xf32> to vector<8x128xf32>
    %cst_45 = arith.constant dense<0.000000e+00> : vector<8x8xf32>
    %149 = tpu.matmul %146, %147, %cst_45 {dimension_numbers = #tpu.dot_dimension_numbers<[1], [1], [0], [0], [0, 0, 1, 0], [], []>} : vector<8x128xf32>, vector<8x128xf32>, vector<8x8xf32> -> vector<8x8xf32>
    %cst_46 = arith.constant dense<0xFF800000> : vector<8xf32>
    %150 = vector.multi_reduction <maximumf>, %149, %cst_46 [1] : vector<8x8xf32> to vector<8xf32>
    %151 = vector.shape_cast %150 : vector<8xf32> to vector<8x1xf32>
    %152 = vector.broadcast %151 : vector<8x1xf32> to vector<8x8xf32>
    %153 = arith.subf %149, %152 : vector<8x8xf32>
    %154 = math.exp %153 : vector<8x8xf32>
    %cst_47 = arith.constant dense<0.000000e+00> : vector<8xf32>
    %155 = vector.multi_reduction <add>, %154, %cst_47 [1] : vector<8x8xf32> to vector<8xf32>
    %156 = vector.shape_cast %155 : vector<8xf32> to vector<8x1xf32>
    %157 = tpu.reciprocal %156 {approx = true} : vector<8x1xf32> -> vector<8x1xf32>
    %158 = vector.broadcast %157 : vector<8x1xf32> to vector<8x8xf32>
    %159 = arith.mulf %154, %158 : vector<8x8xf32>
    %160 = arith.addf %144, %159 : vector<8x8xf32>
    %cst_48 = arith.constant dense<0.000000e+00> : vector<8x128xf32>
    %161 = tpu.matmul %159, %148, %cst_48 {dimension_numbers = #tpu.dot_dimension_numbers<[1], [0], [0], [1], [0, 0, 1, 1], [], []>} : vector<8x8xf32>, vector<8x128xf32>, vector<8x128xf32> -> vector<8x128xf32>
    %cst_49 = arith.constant 2.500000e-01 : f32
    %162 = vector.broadcast %cst_49 : f32 to vector<8x8xf32>
    %163 = arith.mulf %160, %162 : vector<8x8xf32>
    %164 = tpu.concatenate %113, %129, %145, %161 in 1 : vector<8x128xf32>, vector<8x128xf32>, vector<8x128xf32>, vector<8x128xf32> -> vector<8x512xf32>
    %165 = vector.shape_cast %95 : vector<8x8xf32> to vector<1x8x8xf32>
    %166 = vector.shape_cast %163 : vector<8x8xf32> to vector<1x8x8xf32>
    %167 = tpu.concatenate %165, %166 in 0 : vector<1x8x8xf32>, vector<1x8x8xf32> -> vector<2x8x8xf32>
    %c0_50 = arith.constant 0 : index
    %c0_51 = arith.constant 0 : index
    %c0_52 = arith.constant 0 : index
    %168 = vector.load %arg9[%c0_50, %c0_51, %c0_52] : memref<2x8x8xf32, #tpu.memory_space<vmem>>, vector<2x8x8xf32>
    tpu.vector_store %arg9[%c0_50, %c0_51, %c0_52], %167 {strides = array<i32>} : memref<2x8x8xf32, #tpu.memory_space<vmem>>, vector<2x8x8xf32>,
    %169 = tpu.concatenate %96, %164 in 0 : vector<8x512xf32>, vector<8x512xf32> -> vector<16x512xf32>
    %170 = arith.truncf %169 : vector<16x512xf32> to vector<16x512xbf16>
    %c0_53 = arith.constant 0 : index
    %c0_54 = arith.constant 0 : index
    %171 = vector.load %arg6[%c0_53, %c0_54] : memref<512x512xbf16, #tpu.memory_space<vmem>>, vector<512x512xbf16>
    %cst_55 = arith.constant dense<0.000000e+00> : vector<16x512xf32>
    %172 = tpu.matmul %170, %171, %cst_55 {dimension_numbers = #tpu.dot_dimension_numbers<[1], [0], [0], [1], [0, 0, 1, 1], [], []>} : vector<16x512xbf16>, vector<512x512xbf16>, vector<16x512xf32> -> vector<16x512xf32>
    %c0_56 = arith.constant 0 : index
    %c0_57 = arith.constant 0 : index
    %173 = vector.load %arg7[%c0_56, %c0_57] : memref<1x512xf32, #tpu.memory_space<vmem>>, vector<1x512xf32>
    %174 = vector.broadcast %173 : vector<1x512xf32> to vector<16x512xf32>
    %175 = arith.addf %172, %174 : vector<16x512xf32>
    %c0_58 = arith.constant 0 : index
    %c0_59 = arith.constant 0 : index
    %176 = vector.load %arg8[%c0_58, %c0_59] : memref<16x512xf32, #tpu.memory_space<vmem>>, vector<16x512xf32>
    tpu.vector_store %arg8[%c0_58, %c0_59], %175 {strides = array<i32>} : memref<16x512xf32, #tpu.memory_space<vmem>>, vector<16x512xf32>,
    return
  }
  func.func @transform_0(%arg0: i32) -> (i32, i32) {
    %c0_i32 = arith.constant 0 : i32
    %c0_i32_0 = arith.constant 0 : i32
    return %arg0, %c0_i32 : i32, i32
  }
  func.func @transform_1(%arg0: i32) -> (i32, i32) {
    %c0_i32 = arith.constant 0 : i32
    %c0_i32_0 = arith.constant 0 : i32
    %c0_i32_1 = arith.constant 0 : i32
    return %c0_i32, %c0_i32_0 : i32, i32
  }
  func.func @transform_2(%arg0: i32) -> (i32, i32) {
    %c0_i32 = arith.constant 0 : i32
    %c0_i32_0 = arith.constant 0 : i32
    %c0_i32_1 = arith.constant 0 : i32
    return %c0_i32, %c0_i32_0 : i32, i32
  }
  func.func @transform_3(%arg0: i32) -> (i32, i32) {
    %c0_i32 = arith.constant 0 : i32
    %c0_i32_0 = arith.constant 0 : i32
    %c0_i32_1 = arith.constant 0 : i32
    return %c0_i32, %c0_i32_0 : i32, i32
  }
  func.func @transform_4(%arg0: i32) -> (i32, i32) {
    %c0_i32 = arith.constant 0 : i32
    %c0_i32_0 = arith.constant 0 : i32
    %c0_i32_1 = arith.constant 0 : i32
    return %c0_i32, %c0_i32_0 : i32, i32
  }
  func.func @transform_5(%arg0: i32) -> (i32, i32) {
    %c0_i32 = arith.constant 0 : i32
    %c0_i32_0 = arith.constant 0 : i32
    %c0_i32_1 = arith.constant 0 : i32
    return %c0_i32, %c0_i32_0 : i32, i32
  }
  func.func @transform_6(%arg0: i32) -> (i32, i32) {
    %c0_i32 = arith.constant 0 : i32
    %c0_i32_0 = arith.constant 0 : i32
    %c0_i32_1 = arith.constant 0 : i32
    return %c0_i32, %c0_i32_0 : i32, i32
  }
  func.func @transform_7(%arg0: i32) -> (i32, i32) {
    %c0_i32 = arith.constant 0 : i32
    %c0_i32_0 = arith.constant 0 : i32
    return %arg0, %c0_i32 : i32, i32
  }
  func.func @transform_8(%arg0: i32) -> (i32, i32, i32) {
    %c0_i32 = arith.constant 0 : i32
    %c0_i32_0 = arith.constant 0 : i32
    %c0_i32_1 = arith.constant 0 : i32
    return %arg0, %c0_i32, %c0_i32_0 : i32, i32, i32
  }
}

</mosaic_0001>

<llo_original>
// kernel: tpu_custom_call.1
$region0: #{tpu_custom_call.1}
  #allocation0 [shape = 'u32[]', space=smem, size = 0x4, offset = 0x4, fixed_abs, tag = 'smem constant byte address 0x4 - core index']
  #allocation1 [shape = 'u32[144,128]{1,0:T(1,128)}', space=vmem, size = 0x12000, scoped, tag = 'internal scratch']
  %s0 = inlined_call_operand.hbm [shape: f32[16,512], index: 0, kind: input, shape index: {}]
  %s1 = inlined_call_operand.hbm [shape: f32[1,512], index: 1, kind: input, shape index: {}]
  %s2 = inlined_call_operand.hbm [shape: f32[1,512], index: 2, kind: input, shape index: {}]
  %s3 = inlined_call_operand.hbm [shape: bf16[512,1536], index: 3, kind: input, shape index: {}]
  %s4 = inlined_call_operand.hbm [shape: f32[1,1536], index: 4, kind: input, shape index: {}]
  %s5 = inlined_call_operand.hbm [shape: bf16[512,512], index: 5, kind: input, shape index: {}]
  %s6 = inlined_call_operand.hbm [shape: f32[1,512], index: 6, kind: input, shape index: {}]
  %s7 = inlined_call_operand.hbm [shape: f32[16,512], index: 7, kind: output, shape index: {0}]
  %s8 = inlined_call_operand.hbm [shape: f32[2,8,8], index: 8, kind: output, shape index: {1}]
  %9 = xla_tuple %s7, %s8
  %s10 = sld [smem:[#allocation0]]
  $region74: #{tpu_custom_call.1} parent=0
    _
  %s12 = ssub.s32 1, %s10
  %s13 = scalar_select 0, %s12, %s10
  $region1: #{tpu_custom_call.1} parent=0
    #allocation2 [shape = 'u8[32768]{0}', space=vmem, size = 0x8000, scoped, tag = 'input window, operand 0, single buffered']
    #allocation3 [shape = 's32[1]{0}', space=sflag, size = 0x4, scoped, tag = 'scoped memory for tpu_custom_call.1']
    #allocation4 [shape = 's32[1]{0}', space=sflag, size = 0x4, scoped, tag = 'scoped memory for tpu_custom_call.1']
    #allocation5 [shape = 'u8[2048]{0}', space=vmem, size = 0x800, scoped, tag = 'input window, operand 1, single buffered']
    #allocation6 [shape = 's32[1]{0}', space=sflag, size = 0x4, scoped, tag = 'scoped memory for tpu_custom_call.1']
    #allocation7 [shape = 'u8[2048]{0}', space=vmem, size = 0x800, scoped, tag = 'input window, operand 2, single buffered']
    #allocation8 [shape = 'u8[1572864]{0}', space=vmem, size = 0x180000, scoped, tag = 'input window, operand 3, single buffered']
    #allocation9 [shape = 's32[1]{0}', space=sflag, size = 0x4, scoped, tag = 'scoped memory for tpu_custom_call.1']
    #allocation10 [shape = 'u8[6144]{0}', space=vmem, size = 0x1800, scoped, tag = 'input window, operand 4, single buffered']
    #allocation11 [shape = 'u8[524288]{0}', space=vmem, size = 0x80000, scoped, tag = 'input window, operand 5, single buffered']
    #allocation12 [shape = 's32[1]{0}', space=sflag, size = 0x4, scoped, tag = 'scoped memory for tpu_custom_call.1']
    #allocation13 [shape = 'u8[2048]{0}', space=vmem, size = 0x800, scoped, tag = 'input window, operand 6, single buffered']
    #allocation14 [shape = 'u8[32768]{0}', space=vmem, size = 0x8000, scoped, tag = 'output window, operand 0, single buffered']
    #allocation15 [shape = 'u8[8192]{0}', space=vmem, size = 0x2000, scoped, tag = 'output window, operand 1, single buffered']
    #allocation16 [shape = 's32[1]{0}', space=sflag, size = 0x4, scoped, tag = 'scoped memory for tpu_custom_call.1']
    %14 = vsyncpa [#allocation3], 0
    %15 = vsyncpa [#allocation6], 0
    %16 = vsyncpa [#allocation9], 0
    %17 = vsyncpa [#allocation12], 0
    %18 = vsyncpa [#allocation4], 0
    %19 = vsyncpa [#allocation16], 0
    // Predicated region
    $region2: #{tpu_custom_call.1} parent=1 // pred_check
      _
    $region3: #{tpu_custom_call.1} parent=1 // pred_check_branch
      %21 = sbr.rel (0) target = $region5
    $region4: #{tpu_custom_call.1} parent=1 // pred_region
      %s23 = ssub.s32 1024, 1024
      %24 = vsyncadd [#allocation3], %s23
      %s25 = sshll.u32 [#allocation2], 4
      %s26 = int_to_ptr.vmem [resolvable:$true] %s25
      %31 = dma.hbm_to_vmem [thread:$0]  %s0, 1024, %s26, [#allocation3], 512, 512, 32
    $region5: #{tpu_custom_call.1} parent=1 // pred_fallthru
      _
    // Predicated region
    $region6: #{tpu_custom_call.1} parent=1 // pred_check
      _
    $region7: #{tpu_custom_call.1} parent=1 // pred_check_branch
      %33 = sbr.rel (0) target = $region9
    $region8: #{tpu_custom_call.1} parent=1 // pred_region
      %s35 = ssub.s32 64, 64
      %36 = vsyncadd [#allocation6], %s35
      %s38 = sshll.u32 [#allocation5], 4
      %s39 = int_to_ptr.vmem [resolvable:$true] %s38
      %41 = dma.hbm_to_vmem [thread:$0]  %s1, 64, %s39, [#allocation6]
    $region9: #{tpu_custom_call.1} parent=1 // pred_fallthru
      _
    // Predicated region
    $region10: #{tpu_custom_call.1} parent=1 // pred_check
      _
    $region11: #{tpu_custom_call.1} parent=1 // pred_check_branch
      %43 = sbr.rel (0) target = $region13
    $region12: #{tpu_custom_call.1} parent=1 // pred_region
      %s45 = ssub.s32 64, 64
      %46 = vsyncadd [#allocation6], %s45
      %s48 = sshll.u32 [#allocation7], 4
      %s49 = int_to_ptr.vmem [resolvable:$true] %s48
      %51 = dma.hbm_to_vmem [thread:$0]  %s2, 64, %s49, [#allocation6]
    $region13: #{tpu_custom_call.1} parent=1 // pred_fallthru
      _
    // Predicated region
    $region14: #{tpu_custom_call.1} parent=1 // pred_check
      _
    $region15: #{tpu_custom_call.1} parent=1 // pred_check_branch
      %53 = sbr.rel (0) target = $region17
    $region16: #{tpu_custom_call.1} parent=1 // pred_region
      %s55 = ssub.s32 49152, 49152
      %56 = vsyncadd [#allocation9], %s55
      %s57 = sshll.u32 [#allocation8], 4
      %s58 = int_to_ptr.vmem [resolvable:$true] %s57
      %63 = dma.hbm_to_vmem [thread:$0]  %s3, 49152, %s58, [#allocation9], 768, 768, 48
    $region17: #{tpu_custom_call.1} parent=1 // pred_fallthru
      _
    // Predicated region
    $region18: #{tpu_custom_call.1} parent=1 // pred_check
      _
    $region19: #{tpu_custom_call.1} parent=1 // pred_check_branch
      %65 = sbr.rel (0) target = $region21
    $region20: #{tpu_custom_call.1} parent=1 // pred_region
      %s67 = ssub.s32 192, 192
      %68 = vsyncadd [#allocation9], %s67
      %s70 = sshll.u32 [#allocation10], 4
      %s71 = int_to_ptr.vmem [resolvable:$true] %s70
      %73 = dma.hbm_to_vmem [thread:$0]  %s4, 192, %s71, [#allocation9]
    $region21: #{tpu_custom_call.1} parent=1 // pred_fallthru
      _
    // Predicated region
    $region22: #{tpu_custom_call.1} parent=1 // pred_check
      _
    $region23: #{tpu_custom_call.1} parent=1 // pred_check_branch
      %75 = sbr.rel (0) target = $region25
    $region24: #{tpu_custom_call.1} parent=1 // pred_region
      %s77 = ssub.s32 16384, 16384
      %78 = vsyncadd [#allocation12], %s77
      %s79 = sshll.u32 [#allocation11], 4
      %s80 = int_to_ptr.vmem [resolvable:$true] %s79
      %85 = dma.hbm_to_vmem [thread:$0]  %s5, 16384, %s80, [#allocation12], 256, 256, 16
    $region25: #{tpu_custom_call.1} parent=1 // pred_fallthru
      _
    // Predicated region
    $region26: #{tpu_custom_call.1} parent=1 // pred_check
      _
    $region27: #{tpu_custom_call.1} parent=1 // pred_check_branch
      %87 = sbr.rel (0) target = $region29
    $region28: #{tpu_custom_call.1} parent=1 // pred_region
      %s89 = ssub.s32 64, 64
      %90 = vsyncadd [#allocation12], %s89
      %s92 = sshll.u32 [#allocation13], 4
      %s93 = int_to_ptr.vmem [resolvable:$true] %s92
      %95 = dma.hbm_to_vmem [thread:$0]  %s6, 64, %s93, [#allocation12]
    $region29: #{tpu_custom_call.1} parent=1 // pred_fallthru
      _
    // Predicated region
    $region30: #{tpu_custom_call.1} parent=1 // pred_check
      _
    $region31: #{tpu_custom_call.1} parent=1 // pred_check_branch
      %97 = sbr.rel (0) target = $region33
    $region32: #{tpu_custom_call.1} parent=1 // pred_region
      %98 = dma.done [#allocation3], 1024
    $region33: #{tpu_custom_call.1} parent=1 // pred_fallthru
      _
    // Predicated region
    $region34: #{tpu_custom_call.1} parent=1 // pred_check
      _
    $region35: #{tpu_custom_call.1} parent=1 // pred_check_branch
      %100 = sbr.rel (0) target = $region37
    $region36: #{tpu_custom_call.1} parent=1 // pred_region
      %101 = dma.done [#allocation6], 64
    $region37: #{tpu_custom_call.1} parent=1 // pred_fallthru
      _
    // Predicated region
    $region38: #{tpu_custom_call.1} parent=1 // pred_check
      _
    $region39: #{tpu_custom_call.1} parent=1 // pred_check_branch
      %103 = sbr.rel (0) target = $region41
    $region40: #{tpu_custom_call.1} parent=1 // pred_region
      %104 = dma.done [#allocation6], 64
    $region41: #{tpu_custom_call.1} parent=1 // pred_fallthru
      _
    // Predicated region
    $region42: #{tpu_custom_call.1} parent=1 // pred_check
      _
    $region43: #{tpu_custom_call.1} parent=1 // pred_check_branch
      %106 = sbr.rel (0) target = $region45
    $region44: #{tpu_custom_call.1} parent=1 // pred_region
      %107 = dma.done [#allocation9], 49152
    $region45: #{tpu_custom_call.1} parent=1 // pred_fallthru
      _
    // Predicated region
    $region46: #{tpu_custom_call.1} parent=1 // pred_check
      _
    $region47: #{tpu_custom_call.1} parent=1 // pred_check_branch
      %109 = sbr.rel (0) target = $region49
    $region48: #{tpu_custom_call.1} parent=1 // pred_region
      %110 = dma.done [#allocation9], 192
    $region49: #{tpu_custom_call.1} parent=1 // pred_fallthru
      _
    // Predicated region
    $region50: #{tpu_custom_call.1} parent=1 // pred_check
      _
    $region51: #{tpu_custom_call.1} parent=1 // pred_check_branch
      %112 = sbr.rel (0) target = $region53
    $region52: #{tpu_custom_call.1} parent=1 // pred_region
      %113 = dma.done [#allocation12], 16384
    $region53: #{tpu_custom_call.1} parent=1 // pred_fallthru
      _
    // Predicated region
    $region54: #{tpu_custom_call.1} parent=1 // pred_check
      _
    $region55: #{tpu_custom_call.1} parent=1 // pred_check_branch
      %115 = sbr.rel (0) target = $region57
    $region56: #{tpu_custom_call.1} parent=1 // pred_region
      %116 = dma.done [#allocation12], 64
    $region57: #{tpu_custom_call.1} parent=1 // pred_fallthru
      _
    %v117 = vld [vmem:[#allocation2] sm:$0xff]
    %v118 = vld [vmem:[#allocation2 + $0x8] sm:$0xff]
    %v119 = vld [vmem:[#allocation2 + $0x10] sm:$0xff]
    %v120 = vld [vmem:[#allocation2 + $0x18] sm:$0xff]
    %v121 = vld [vmem:[#allocation2 + $0x20] sm:$0xff]
    %v122 = vld [vmem:[#allocation2 + $0x28] sm:$0xff]
    %v123 = vld [vmem:[#allocation2 + $0x30] sm:$0xff]
    %v124 = vld [vmem:[#allocation2 + $0x38] sm:$0xff]
    %v125 = vadd.f32 %v117, %v118
    %v126 = vadd.f32 %v125, %v119
    %v127 = vadd.f32 %v126, %v120
    %128 = vadd.xlane.f32.xlu0 %v127
    %v129 = vpop.xlane.xlu0 %128
    %v130 = vadd.f32 %v121, %v122
    %v131 = vadd.f32 %v130, %v123
    %v132 = vadd.f32 %v131, %v124
    %133 = vadd.xlane.f32.xlu0 %v132
    %v134 = vpop.xlane.xlu0 %133
    %v135 = vrcp.pop 512.0
    %v136 = vmul.f32 %v129, %v135
    %v137 = vmul.f32 %v134, %v135
    %v138 = vsub.f32 %v117, %v136
    %v139 = vsub.f32 %v118, %v136
    %v140 = vsub.f32 %v119, %v136
    %v141 = vsub.f32 %v120, %v136
    %v142 = vsub.f32 %v121, %v137
    %v143 = vsub.f32 %v122, %v137
    %v144 = vsub.f32 %v123, %v137
    %v145 = vsub.f32 %v124, %v137
    %v146 = vmul.f32 %v138, %v138
    %v147 = vmul.f32 %v139, %v139
    %v148 = vmul.f32 %v140, %v140
    %v149 = vmul.f32 %v141, %v141
    %v150 = vmul.f32 %v142, %v142
    %v151 = vmul.f32 %v143, %v143
    %v152 = vmul.f32 %v144, %v144
    %v153 = vmul.f32 %v145, %v145
    %v154 = vadd.f32 %v146, %v147
    %v155 = vadd.f32 %v154, %v148
    %v156 = vadd.f32 %v155, %v149
    %157 = vadd.xlane.f32.xlu0 %v156
    %v158 = vpop.xlane.xlu0 %157
    %v159 = vadd.f32 %v150, %v151
    %v160 = vadd.f32 %v159, %v152
    %v161 = vadd.f32 %v160, %v153
    %162 = vadd.xlane.f32.xlu0 %v161
    %v163 = vpop.xlane.xlu0 %162
    %v164 = vmul.f32 %v158, %v135
    %v165 = vmul.f32 %v163, %v135
    %v166 = vadd.f32 %v164, 1e-05
    %v167 = vadd.f32 %v165, 1e-05
    %v168 = vrsqrt.pop %v166
    %v169 = vrsqrt.pop %v167
    %v170 = vmul.f32 %v138, %v168
    %v171 = vmul.f32 %v139, %v168
    %v172 = vmul.f32 %v140, %v168
    %v173 = vmul.f32 %v141, %v168
    %v174 = vmul.f32 %v142, %v169
    %v175 = vmul.f32 %v143, %v169
    %v176 = vmul.f32 %v144, %v169
    %v177 = vmul.f32 %v145, %v169
    %v178 = vld [vmem:[#allocation5] sm:$0xf]
    %v180 = vlaneseq
    %v181 = vshrl.u32 %v180, 7
    %v182 = vsub.s32 0, %v181
    %v183 = vrot.slane %v178, %v182
    %v184 = vlaneseq
    %v185 = vshrl.u32 %v184, 7
    %v186 = vsub.s32 1, %v185
    %v187 = vrot.slane %v178, %v186
    %v188 = vlaneseq
    %v189 = vshrl.u32 %v188, 7
    %v190 = vsub.s32 2, %v189
    %v191 = vrot.slane %v178, %v190
    %v192 = vlaneseq
    %v193 = vshrl.u32 %v192, 7
    %v194 = vsub.s32 3, %v193
    %v195 = vrot.slane %v178, %v194
    %v200 = vmul.f32 %v170, %v183
    %v201 = vmul.f32 %v171, %v187
    %v202 = vmul.f32 %v172, %v191
    %v203 = vmul.f32 %v173, %v195
    %v204 = vmul.f32 %v174, %v183
    %v205 = vmul.f32 %v175, %v187
    %v206 = vmul.f32 %v176, %v191
    %v207 = vmul.f32 %v177, %v195
    %v208 = vld [vmem:[#allocation7] sm:$0xf]
    %v210 = vlaneseq
    %v211 = vshrl.u32 %v210, 7
    %v212 = vsub.s32 0, %v211
    %v213 = vrot.slane %v208, %v212
    %v214 = vlaneseq
    %v215 = vshrl.u32 %v214, 7
    %v216 = vsub.s32 1, %v215
    %v217 = vrot.slane %v208, %v216
    %v218 = vlaneseq
    %v219 = vshrl.u32 %v218, 7
    %v220 = vsub.s32 2, %v219
    %v221 = vrot.slane %v208, %v220
    %v222 = vlaneseq
    %v223 = vshrl.u32 %v222, 7
    %v224 = vsub.s32 3, %v223
    %v225 = vrot.slane %v208, %v224
    %v230 = vadd.f32 %v200, %v213
    %v231 = vadd.f32 %v201, %v217
    %v232 = vadd.f32 %v202, %v221
    %v233 = vadd.f32 %v203, %v225
    %v234 = vadd.f32 %v204, %v213
    %v235 = vadd.f32 %v205, %v217
    %v236 = vadd.f32 %v206, %v221
    %v237 = vadd.f32 %v207, %v225
    %v238 = vpack.c.bf16 %v234, %v230
    %v239 = vpack.c.bf16 %v235, %v231
    %v240 = vpack.c.bf16 %v236, %v232
    %v241 = vpack.c.bf16 %v237, %v233
    %v242 = vld [vmem:[#allocation8] sm:$0xff]
    %v243 = vld [vmem:[#allocation8 + $0x8] sm:$0xff]
    %v244 = vld [vmem:[#allocation8 + $0x10] sm:$0xff]
    %v245 = vld [vmem:[#allocation8 + $0x18] sm:$0xff]
    %v246 = vld [vmem:[#allocation8 + $0x20] sm:$0xff]
    %v247 = vld [vmem:[#allocation8 + $0x28] sm:$0xff]
    %v248 = vld [vmem:[#allocation8 + $0x30] sm:$0xff]
    %v249 = vld [vmem:[#allocation8 + $0x38] sm:$0xff]
    %v250 = vld [vmem:[#allocation8 + $0x40] sm:$0xff]
    %v251 = vld [vmem:[#allocation8 + $0x48] sm:$0xff]
    %v252 = vld [vmem:[#allocation8 + $0x50] sm:$0xff]
    %v253 = vld [vmem:[#allocation8 + $0x58] sm:$0xff]
    %v254 = vld [vmem:[#allocation8 + $0x60] sm:$0xff]
    %v255 = vld [vmem:[#allocation8 + $0x68] sm:$0xff]
    %v256 = vld [vmem:[#allocation8 + $0x70] sm:$0xff]
    %v257 = vld [vmem:[#allocation8 + $0x78] sm:$0xff]
    %v258 = vld [vmem:[#allocation8 + $0x80] sm:$0xff]
    %v259 = vld [vmem:[#allocation8 + $0x88] sm:$0xff]
    %v260 = vld [vmem:[#allocation8 + $0x90] sm:$0xff]
    %v261 = vld [vmem:[#allocation8 + $0x98] sm:$0xff]
    %v262 = vld [vmem:[#allocation8 + $0xa0] sm:$0xff]
    %v263 = vld [vmem:[#allocation8 + $0xa8] sm:$0xff]
    %v264 = vld [vmem:[#allocation8 + $0xb0] sm:$0xff]
    %v265 = vld [vmem:[#allocation8 + $0xb8] sm:$0xff]
    %v266 = vld [vmem:[#allocation8 + $0xc0] sm:$0xff]
    %v267 = vld [vmem:[#allocation8 + $0xc8] sm:$0xff]
    %v268 = vld [vmem:[#allocation8 + $0xd0] sm:$0xff]
    %v269 = vld [vmem:[#allocation8 + $0xd8] sm:$0xff]
    %v270 = vld [vmem:[#allocation8 + $0xe0] sm:$0xff]
    %v271 = vld [vmem:[#allocation8 + $0xe8] sm:$0xff]
    %v272 = vld [vmem:[#allocation8 + $0xf0] sm:$0xff]
    %v273 = vld [vmem:[#allocation8 + $0xf8] sm:$0xff]
    %v274 = vld [vmem:[#allocation8 + $0x100] sm:$0xff]
    %v275 = vld [vmem:[#allocation8 + $0x108] sm:$0xff]
    %v276 = vld [vmem:[#allocation8 + $0x110] sm:$0xff]
    %v277 = vld [vmem:[#allocation8 + $0x118] sm:$0xff]
    %v278 = vld [vmem:[#allocation8 + $0x120] sm:$0xff]
    %v279 = vld [vmem:[#allocation8 + $0x128] sm:$0xff]
    %v280 = vld [vmem:[#allocation8 + $0x130] sm:$0xff]
    %v281 = vld [vmem:[#allocation8 + $0x138] sm:$0xff]
    %v282 = vld [vmem:[#allocation8 + $0x140] sm:$0xff]
    %v283 = vld [vmem:[#allocation8 + $0x148] sm:$0xff]
    %v284 = vld [vmem:[#allocation8 + $0x150] sm:$0xff]
    %v285 = vld [vmem:[#allocation8 + $0x158] sm:$0xff]
    %v286 = vld [vmem:[#allocation8 + $0x160] sm:$0xff]
    %v287 = vld [vmem:[#allocation8 + $0x168] sm:$0xff]
    %v288 = vld [vmem:[#allocation8 + $0x170] sm:$0xff]
    %v289 = vld [vmem:[#allocation8 + $0x178] sm:$0xff]
    %v290 = vld [vmem:[#allocation8 + $0x180] sm:$0xff]
    %v291 = vld [vmem:[#allocation8 + $0x188] sm:$0xff]
    %v292 = vld [vmem:[#allocation8 + $0x190] sm:$0xff]
    %v293 = vld [vmem:[#allocation8 + $0x198] sm:$0xff]
    %v294 = vld [vmem:[#allocation8 + $0x1a0] sm:$0xff]
    %v295 = vld [vmem:[#allocation8 + $0x1a8] sm:$0xff]
    %v296 = vld [vmem:[#allocation8 + $0x1b0] sm:$0xff]
    %v297 = vld [vmem:[#allocation8 + $0x1b8] sm:$0xff]
    %v298 = vld [vmem:[#allocation8 + $0x1c0] sm:$0xff]
    %v299 = vld [vmem:[#allocation8 + $0x1c8] sm:$0xff]
    %v300 = vld [vmem:[#allocation8 + $0x1d0] sm:$0xff]
    %v301 = vld [vmem:[#allocation8 + $0x1d8] sm:$0xff]
    %v302 = vld [vmem:[#allocation8 + $0x1e0] sm:$0xff]
    %v303 = vld [vmem:[#allocation8 + $0x1e8] sm:$0xff]
    %v304 = vld [vmem:[#allocation8 + $0x1f0] sm:$0xff]
    %v305 = vld [vmem:[#allocation8 + $0x1f8] sm:$0xff]
    %v306 = vld [vmem:[#allocation8 + $0x200] sm:$0xff]
    %v307 = vld [vmem:[#allocation8 + $0x208] sm:$0xff]
    %v308 = vld [vmem:[#allocation8 + $0x210] sm:$0xff]
    %v309 = vld [vmem:[#allocation8 + $0x218] sm:$0xff]
    %v310 = vld [vmem:[#allocation8 + $0x220] sm:$0xff]
    %v311 = vld [vmem:[#allocation8 + $0x228] sm:$0xff]
    %v312 = vld [vmem:[#allocation8 + $0x230] sm:$0xff]
    %v313 = vld [vmem:[#allocation8 + $0x238] sm:$0xff]
    %v314 = vld [vmem:[#allocation8 + $0x240] sm:$0xff]
    %v315 = vld [vmem:[#allocation8 + $0x248] sm:$0xff]
    %v316 = vld [vmem:[#allocation8 + $0x250] sm:$0xff]
    %v317 = vld [vmem:[#allocation8 + $0x258] sm:$0xff]
    %v318 = vld [vmem:[#allocation8 + $0x260] sm:$0xff]
    %v319 = vld [vmem:[#allocation8 + $0x268] sm:$0xff]
    %v320 = vld [vmem:[#allocation8 + $0x270] sm:$0xff]
    %v321 = vld [vmem:[#allocation8 + $0x278] sm:$0xff]
    %v322 = vld [vmem:[#allocation8 + $0x280] sm:$0xff]
    %v323 = vld [vmem:[#allocation8 + $0x288] sm:$0xff]
    %v324 = vld [vmem:[#allocation8 + $0x290] sm:$0xff]
    %v325 = vld [vmem:[#allocation8 + $0x298] sm:$0xff]
    %v326 = vld [vmem:[#allocation8 + $0x2a0] sm:$0xff]
    %v327 = vld [vmem:[#allocation8 + $0x2a8] sm:$0xff]
    %v328 = vld [vmem:[#allocation8 + $0x2b0] sm:$0xff]
    %v329 = vld [vmem:[#allocation8 + $0x2b8] sm:$0xff]
    %v330 = vld [vmem:[#allocation8 + $0x2c0] sm:$0xff]
    %v331 = vld [vmem:[#allocation8 + $0x2c8] sm:$0xff]
    %v332 = vld [vmem:[#allocation8 + $0x2d0] sm:$0xff]
    %v333 = vld [vmem:[#allocation8 + $0x2d8] sm:$0xff]
    %v334 = vld [vmem:[#allocation8 + $0x2e0] sm:$0xff]
    %v335 = vld [vmem:[#allocation8 + $0x2e8] sm:$0xff]
    %v336 = vld [vmem:[#allocation8 + $0x2f0] sm:$0xff]
    %v337 = vld [vmem:[#allocation8 + $0x2f8] sm:$0xff]
    %v338 = vld [vmem:[#allocation8 + $0x300] sm:$0xff]
    %v339 = vld [vmem:[#allocation8 + $0x308] sm:$0xff]
    %v340 = vld [vmem:[#allocation8 + $0x310] sm:$0xff]
    %v341 = vld [vmem:[#allocation8 + $0x318] sm:$0xff]
    %v342 = vld [vmem:[#allocation8 + $0x320] sm:$0xff]
    %v343 = vld [vmem:[#allocation8 + $0x328] sm:$0xff]
    %v344 = vld [vmem:[#allocation8 + $0x330] sm:$0xff]
    %v345 = vld [vmem:[#allocation8 + $0x338] sm:$0xff]
    %v346 = vld [vmem:[#allocation8 + $0x340] sm:$0xff]
    %v347 = vld [vmem:[#allocation8 + $0x348] sm:$0xff]
    %v348 = vld [vmem:[#allocation8 + $0x350] sm:$0xff]
    %v349 = vld [vmem:[#allocation8 + $0x358] sm:$0xff]
    %v350 = vld [vmem:[#allocation8 + $0x360] sm:$0xff]
    %v351 = vld [vmem:[#allocation8 + $0x368] sm:$0xff]
    %v352 = vld [vmem:[#allocation8 + $0x370] sm:$0xff]
    %v353 = vld [vmem:[#allocation8 + $0x378] sm:$0xff]
    %v354 = vld [vmem:[#allocation8 + $0x380] sm:$0xff]
    %v355 = vld [vmem:[#allocation8 + $0x388] sm:$0xff]
    %v356 = vld [vmem:[#allocation8 + $0x390] sm:$0xff]
    %v357 = vld [vmem:[#allocation8 + $0x398] sm:$0xff]
    %v358 = vld [vmem:[#allocation8 + $0x3a0] sm:$0xff]
    %v359 = vld [vmem:[#allocation8 + $0x3a8] sm:$0xff]
    %v360 = vld [vmem:[#allocation8 + $0x3b0] sm:$0xff]
    %v361 = vld [vmem:[#allocation8 + $0x3b8] sm:$0xff]
    %v362 = vld [vmem:[#allocation8 + $0x3c0] sm:$0xff]
    %v363 = vld [vmem:[#allocation8 + $0x3c8] sm:$0xff]
    %v364 = vld [vmem:[#allocation8 + $0x3d0] sm:$0xff]
    %v365 = vld [vmem:[#allocation8 + $0x3d8] sm:$0xff]
    %v366 = vld [vmem:[#allocation8 + $0x3e0] sm:$0xff]
    %v367 = vld [vmem:[#allocation8 + $0x3e8] sm:$0xff]
    %v368 = vld [vmem:[#allocation8 + $0x3f0] sm:$0xff]
    %v369 = vld [vmem:[#allocation8 + $0x3f8] sm:$0xff]
    %v370 = vld [vmem:[#allocation8 + $0x400] sm:$0xff]
    %v371 = vld [vmem:[#allocation8 + $0x408] sm:$0xff]
    %v372 = vld [vmem:[#allocation8 + $0x410] sm:$0xff]
    %v373 = vld [vmem:[#allocation8 + $0x418] sm:$0xff]
    %v374 = vld [vmem:[#allocation8 + $0x420] sm:$0xff]
    %v375 = vld [vmem:[#allocation8 + $0x428] sm:$0xff]
    %v376 = vld [vmem:[#allocation8 + $0x430] sm:$0xff]
    %v377 = vld [vmem:[#allocation8 + $0x438] sm:$0xff]
    %v378 = vld [vmem:[#allocation8 + $0x440] sm:$0xff]
    %v379 = vld [vmem:[#allocation8 + $0x448] sm:$0xff]
    %v380 = vld [vmem:[#allocation8 + $0x450] sm:$0xff]
    %v381 = vld [vmem:[#allocation8 + $0x458] sm:$0xff]
    %v382 = vld [vmem:[#allocation8 + $0x460] sm:$0xff]
    %v383 = vld [vmem:[#allocation8 + $0x468] sm:$0xff]
    %v384 = vld [vmem:[#allocation8 + $0x470] sm:$0xff]
    %v385 = vld [vmem:[#allocation8 + $0x478] sm:$0xff]
    %v386 = vld [vmem:[#allocation8 + $0x480] sm:$0xff]
    %v387 = vld [vmem:[#allocation8 + $0x488] sm:$0xff]
    %v388 = vld [vmem:[#allocation8 + $0x490] sm:$0xff]
    %v389 = vld [vmem:[#allocation8 + $0x498] sm:$0xff]
    %v390 = vld [vmem:[#allocation8 + $0x4a0] sm:$0xff]
    %v391 = vld [vmem:[#allocation8 + $0x4a8] sm:$0xff]
    %v392 = vld [vmem:[#allocation8 + $0x4b0] sm:$0xff]
    %v393 = vld [vmem:[#allocation8 + $0x4b8] sm:$0xff]
    %v394 = vld [vmem:[#allocation8 + $0x4c0] sm:$0xff]
    %v395 = vld [vmem:[#allocation8 + $0x4c8] sm:$0xff]
    %v396 = vld [vmem:[#allocation8 + $0x4d0] sm:$0xff]
    %v397 = vld [vmem:[#allocation8 + $0x4d8] sm:$0xff]
    %v398 = vld [vmem:[#allocation8 + $0x4e0] sm:$0xff]
    %v399 = vld [vmem:[#allocation8 + $0x4e8] sm:$0xff]
    %v400 = vld [vmem:[#allocation8 + $0x4f0] sm:$0xff]
    %v401 = vld [vmem:[#allocation8 + $0x4f8] sm:$0xff]
    %v402 = vld [vmem:[#allocation8 + $0x500] sm:$0xff]
    %v403 = vld [vmem:[#allocation8 + $0x508] sm:$0xff]
    %v404 = vld [vmem:[#allocation8 + $0x510] sm:$0xff]
    %v405 = vld [vmem:[#allocation8 + $0x518] sm:$0xff]
    %v406 = vld [vmem:[#allocation8 + $0x520] sm:$0xff]
    %v407 = vld [vmem:[#allocation8 + $0x528] sm:$0xff]
    %v408 = vld [vmem:[#allocation8 + $0x530] sm:$0xff]
    %v409 = vld [vmem:[#allocation8 + $0x538] sm:$0xff]
    %v410 = vld [vmem:[#allocation8 + $0x540] sm:$0xff]
    %v411 = vld [vmem:[#allocation8 + $0x548] sm:$0xff]
    %v412 = vld [vmem:[#allocation8 + $0x550] sm:$0xff]
    %v413 = vld [vmem:[#allocation8 + $0x558] sm:$0xff]
    %v414 = vld [vmem:[#allocation8 + $0x560] sm:$0xff]
    %v415 = vld [vmem:[#allocation8 + $0x568] sm:$0xff]
    %v416 = vld [vmem:[#allocation8 + $0x570] sm:$0xff]
    %v417 = vld [vmem:[#allocation8 + $0x578] sm:$0xff]
    %v418 = vld [vmem:[#allocation8 + $0x580] sm:$0xff]
    %v419 = vld [vmem:[#allocation8 + $0x588] sm:$0xff]
    %v420 = vld [vmem:[#allocation8 + $0x590] sm:$0xff]
    %v421 = vld [vmem:[#allocation8 + $0x598] sm:$0xff]
    %v422 = vld [vmem:[#allocation8 + $0x5a0] sm:$0xff]
    %v423 = vld [vmem:[#allocation8 + $0x5a8] sm:$0xff]
    %v424 = vld [vmem:[#allocation8 + $0x5b0] sm:$0xff]
    %v425 = vld [vmem:[#allocation8 + $0x5b8] sm:$0xff]
    %v426 = vld [vmem:[#allocation8 + $0x5c0] sm:$0xff]
    %v427 = vld [vmem:[#allocation8 + $0x5c8] sm:$0xff]
    %v428 = vld [vmem:[#allocation8 + $0x5d0] sm:$0xff]
    %v429 = vld [vmem:[#allocation8 + $0x5d8] sm:$0xff]
    %v430 = vld [vmem:[#allocation8 + $0x5e0] sm:$0xff]
    %v431 = vld [vmem:[#allocation8 + $0x5e8] sm:$0xff]
    %v432 = vld [vmem:[#allocation8 + $0x5f0] sm:$0xff]
    %v433 = vld [vmem:[#allocation8 + $0x5f8] sm:$0xff]
    %v434 = vld [vmem:[#allocation8 + $0x600] sm:$0xff]
    %v435 = vld [vmem:[#allocation8 + $0x608] sm:$0xff]
    %v436 = vld [vmem:[#allocation8 + $0x610] sm:$0xff]
    %v437 = vld [vmem:[#allocation8 + $0x618] sm:$0xff]
    %v438 = vld [vmem:[#allocation8 + $0x620] sm:$0xff]
    %v439 = vld [vmem:[#allocation8 + $0x628] sm:$0xff]
    %v440 = vld [vmem:[#allocation8 + $0x630] sm:$0xff]
    %v441 = vld [vmem:[#allocation8 + $0x638] sm:$0xff]
    %v442 = vld [vmem:[#allocation8 + $0x640] sm:$0xff]
    %v443 = vld [vmem:[#allocation8 + $0x648] sm:$0xff]
    %v444 = vld [vmem:[#allocation8 + $0x650] sm:$0xff]
    %v445 = vld [vmem:[#allocation8 + $0x658] sm:$0xff]
    %v446 = vld [vmem:[#allocation8 + $0x660] sm:$0xff]
    %v447 = vld [vmem:[#allocation8 + $0x668] sm:$0xff]
    %v448 = vld [vmem:[#allocation8 + $0x670] sm:$0xff]
    %v449 = vld [vmem:[#allocation8 + $0x678] sm:$0xff]
    %v450 = vld [vmem:[#allocation8 + $0x680] sm:$0xff]
    %v451 = vld [vmem:[#allocation8 + $0x688] sm:$0xff]
    %v452 = vld [vmem:[#allocation8 + $0x690] sm:$0xff]
    %v453 = vld [vmem:[#allocation8 + $0x698] sm:$0xff]
    %v454 = vld [vmem:[#allocation8 + $0x6a0] sm:$0xff]
    %v455 = vld [vmem:[#allocation8 + $0x6a8] sm:$0xff]
    %v456 = vld [vmem:[#allocation8 + $0x6b0] sm:$0xff]
    %v457 = vld [vmem:[#allocation8 + $0x6b8] sm:$0xff]
    %v458 = vld [vmem:[#allocation8 + $0x6c0] sm:$0xff]
    %v459 = vld [vmem:[#allocation8 + $0x6c8] sm:$0xff]
    %v460 = vld [vmem:[#allocation8 + $0x6d0] sm:$0xff]
    %v461 = vld [vmem:[#allocation8 + $0x6d8] sm:$0xff]
    %v462 = vld [vmem:[#allocation8 + $0x6e0] sm:$0xff]
    %v463 = vld [vmem:[#allocation8 + $0x6e8] sm:$0xff]
    %v464 = vld [vmem:[#allocation8 + $0x6f0] sm:$0xff]
    %v465 = vld [vmem:[#allocation8 + $0x6f8] sm:$0xff]
    %v466 = vld [vmem:[#allocation8 + $0x700] sm:$0xff]
    %v467 = vld [vmem:[#allocation8 + $0x708] sm:$0xff]
    %v468 = vld [vmem:[#allocation8 + $0x710] sm:$0xff]
    %v469 = vld [vmem:[#allocation8 + $0x718] sm:$0xff]
    %v470 = vld [vmem:[#allocation8 + $0x720] sm:$0xff]
    %v471 = vld [vmem:[#allocation8 + $0x728] sm:$0xff]
    %v472 = vld [vmem:[#allocation8 + $0x730] sm:$0xff]
    %v473 = vld [vmem:[#allocation8 + $0x738] sm:$0xff]
    %v474 = vld [vmem:[#allocation8 + $0x740] sm:$0xff]
    %v475 = vld [vmem:[#allocation8 + $0x748] sm:$0xff]
    %v476 = vld [vmem:[#allocation8 + $0x750] sm:$0xff]
    %v477 = vld [vmem:[#allocation8 + $0x758] sm:$0xff]
    %v478 = vld [vmem:[#allocation8 + $0x760] sm:$0xff]
    %v479 = vld [vmem:[#allocation8 + $0x768] sm:$0xff]
    %v480 = vld [vmem:[#allocation8 + $0x770] sm:$0xff]
    %v481 = vld [vmem:[#allocation8 + $0x778] sm:$0xff]
    %v482 = vld [vmem:[#allocation8 + $0x780] sm:$0xff]
    %v483 = vld [vmem:[#allocation8 + $0x788] sm:$0xff]
    %v484 = vld [vmem:[#allocation8 + $0x790] sm:$0xff]
    %v485 = vld [vmem:[#allocation8 + $0x798] sm:$0xff]
    %v486 = vld [vmem:[#allocation8 + $0x7a0] sm:$0xff]
    %v487 = vld [vmem:[#allocation8 + $0x7a8] sm:$0xff]
    %v488 = vld [vmem:[#allocation8 + $0x7b0] sm:$0xff]
    %v489 = vld [vmem:[#allocation8 + $0x7b8] sm:$0xff]
    %v490 = vld [vmem:[#allocation8 + $0x7c0] sm:$0xff]
    %v491 = vld [vmem:[#allocation8 + $0x7c8] sm:$0xff]
    %v492 = vld [vmem:[#allocation8 + $0x7d0] sm:$0xff]
    %v493 = vld [vmem:[#allocation8 + $0x7d8] sm:$0xff]
    %v494 = vld [vmem:[#allocation8 + $0x7e0] sm:$0xff]
    %v495 = vld [vmem:[#allocation8 + $0x7e8] sm:$0xff]
    %v496 = vld [vmem:[#allocation8 + $0x7f0] sm:$0xff]
    %v497 = vld [vmem:[#allocation8 + $0x7f8] sm:$0xff]
    %v498 = vld [vmem:[#allocation8 + $0x800] sm:$0xff]
    %v499 = vld [vmem:[#allocation8 + $0x808] sm:$0xff]
    %v500 = vld [vmem:[#allocation8 + $0x810] sm:$0xff]
    %v501 = vld [vmem:[#allocation8 + $0x818] sm:$0xff]
    %v502 = vld [vmem:[#allocation8 + $0x820] sm:$0xff]
    %v503 = vld [vmem:[#allocation8 + $0x828] sm:$0xff]
    %v504 = vld [vmem:[#allocation8 + $0x830] sm:$0xff]
    %v505 = vld [vmem:[#allocation8 + $0x838] sm:$0xff]
    %v506 = vld [vmem:[#allocation8 + $0x840] sm:$0xff]
    %v507 = vld [vmem:[#allocation8 + $0x848] sm:$0xff]
    %v508 = vld [vmem:[#allocation8 + $0x850] sm:$0xff]
    %v509 = vld [vmem:[#allocation8 + $0x858] sm:$0xff]
    %v510 = vld [vmem:[#allocation8 + $0x860] sm:$0xff]
    %v511 = vld [vmem:[#allocation8 + $0x868] sm:$0xff]
    %v512 = vld [vmem:[#allocation8 + $0x870] sm:$0xff]
    %v513 = vld [vmem:[#allocation8 + $0x878] sm:$0xff]
    %v514 = vld [vmem:[#allocation8 + $0x880] sm:$0xff]
    %v515 = vld [vmem:[#allocation8 + $0x888] sm:$0xff]
    %v516 = vld [vmem:[#allocation8 + $0x890] sm:$0xff]
    %v517 = vld [vmem:[#allocation8 + $0x898] sm:$0xff]
    %v518 = vld [vmem:[#allocation8 + $0x8a0] sm:$0xff]
    %v519 = vld [vmem:[#allocation8 + $0x8a8] sm:$0xff]
    %v520 = vld [vmem:[#allocation8 + $0x8b0] sm:$0xff]
    %v521 = vld [vmem:[#allocation8 + $0x8b8] sm:$0xff]
    %v522 = vld [vmem:[#allocation8 + $0x8c0] sm:$0xff]
    %v523 = vld [vmem:[#allocation8 + $0x8c8] sm:$0xff]
    %v524 = vld [vmem:[#allocation8 + $0x8d0] sm:$0xff]
    %v525 = vld [vmem:[#allocation8 + $0x8d8] sm:$0xff]
    %v526 = vld [vmem:[#allocation8 + $0x8e0] sm:$0xff]
    %v527 = vld [vmem:[#allocation8 + $0x8e8] sm:$0xff]
    %v528 = vld [vmem:[#allocation8 + $0x8f0] sm:$0xff]
    %v529 = vld [vmem:[#allocation8 + $0x8f8] sm:$0xff]
    %v530 = vld [vmem:[#allocation8 + $0x900] sm:$0xff]
    %v531 = vld [vmem:[#allocation8 + $0x908] sm:$0xff]
    %v532 = vld [vmem:[#allocation8 + $0x910] sm:$0xff]
    %v533 = vld [vmem:[#allocation8 + $0x918] sm:$0xff]
    %v534 = vld [vmem:[#allocation8 + $0x920] sm:$0xff]
    %v535 = vld [vmem:[#allocation8 + $0x928] sm:$0xff]
    %v536 = vld [vmem:[#allocation8 + $0x930] sm:$0xff]
    %v537 = vld [vmem:[#allocation8 + $0x938] sm:$0xff]
    %v538 = vld [vmem:[#allocation8 + $0x940] sm:$0xff]
    %v539 = vld [vmem:[#allocation8 + $0x948] sm:$0xff]
    %v540 = vld [vmem:[#allocation8 + $0x950] sm:$0xff]
    %v541 = vld [vmem:[#allocation8 + $0x958] sm:$0xff]
    %v542 = vld [vmem:[#allocation8 + $0x960] sm:$0xff]
    %v543 = vld [vmem:[#allocation8 + $0x968] sm:$0xff]
    %v544 = vld [vmem:[#allocation8 + $0x970] sm:$0xff]
    %v545 = vld [vmem:[#allocation8 + $0x978] sm:$0xff]
    %v546 = vld [vmem:[#allocation8 + $0x980] sm:$0xff]
    %v547 = vld [vmem:[#allocation8 + $0x988] sm:$0xff]
    %v548 = vld [vmem:[#allocation8 + $0x990] sm:$0xff]
    %v549 = vld [vmem:[#allocation8 + $0x998] sm:$0xff]
    %v550 = vld [vmem:[#allocation8 + $0x9a0] sm:$0xff]
    %v551 = vld [vmem:[#allocation8 + $0x9a8] sm:$0xff]
    %v552 = vld [vmem:[#allocation8 + $0x9b0] sm:$0xff]
    %v553 = vld [vmem:[#allocation8 + $0x9b8] sm:$0xff]
    %v554 = vld [vmem:[#allocation8 + $0x9c0] sm:$0xff]
    %v555 = vld [vmem:[#allocation8 + $0x9c8] sm:$0xff]
    %v556 = vld [vmem:[#allocation8 + $0x9d0] sm:$0xff]
    %v557 = vld [vmem:[#allocation8 + $0x9d8] sm:$0xff]
    %v558 = vld [vmem:[#allocation8 + $0x9e0] sm:$0xff]
    %v559 = vld [vmem:[#allocation8 + $0x9e8] sm:$0xff]
    %v560 = vld [vmem:[#allocation8 + $0x9f0] sm:$0xff]
    %v561 = vld [vmem:[#allocation8 + $0x9f8] sm:$0xff]
    %v562 = vld [vmem:[#allocation8 + $0xa00] sm:$0xff]
    %v563 = vld [vmem:[#allocation8 + $0xa08] sm:$0xff]
    %v564 = vld [vmem:[#allocation8 + $0xa10] sm:$0xff]
    %v565 = vld [vmem:[#allocation8 + $0xa18] sm:$0xff]
    %v566 = vld [vmem:[#allocation8 + $0xa20] sm:$0xff]
    %v567 = vld [vmem:[#allocation8 + $0xa28] sm:$0xff]
    %v568 = vld [vmem:[#allocation8 + $0xa30] sm:$0xff]
    %v569 = vld [vmem:[#allocation8 + $0xa38] sm:$0xff]
    %v570 = vld [vmem:[#allocation8 + $0xa40] sm:$0xff]
    %v571 = vld [vmem:[#allocation8 + $0xa48] sm:$0xff]
    %v572 = vld [vmem:[#allocation8 + $0xa50] sm:$0xff]
    %v573 = vld [vmem:[#allocation8 + $0xa58] sm:$0xff]
    %v574 = vld [vmem:[#allocation8 + $0xa60] sm:$0xff]
    %v575 = vld [vmem:[#allocation8 + $0xa68] sm:$0xff]
    %v576 = vld [vmem:[#allocation8 + $0xa70] sm:$0xff]
    %v577 = vld [vmem:[#allocation8 + $0xa78] sm:$0xff]
    %v578 = vld [vmem:[#allocation8 + $0xa80] sm:$0xff]
    %v579 = vld [vmem:[#allocation8 + $0xa88] sm:$0xff]
    %v580 = vld [vmem:[#allocation8 + $0xa90] sm:$0xff]
    %v581 = vld [vmem:[#allocation8 + $0xa98] sm:$0xff]
    %v582 = vld [vmem:[#allocation8 + $0xaa0] sm:$0xff]
    %v583 = vld [vmem:[#allocation8 + $0xaa8] sm:$0xff]
    %v584 = vld [vmem:[#allocation8 + $0xab0] sm:$0xff]
    %v585 = vld [vmem:[#allocation8 + $0xab8] sm:$0xff]
    %v586 = vld [vmem:[#allocation8 + $0xac0] sm:$0xff]
    %v587 = vld [vmem:[#allocation8 + $0xac8] sm:$0xff]
    %v588 = vld [vmem:[#allocation8 + $0xad0] sm:$0xff]
    %v589 = vld [vmem:[#allocation8 + $0xad8] sm:$0xff]
    %v590 = vld [vmem:[#allocation8 + $0xae0] sm:$0xff]
    %v591 = vld [vmem:[#allocation8 + $0xae8] sm:$0xff]
    %v592 = vld [vmem:[#allocation8 + $0xaf0] sm:$0xff]
    %v593 = vld [vmem:[#allocation8 + $0xaf8] sm:$0xff]
    %v594 = vld [vmem:[#allocation8 + $0xb00] sm:$0xff]
    %v595 = vld [vmem:[#allocation8 + $0xb08] sm:$0xff]
    %v596 = vld [vmem:[#allocation8 + $0xb10] sm:$0xff]
    %v597 = vld [vmem:[#allocation8 + $0xb18] sm:$0xff]
    %v598 = vld [vmem:[#allocation8 + $0xb20] sm:$0xff]
    %v599 = vld [vmem:[#allocation8 + $0xb28] sm:$0xff]
    %v600 = vld [vmem:[#allocation8 + $0xb30] sm:$0xff]
    %v601 = vld [vmem:[#allocation8 + $0xb38] sm:$0xff]
    %v602 = vld [vmem:[#allocation8 + $0xb40] sm:$0xff]
    %v603 = vld [vmem:[#allocation8 + $0xb48] sm:$0xff]
    %v604 = vld [vmem:[#allocation8 + $0xb50] sm:$0xff]
    %v605 = vld [vmem:[#allocation8 + $0xb58] sm:$0xff]
    %v606 = vld [vmem:[#allocation8 + $0xb60] sm:$0xff]
    %v607 = vld [vmem:[#allocation8 + $0xb68] sm:$0xff]
    %v608 = vld [vmem:[#allocation8 + $0xb70] sm:$0xff]
    %v609 = vld [vmem:[#allocation8 + $0xb78] sm:$0xff]
    %v610 = vld [vmem:[#allocation8 + $0xb80] sm:$0xff]
    %v611 = vld [vmem:[#allocation8 + $0xb88] sm:$0xff]
    %v612 = vld [vmem:[#allocation8 + $0xb90] sm:$0xff]
    %v613 = vld [vmem:[#allocation8 + $0xb98] sm:$0xff]
    %v614 = vld [vmem:[#allocation8 + $0xba0] sm:$0xff]
    %v615 = vld [vmem:[#allocation8 + $0xba8] sm:$0xff]
    %v616 = vld [vmem:[#allocation8 + $0xbb0] sm:$0xff]
    %v617 = vld [vmem:[#allocation8 + $0xbb8] sm:$0xff]
    %v618 = vld [vmem:[#allocation8 + $0xbc0] sm:$0xff]
    %v619 = vld [vmem:[#allocation8 + $0xbc8] sm:$0xff]
    %v620 = vld [vmem:[#allocation8 + $0xbd0] sm:$0xff]
    %v621 = vld [vmem:[#allocation8 + $0xbd8] sm:$0xff]
    %v622 = vld [vmem:[#allocation8 + $0xbe0] sm:$0xff]
    %v623 = vld [vmem:[#allocation8 + $0xbe8] sm:$0xff]
    %v624 = vld [vmem:[#allocation8 + $0xbf0] sm:$0xff]
    %v625 = vld [vmem:[#allocation8 + $0xbf8] sm:$0xff]
    %v626 = vld [vmem:[#allocation10] sm:$0xff]
    %v627 = vld [vmem:[#allocation10 + $0x8] sm:$0xf]
    %v630 = vlaneseq
    %v631 = vshrl.u32 %v630, 7
    %v632 = vsub.s32 0, %v631
    %v633 = vrot.slane %v626, %v632
    %v634 = vlaneseq
    %v635 = vshrl.u32 %v634, 7
    %v636 = vsub.s32 1, %v635
    %v637 = vrot.slane %v626, %v636
    %v638 = vlaneseq
    %v639 = vshrl.u32 %v638, 7
    %v640 = vsub.s32 2, %v639
    %v641 = vrot.slane %v626, %v640
    %v642 = vlaneseq
    %v643 = vshrl.u32 %v642, 7
    %v644 = vsub.s32 3, %v643
    %v645 = vrot.slane %v626, %v644
    %v646 = vlaneseq
    %v647 = vshrl.u32 %v646, 7
    %v648 = vsub.s32 4, %v647
    %v649 = vrot.slane %v626, %v648
    %v650 = vlaneseq
    %v651 = vshrl.u32 %v650, 7
    %v652 = vsub.s32 5, %v651
    %v653 = vrot.slane %v626, %v652
    %v654 = vlaneseq
    %v655 = vshrl.u32 %v654, 7
    %v656 = vsub.s32 6, %v655
    %v657 = vrot.slane %v626, %v656
    %v658 = vlaneseq
    %v659 = vshrl.u32 %v658, 7
    %v660 = vsub.s32 7, %v659
    %v661 = vrot.slane %v626, %v660
    %v662 = vlaneseq
    %v663 = vshrl.u32 %v662, 7
    %v664 = vsub.s32 0, %v663
    %v665 = vrot.slane %v627, %v664
    %v666 = vlaneseq
    %v667 = vshrl.u32 %v666, 7
    %v668 = vsub.s32 1, %v667
    %v669 = vrot.slane %v627, %v668
    %v670 = vlaneseq
    %v671 = vshrl.u32 %v670, 7
    %v672 = vsub.s32 2, %v671
    %v673 = vrot.slane %v627, %v672
    %v674 = vlaneseq
    %v675 = vshrl.u32 %v674, 7
    %v676 = vsub.s32 3, %v675
    %v677 = vrot.slane %v627, %v676
    %v1074 = vunpack.c.l.b16 %v242
    %v1075 = vunpack.c.h.b16 %v242
    %v1076 = vunpack.c.l.b16 %v243
    %v1077 = vunpack.c.h.b16 %v243
    %v1078 = vunpack.c.l.b16 %v244
    %v1079 = vunpack.c.h.b16 %v244
    %v1080 = vunpack.c.l.b16 %v245
    %v1081 = vunpack.c.h.b16 %v245
    %v1082 = vunpack.c.l.b16 %v246
    %v1083 = vunpack.c.h.b16 %v246
    %v1084 = vunpack.c.l.b16 %v247
    %v1085 = vunpack.c.h.b16 %v247
    %v1086 = vunpack.c.l.b16 %v248
    %v1087 = vunpack.c.h.b16 %v248
    %v1088 = vunpack.c.l.b16 %v249
    %v1089 = vunpack.c.h.b16 %v249
    %v1090 = vunpack.c.l.b16 %v250
    %v1091 = vunpack.c.h.b16 %v250
    %v1092 = vunpack.c.l.b16 %v251
    %v1093 = vunpack.c.h.b16 %v251
    %v1094 = vunpack.c.l.b16 %v252
    %v1095 = vunpack.c.h.b16 %v252
    %v1096 = vunpack.c.l.b16 %v253
    %v1097 = vunpack.c.h.b16 %v253
    %v1098 = vunpack.c.l.b16 %v254
    %v1099 = vunpack.c.h.b16 %v254
    %v1100 = vunpack.c.l.b16 %v255
    %v1101 = vunpack.c.h.b16 %v255
    %v1102 = vunpack.c.l.b16 %v256
    %v1103 = vunpack.c.h.b16 %v256
    %v1104 = vunpack.c.l.b16 %v257
    %v1105 = vunpack.c.h.b16 %v257
    %v1106 = vunpack.c.l.b16 %v258
    %v1107 = vunpack.c.h.b16 %v258
    %v1108 = vunpack.c.l.b16 %v259
    %v1109 = vunpack.c.h.b16 %v259
    %v1110 = vunpack.c.l.b16 %v260
    %v1111 = vunpack.c.h.b16 %v260
    %v1112 = vunpack.c.l.b16 %v261
    %v1113 = vunpack.c.h.b16 %v261
    %v1114 = vunpack.c.l.b16 %v262
    %v1115 = vunpack.c.h.b16 %v262
    %v1116 = vunpack.c.l.b16 %v263
    %v1117 = vunpack.c.h.b16 %v263
    %v1118 = vunpack.c.l.b16 %v264
    %v1119 = vunpack.c.h.b16 %v264
    %v1120 = vunpack.c.l.b16 %v265
    %v1121 = vunpack.c.h.b16 %v265
    %v1122 = vunpack.c.l.b16 %v266
    %v1123 = vunpack.c.h.b16 %v266
    %v1124 = vunpack.c.l.b16 %v267
    %v1125 = vunpack.c.h.b16 %v267
    %v1126 = vunpack.c.l.b16 %v268
    %v1127 = vunpack.c.h.b16 %v268
    %v1128 = vunpack.c.l.b16 %v269
    %v1129 = vunpack.c.h.b16 %v269
    %v1130 = vunpack.c.l.b16 %v270
    %v1131 = vunpack.c.h.b16 %v270
    %v1132 = vunpack.c.l.b16 %v271
    %v1133 = vunpack.c.h.b16 %v271
    %v1134 = vunpack.c.l.b16 %v272
    %v1135 = vunpack.c.h.b16 %v272
    %v1136 = vunpack.c.l.b16 %v273
    %v1137 = vunpack.c.h.b16 %v273
    %v1138 = vunpack.c.l.b16 %v274
    %v1139 = vunpack.c.h.b16 %v274
    %v1140 = vunpack.c.l.b16 %v275
    %v1141 = vunpack.c.h.b16 %v275
    %v1142 = vunpack.c.l.b16 %v276
    %v1143 = vunpack.c.h.b16 %v276
    %v1144 = vunpack.c.l.b16 %v277
    %v1145 = vunpack.c.h.b16 %v277
    %v1146 = vunpack.c.l.b16 %v278
    %v1147 = vunpack.c.h.b16 %v278
    %v1148 = vunpack.c.l.b16 %v279
    %v1149 = vunpack.c.h.b16 %v279
    %v1150 = vunpack.c.l.b16 %v280
    %v1151 = vunpack.c.h.b16 %v280
    %v1152 = vunpack.c.l.b16 %v281
    %v1153 = vunpack.c.h.b16 %v281
    %v1154 = vunpack.c.l.b16 %v282
    %v1155 = vunpack.c.h.b16 %v282
    %v1156 = vunpack.c.l.b16 %v283
    %v1157 = vunpack.c.h.b16 %v283
    %v1158 = vunpack.c.l.b16 %v284
    %v1159 = vunpack.c.h.b16 %v284
    %v1160 = vunpack.c.l.b16 %v285
    %v1161 = vunpack.c.h.b16 %v285
    %v1162 = vunpack.c.l.b16 %v286
    %v1163 = vunpack.c.h.b16 %v286
    %v1164 = vunpack.c.l.b16 %v287
    %v1165 = vunpack.c.h.b16 %v287
    %v1166 = vunpack.c.l.b16 %v288
    %v1167 = vunpack.c.h.b16 %v288
    %v1168 = vunpack.c.l.b16 %v289
    %v1169 = vunpack.c.h.b16 %v289
    %v1170 = vunpack.c.l.b16 %v290
    %v1171 = vunpack.c.h.b16 %v290
    %v1172 = vunpack.c.l.b16 %v291
    %v1173 = vunpack.c.h.b16 %v291
    %v1174 = vunpack.c.l.b16 %v292
    %v1175 = vunpack.c.h.b16 %v292
    %v1176 = vunpack.c.l.b16 %v293
    %v1177 = vunpack.c.h.b16 %v293
    %v1178 = vunpack.c.l.b16 %v294
    %v1179 = vunpack.c.h.b16 %v294
    %v1180 = vunpack.c.l.b16 %v295
    %v1181 = vunpack.c.h.b16 %v295
    %v1182 = vunpack.c.l.b16 %v296
    %v1183 = vunpack.c.h.b16 %v296
    %v1184 = vunpack.c.l.b16 %v297
    %v1185 = vunpack.c.h.b16 %v297
    %v1186 = vunpack.c.l.b16 %v298
    %v1187 = vunpack.c.h.b16 %v298
    %v1188 = vunpack.c.l.b16 %v299
    %v1189 = vunpack.c.h.b16 %v299
    %v1190 = vunpack.c.l.b16 %v300
    %v1191 = vunpack.c.h.b16 %v300
    %v1192 = vunpack.c.l.b16 %v301
    %v1193 = vunpack.c.h.b16 %v301
    %v1194 = vunpack.c.l.b16 %v302
    %v1195 = vunpack.c.h.b16 %v302
    %v1196 = vunpack.c.l.b16 %v303
    %v1197 = vunpack.c.h.b16 %v303
    %v1198 = vunpack.c.l.b16 %v304
    %v1199 = vunpack.c.h.b16 %v304
    %v1200 = vunpack.c.l.b16 %v305
    %v1201 = vunpack.c.h.b16 %v305
    %v1202 = vunpack.c.l.b16 %v306
    %v1203 = vunpack.c.h.b16 %v306
    %v1204 = vunpack.c.l.b16 %v307
    %v1205 = vunpack.c.h.b16 %v307
    %v1206 = vunpack.c.l.b16 %v308
    %v1207 = vunpack.c.h.b16 %v308
    %v1208 = vunpack.c.l.b16 %v309
    %v1209 = vunpack.c.h.b16 %v309
    %v1210 = vunpack.c.l.b16 %v310
    %v1211 = vunpack.c.h.b16 %v310
    %v1212 = vunpack.c.l.b16 %v311
    %v1213 = vunpack.c.h.b16 %v311
    %v1214 = vunpack.c.l.b16 %v312
    %v1215 = vunpack.c.h.b16 %v312
    %v1216 = vunpack.c.l.b16 %v313
    %v1217 = vunpack.c.h.b16 %v313
    %v1218 = vunpack.c.l.b16 %v314
    %v1219 = vunpack.c.h.b16 %v314
    %v1220 = vunpack.c.l.b16 %v315
    %v1221 = vunpack.c.h.b16 %v315
    %v1222 = vunpack.c.l.b16 %v316
    %v1223 = vunpack.c.h.b16 %v316
    %v1224 = vunpack.c.l.b16 %v317
    %v1225 = vunpack.c.h.b16 %v317
    %v1226 = vunpack.c.l.b16 %v318
    %v1227 = vunpack.c.h.b16 %v318
    %v1228 = vunpack.c.l.b16 %v319
    %v1229 = vunpack.c.h.b16 %v319
    %v1230 = vunpack.c.l.b16 %v320
    %v1231 = vunpack.c.h.b16 %v320
    %v1232 = vunpack.c.l.b16 %v321
    %v1233 = vunpack.c.h.b16 %v321
    %v1234 = vunpack.c.l.b16 %v322
    %v1235 = vunpack.c.h.b16 %v322
    %v1236 = vunpack.c.l.b16 %v323
    %v1237 = vunpack.c.h.b16 %v323
    %v1238 = vunpack.c.l.b16 %v324
    %v1239 = vunpack.c.h.b16 %v324
    %v1240 = vunpack.c.l.b16 %v325
    %v1241 = vunpack.c.h.b16 %v325
    %v1242 = vunpack.c.l.b16 %v326
    %v1243 = vunpack.c.h.b16 %v326
    %v1244 = vunpack.c.l.b16 %v327
    %v1245 = vunpack.c.h.b16 %v327
    %v1246 = vunpack.c.l.b16 %v328
    %v1247 = vunpack.c.h.b16 %v328
    %v1248 = vunpack.c.l.b16 %v329
    %v1249 = vunpack.c.h.b16 %v329
    %v1250 = vunpack.c.l.b16 %v330
    %v1251 = vunpack.c.h.b16 %v330
    %v1252 = vunpack.c.l.b16 %v331
    %v1253 = vunpack.c.h.b16 %v331
    %v1254 = vunpack.c.l.b16 %v332
    %v1255 = vunpack.c.h.b16 %v332
    %v1256 = vunpack.c.l.b16 %v333
    %v1257 = vunpack.c.h.b16 %v333
    %v1258 = vunpack.c.l.b16 %v334
    %v1259 = vunpack.c.h.b16 %v334
    %v1260 = vunpack.c.l.b16 %v335
    %v1261 = vunpack.c.h.b16 %v335
    %v1262 = vunpack.c.l.b16 %v336
    %v1263 = vunpack.c.h.b16 %v336
    %v1264 = vunpack.c.l.b16 %v337
    %v1265 = vunpack.c.h.b16 %v337
    %v1266 = vunpack.c.l.b16 %v338
    %v1267 = vunpack.c.h.b16 %v338
    %v1268 = vunpack.c.l.b16 %v339
    %v1269 = vunpack.c.h.b16 %v339
    %v1270 = vunpack.c.l.b16 %v340
    %v1271 = vunpack.c.h.b16 %v340
    %v1272 = vunpack.c.l.b16 %v341
    %v1273 = vunpack.c.h.b16 %v341
    %v1274 = vunpack.c.l.b16 %v342
    %v1275 = vunpack.c.h.b16 %v342
    %v1276 = vunpack.c.l.b16 %v343
    %v1277 = vunpack.c.h.b16 %v343
    %v1278 = vunpack.c.l.b16 %v344
    %v1279 = vunpack.c.h.b16 %v344
    %v1280 = vunpack.c.l.b16 %v345
    %v1281 = vunpack.c.h.b16 %v345
    %v1282 = vunpack.c.l.b16 %v346
    %v1283 = vunpack.c.h.b16 %v346
    %v1284 = vunpack.c.l.b16 %v347
    %v1285 = vunpack.c.h.b16 %v347
    %v1286 = vunpack.c.l.b16 %v348
    %v1287 = vunpack.c.h.b16 %v348
    %v1288 = vunpack.c.l.b16 %v349
    %v1289 = vunpack.c.h.b16 %v349
    %v1290 = vunpack.c.l.b16 %v350
    %v1291 = vunpack.c.h.b16 %v350
    %v1292 = vunpack.c.l.b16 %v351
    %v1293 = vunpack.c.h.b16 %v351
    %v1294 = vunpack.c.l.b16 %v352
    %v1295 = vunpack.c.h.b16 %v352
    %v1296 = vunpack.c.l.b16 %v353
    %v1297 = vunpack.c.h.b16 %v353
    %v1298 = vunpack.c.l.b16 %v354
    %v1299 = vunpack.c.h.b16 %v354
    %v1300 = vunpack.c.l.b16 %v355
    %v1301 = vunpack.c.h.b16 %v355
    %v1302 = vunpack.c.l.b16 %v356
    %v1303 = vunpack.c.h.b16 %v356
    %v1304 = vunpack.c.l.b16 %v357
    %v1305 = vunpack.c.h.b16 %v357
    %v1306 = vunpack.c.l.b16 %v358
    %v1307 = vunpack.c.h.b16 %v358
    %v1308 = vunpack.c.l.b16 %v359
    %v1309 = vunpack.c.h.b16 %v359
    %v1310 = vunpack.c.l.b16 %v360
    %v1311 = vunpack.c.h.b16 %v360
    %v1312 = vunpack.c.l.b16 %v361
    %v1313 = vunpack.c.h.b16 %v361
    %v1314 = vunpack.c.l.b16 %v362
    %v1315 = vunpack.c.h.b16 %v362
    %v1316 = vunpack.c.l.b16 %v363
    %v1317 = vunpack.c.h.b16 %v363
    %v1318 = vunpack.c.l.b16 %v364
    %v1319 = vunpack.c.h.b16 %v364
    %v1320 = vunpack.c.l.b16 %v365
    %v1321 = vunpack.c.h.b16 %v365
    %v1322 = vunpack.c.l.b16 %v366
    %v1323 = vunpack.c.h.b16 %v366
    %v1324 = vunpack.c.l.b16 %v367
    %v1325 = vunpack.c.h.b16 %v367
    %v1326 = vunpack.c.l.b16 %v368
    %v1327 = vunpack.c.h.b16 %v368
    %v1328 = vunpack.c.l.b16 %v369
    %v1329 = vunpack.c.h.b16 %v369
    %v1330 = vunpack.c.l.b16 %v370
    %v1331 = vunpack.c.h.b16 %v370
    %v1332 = vunpack.c.l.b16 %v371
    %v1333 = vunpack.c.h.b16 %v371
    %v1334 = vunpack.c.l.b16 %v372
    %v1335 = vunpack.c.h.b16 %v372
    %v1336 = vunpack.c.l.b16 %v373
    %v1337 = vunpack.c.h.b16 %v373
    %v1338 = vunpack.c.l.b16 %v374
    %v1339 = vunpack.c.h.b16 %v374
    %v1340 = vunpack.c.l.b16 %v375
    %v1341 = vunpack.c.h.b16 %v375
    %v1342 = vunpack.c.l.b16 %v376
    %v1343 = vunpack.c.h.b16 %v376
    %v1344 = vunpack.c.l.b16 %v377
    %v1345 = vunpack.c.h.b16 %v377
    %v1346 = vunpack.c.l.b16 %v378
    %v1347 = vunpack.c.h.b16 %v378
    %v1348 = vunpack.c.l.b16 %v379
    %v1349 = vunpack.c.h.b16 %v379
    %v1350 = vunpack.c.l.b16 %v380
    %v1351 = vunpack.c.h.b16 %v380
    %v1352 = vunpack.c.l.b16 %v381
    %v1353 = vunpack.c.h.b16 %v381
    %v1354 = vunpack.c.l.b16 %v382
    %v1355 = vunpack.c.h.b16 %v382
    %v1356 = vunpack.c.l.b16 %v383
    %v1357 = vunpack.c.h.b16 %v383
    %v1358 = vunpack.c.l.b16 %v384
    %v1359 = vunpack.c.h.b16 %v384
    %v1360 = vunpack.c.l.b16 %v385
    %v1361 = vunpack.c.h.b16 %v385
    %v1362 = vunpack.c.l.b16 %v386
    %v1363 = vunpack.c.h.b16 %v386
    %v1364 = vunpack.c.l.b16 %v387
    %v1365 = vunpack.c.h.b16 %v387
    %v1366 = vunpack.c.l.b16 %v388
    %v1367 = vunpack.c.h.b16 %v388
    %v1368 = vunpack.c.l.b16 %v389
    %v1369 = vunpack.c.h.b16 %v389
    %v1370 = vunpack.c.l.b16 %v390
    %v1371 = vunpack.c.h.b16 %v390
    %v1372 = vunpack.c.l.b16 %v391
    %v1373 = vunpack.c.h.b16 %v391
    %v1374 = vunpack.c.l.b16 %v392
    %v1375 = vunpack.c.h.b16 %v392
    %v1376 = vunpack.c.l.b16 %v393
    %v1377 = vunpack.c.h.b16 %v393
    %v1378 = vunpack.c.l.b16 %v394
    %v1379 = vunpack.c.h.b16 %v394
    %v1380 = vunpack.c.l.b16 %v395
    %v1381 = vunpack.c.h.b16 %v395
    %v1382 = vunpack.c.l.b16 %v396
    %v1383 = vunpack.c.h.b16 %v396
    %v1384 = vunpack.c.l.b16 %v397
    %v1385 = vunpack.c.h.b16 %v397
    %v1386 = vunpack.c.l.b16 %v398
    %v1387 = vunpack.c.h.b16 %v398
    %v1388 = vunpack.c.l.b16 %v399
    %v1389 = vunpack.c.h.b16 %v399
    %v1390 = vunpack.c.l.b16 %v400
    %v1391 = vunpack.c.h.b16 %v400
    %v1392 = vunpack.c.l.b16 %v401
    %v1393 = vunpack.c.h.b16 %v401
    %v1394 = vunpack.c.l.b16 %v402
    %v1395 = vunpack.c.h.b16 %v402
    %v1396 = vunpack.c.l.b16 %v403
    %v1397 = vunpack.c.h.b16 %v403
    %v1398 = vunpack.c.l.b16 %v404
    %v1399 = vunpack.c.h.b16 %v404
    %v1400 = vunpack.c.l.b16 %v405
    %v1401 = vunpack.c.h.b16 %v405
    %v1402 = vunpack.c.l.b16 %v406
    %v1403 = vunpack.c.h.b16 %v406
    %v1404 = vunpack.c.l.b16 %v407
    %v1405 = vunpack.c.h.b16 %v407
    %v1406 = vunpack.c.l.b16 %v408
    %v1407 = vunpack.c.h.b16 %v408
    %v1408 = vunpack.c.l.b16 %v409
    %v1409 = vunpack.c.h.b16 %v409
    %v1410 = vunpack.c.l.b16 %v410
    %v1411 = vunpack.c.h.b16 %v410
    %v1412 = vunpack.c.l.b16 %v411
    %v1413 = vunpack.c.h.b16 %v411
    %v1414 = vunpack.c.l.b16 %v412
    %v1415 = vunpack.c.h.b16 %v412
    %v1416 = vunpack.c.l.b16 %v413
    %v1417 = vunpack.c.h.b16 %v413
    %v1418 = vunpack.c.l.b16 %v414
    %v1419 = vunpack.c.h.b16 %v414
    %v1420 = vunpack.c.l.b16 %v415
    %v1421 = vunpack.c.h.b16 %v415
    %v1422 = vunpack.c.l.b16 %v416
    %v1423 = vunpack.c.h.b16 %v416
    %v1424 = vunpack.c.l.b16 %v417
    %v1425 = vunpack.c.h.b16 %v417
    %v1426 = vunpack.c.l.b16 %v418
    %v1427 = vunpack.c.h.b16 %v418
    %v1428 = vunpack.c.l.b16 %v419
    %v1429 = vunpack.c.h.b16 %v419
    %v1430 = vunpack.c.l.b16 %v420
    %v1431 = vunpack.c.h.b16 %v420
    %v1432 = vunpack.c.l.b16 %v421
    %v1433 = vunpack.c.h.b16 %v421
    %v1434 = vunpack.c.l.b16 %v422
    %v1435 = vunpack.c.h.b16 %v422
    %v1436 = vunpack.c.l.b16 %v423
    %v1437 = vunpack.c.h.b16 %v423
    %v1438 = vunpack.c.l.b16 %v424
    %v1439 = vunpack.c.h.b16 %v424
    %v1440 = vunpack.c.l.b16 %v425
    %v1441 = vunpack.c.h.b16 %v425
    %v1442 = vunpack.c.l.b16 %v426
    %v1443 = vunpack.c.h.b16 %v426
    %v1444 = vunpack.c.l.b16 %v427
    %v1445 = vunpack.c.h.b16 %v427
    %v1446 = vunpack.c.l.b16 %v428
    %v1447 = vunpack.c.h.b16 %v428
    %v1448 = vunpack.c.l.b16 %v429
    %v1449 = vunpack.c.h.b16 %v429
    %v1450 = vunpack.c.l.b16 %v430
    %v1451 = vunpack.c.h.b16 %v430
    %v1452 = vunpack.c.l.b16 %v431
    %v1453 = vunpack.c.h.b16 %v431
    %v1454 = vunpack.c.l.b16 %v432
    %v1455 = vunpack.c.h.b16 %v432
    %v1456 = vunpack.c.l.b16 %v433
    %v1457 = vunpack.c.h.b16 %v433
    %v1458 = vunpack.c.l.b16 %v434
    %v1459 = vunpack.c.h.b16 %v434
    %v1460 = vunpack.c.l.b16 %v435
    %v1461 = vunpack.c.h.b16 %v435
    %v1462 = vunpack.c.l.b16 %v436
    %v1463 = vunpack.c.h.b16 %v436
    %v1464 = vunpack.c.l.b16 %v437
    %v1465 = vunpack.c.h.b16 %v437
    %v1466 = vunpack.c.l.b16 %v438
    %v1467 = vunpack.c.h.b16 %v438
    %v1468 = vunpack.c.l.b16 %v439
    %v1469 = vunpack.c.h.b16 %v439
    %v1470 = vunpack.c.l.b16 %v440
    %v1471 = vunpack.c.h.b16 %v440
    %v1472 = vunpack.c.l.b16 %v441
    %v1473 = vunpack.c.h.b16 %v441
    %v1474 = vunpack.c.l.b16 %v442
    %v1475 = vunpack.c.h.b16 %v442
    %v1476 = vunpack.c.l.b16 %v443
    %v1477 = vunpack.c.h.b16 %v443
    %v1478 = vunpack.c.l.b16 %v444
    %v1479 = vunpack.c.h.b16 %v444
    %v1480 = vunpack.c.l.b16 %v445
    %v1481 = vunpack.c.h.b16 %v445
    %v1482 = vunpack.c.l.b16 %v446
    %v1483 = vunpack.c.h.b16 %v446
    %v1484 = vunpack.c.l.b16 %v447
    %v1485 = vunpack.c.h.b16 %v447
    %v1486 = vunpack.c.l.b16 %v448
    %v1487 = vunpack.c.h.b16 %v448
    %v1488 = vunpack.c.l.b16 %v449
    %v1489 = vunpack.c.h.b16 %v449
    %v1490 = vunpack.c.l.b16 %v450
    %v1491 = vunpack.c.h.b16 %v450
    %v1492 = vunpack.c.l.b16 %v451
    %v1493 = vunpack.c.h.b16 %v451
    %v1494 = vunpack.c.l.b16 %v452
    %v1495 = vunpack.c.h.b16 %v452
    %v1496 = vunpack.c.l.b16 %v453
    %v1497 = vunpack.c.h.b16 %v453
    %v1498 = vunpack.c.l.b16 %v454
    %v1499 = vunpack.c.h.b16 %v454
    %v1500 = vunpack.c.l.b16 %v455
    %v1501 = vunpack.c.h.b16 %v455
    %v1502 = vunpack.c.l.b16 %v456
    %v1503 = vunpack.c.h.b16 %v456
    %v1504 = vunpack.c.l.b16 %v457
    %v1505 = vunpack.c.h.b16 %v457
    %v1506 = vunpack.c.l.b16 %v458
    %v1507 = vunpack.c.h.b16 %v458
    %v1508 = vunpack.c.l.b16 %v459
    %v1509 = vunpack.c.h.b16 %v459
    %v1510 = vunpack.c.l.b16 %v460
    %v1511 = vunpack.c.h.b16 %v460
    %v1512 = vunpack.c.l.b16 %v461
    %v1513 = vunpack.c.h.b16 %v461
    %v1514 = vunpack.c.l.b16 %v462
    %v1515 = vunpack.c.h.b16 %v462
    %v1516 = vunpack.c.l.b16 %v463
    %v1517 = vunpack.c.h.b16 %v463
    %v1518 = vunpack.c.l.b16 %v464
    %v1519 = vunpack.c.h.b16 %v464
    %v1520 = vunpack.c.l.b16 %v465
    %v1521 = vunpack.c.h.b16 %v465
    %v1522 = vunpack.c.l.b16 %v466
    %v1523 = vunpack.c.h.b16 %v466
    %v1524 = vunpack.c.l.b16 %v467
    %v1525 = vunpack.c.h.b16 %v467
    %v1526 = vunpack.c.l.b16 %v468
    %v1527 = vunpack.c.h.b16 %v468
    %v1528 = vunpack.c.l.b16 %v469
    %v1529 = vunpack.c.h.b16 %v469
    %v1530 = vunpack.c.l.b16 %v470
    %v1531 = vunpack.c.h.b16 %v470
    %v1532 = vunpack.c.l.b16 %v471
    %v1533 = vunpack.c.h.b16 %v471
    %v1534 = vunpack.c.l.b16 %v472
    %v1535 = vunpack.c.h.b16 %v472
    %v1536 = vunpack.c.l.b16 %v473
    %v1537 = vunpack.c.h.b16 %v473
    %v1538 = vunpack.c.l.b16 %v474
    %v1539 = vunpack.c.h.b16 %v474
    %v1540 = vunpack.c.l.b16 %v475
    %v1541 = vunpack.c.h.b16 %v475
    %v1542 = vunpack.c.l.b16 %v476
    %v1543 = vunpack.c.h.b16 %v476
    %v1544 = vunpack.c.l.b16 %v477
    %v1545 = vunpack.c.h.b16 %v477
    %v1546 = vunpack.c.l.b16 %v478
    %v1547 = vunpack.c.h.b16 %v478
    %v1548 = vunpack.c.l.b16 %v479
    %v1549 = vunpack.c.h.b16 %v479
    %v1550 = vunpack.c.l.b16 %v480
    %v1551 = vunpack.c.h.b16 %v480
    %v1552 = vunpack.c.l.b16 %v481
    %v1553 = vunpack.c.h.b16 %v481
    %v1554 = vunpack.c.l.b16 %v482
    %v1555 = vunpack.c.h.b16 %v482
    %v1556 = vunpack.c.l.b16 %v483
    %v1557 = vunpack.c.h.b16 %v483
    %v1558 = vunpack.c.l.b16 %v484
    %v1559 = vunpack.c.h.b16 %v484
    %v1560 = vunpack.c.l.b16 %v485
    %v1561 = vunpack.c.h.b16 %v485
    %v1562 = vunpack.c.l.b16 %v486
    %v1563 = vunpack.c.h.b16 %v486
    %v1564 = vunpack.c.l.b16 %v487
    %v1565 = vunpack.c.h.b16 %v487
    %v1566 = vunpack.c.l.b16 %v488
    %v1567 = vunpack.c.h.b16 %v488
    %v1568 = vunpack.c.l.b16 %v489
    %v1569 = vunpack.c.h.b16 %v489
    %v1570 = vunpack.c.l.b16 %v490
    %v1571 = vunpack.c.h.b16 %v490
    %v1572 = vunpack.c.l.b16 %v491
    %v1573 = vunpack.c.h.b16 %v491
    %v1574 = vunpack.c.l.b16 %v492
    %v1575 = vunpack.c.h.b16 %v492
    %v1576 = vunpack.c.l.b16 %v493
    %v1577 = vunpack.c.h.b16 %v493
    %v1578 = vunpack.c.l.b16 %v494
    %v1579 = vunpack.c.h.b16 %v494
    %v1580 = vunpack.c.l.b16 %v495
    %v1581 = vunpack.c.h.b16 %v495
    %v1582 = vunpack.c.l.b16 %v496
    %v1583 = vunpack.c.h.b16 %v496
    %v1584 = vunpack.c.l.b16 %v497
    %v1585 = vunpack.c.h.b16 %v497
    %v1586 = vunpack.c.l.b16 %v498
    %v1587 = vunpack.c.h.b16 %v498
    %v1588 = vunpack.c.l.b16 %v499
    %v1589 = vunpack.c.h.b16 %v499
    %v1590 = vunpack.c.l.b16 %v500
    %v1591 = vunpack.c.h.b16 %v500
    %v1592 = vunpack.c.l.b16 %v501
    %v1593 = vunpack.c.h.b16 %v501
    %v1594 = vunpack.c.l.b16 %v502
    %v1595 = vunpack.c.h.b16 %v502
    %v1596 = vunpack.c.l.b16 %v503
    %v1597 = vunpack.c.h.b16 %v503
    %v1598 = vunpack.c.l.b16 %v504
    %v1599 = vunpack.c.h.b16 %v504
    %v1600 = vunpack.c.l.b16 %v505
    %v1601 = vunpack.c.h.b16 %v505
    %v1602 = vunpack.c.l.b16 %v506
    %v1603 = vunpack.c.h.b16 %v506
    %v1604 = vunpack.c.l.b16 %v507
    %v1605 = vunpack.c.h.b16 %v507
    %v1606 = vunpack.c.l.b16 %v508
    %v1607 = vunpack.c.h.b16 %v508
    %v1608 = vunpack.c.l.b16 %v509
    %v1609 = vunpack.c.h.b16 %v509
    %v1610 = vunpack.c.l.b16 %v510
    %v1611 = vunpack.c.h.b16 %v510
    %v1612 = vunpack.c.l.b16 %v511
    %v1613 = vunpack.c.h.b16 %v511
    %v1614 = vunpack.c.l.b16 %v512
    %v1615 = vunpack.c.h.b16 %v512
    %v1616 = vunpack.c.l.b16 %v513
    %v1617 = vunpack.c.h.b16 %v513
    %v1618 = vunpack.c.l.b16 %v514
    %v1619 = vunpack.c.h.b16 %v514
    %v1620 = vunpack.c.l.b16 %v515
    %v1621 = vunpack.c.h.b16 %v515
    %v1622 = vunpack.c.l.b16 %v516
    %v1623 = vunpack.c.h.b16 %v516
    %v1624 = vunpack.c.l.b16 %v517
    %v1625 = vunpack.c.h.b16 %v517
    %v1626 = vunpack.c.l.b16 %v518
    %v1627 = vunpack.c.h.b16 %v518
    %v1628 = vunpack.c.l.b16 %v519
    %v1629 = vunpack.c.h.b16 %v519
    %v1630 = vunpack.c.l.b16 %v520
    %v1631 = vunpack.c.h.b16 %v520
    %v1632 = vunpack.c.l.b16 %v521
    %v1633 = vunpack.c.h.b16 %v521
    %v1634 = vunpack.c.l.b16 %v522
    %v1635 = vunpack.c.h.b16 %v522
    %v1636 = vunpack.c.l.b16 %v523
    %v1637 = vunpack.c.h.b16 %v523
    %v1638 = vunpack.c.l.b16 %v524
    %v1639 = vunpack.c.h.b16 %v524
    %v1640 = vunpack.c.l.b16 %v525
    %v1641 = vunpack.c.h.b16 %v525
    %v1642 = vunpack.c.l.b16 %v526
    %v1643 = vunpack.c.h.b16 %v526
    %v1644 = vunpack.c.l.b16 %v527
    %v1645 = vunpack.c.h.b16 %v527
    %v1646 = vunpack.c.l.b16 %v528
    %v1647 = vunpack.c.h.b16 %v528
    %v1648 = vunpack.c.l.b16 %v529
    %v1649 = vunpack.c.h.b16 %v529
    %v1650 = vunpack.c.l.b16 %v530
    %v1651 = vunpack.c.h.b16 %v530
    %v1652 = vunpack.c.l.b16 %v531
    %v1653 = vunpack.c.h.b16 %v531
    %v1654 = vunpack.c.l.b16 %v532
    %v1655 = vunpack.c.h.b16 %v532
    %v1656 = vunpack.c.l.b16 %v533
    %v1657 = vunpack.c.h.b16 %v533
    %v1658 = vunpack.c.l.b16 %v534
    %v1659 = vunpack.c.h.b16 %v534
    %v1660 = vunpack.c.l.b16 %v535
    %v1661 = vunpack.c.h.b16 %v535
    %v1662 = vunpack.c.l.b16 %v536
    %v1663 = vunpack.c.h.b16 %v536
    %v1664 = vunpack.c.l.b16 %v537
    %v1665 = vunpack.c.h.b16 %v537
    %v1666 = vunpack.c.l.b16 %v538
    %v1667 = vunpack.c.h.b16 %v538
    %v1668 = vunpack.c.l.b16 %v539
    %v1669 = vunpack.c.h.b16 %v539
    %v1670 = vunpack.c.l.b16 %v540
    %v1671 = vunpack.c.h.b16 %v540
    %v1672 = vunpack.c.l.b16 %v541
    %v1673 = vunpack.c.h.b16 %v541
    %v1674 = vunpack.c.l.b16 %v542
    %v1675 = vunpack.c.h.b16 %v542
    %v1676 = vunpack.c.l.b16 %v543
    %v1677 = vunpack.c.h.b16 %v543
    %v1678 = vunpack.c.l.b16 %v544
    %v1679 = vunpack.c.h.b16 %v544
    %v1680 = vunpack.c.l.b16 %v545
    %v1681 = vunpack.c.h.b16 %v545
    %v1682 = vunpack.c.l.b16 %v546
    %v1683 = vunpack.c.h.b16 %v546
    %v1684 = vunpack.c.l.b16 %v547
    %v1685 = vunpack.c.h.b16 %v547
    %v1686 = vunpack.c.l.b16 %v548
    %v1687 = vunpack.c.h.b16 %v548
    %v1688 = vunpack.c.l.b16 %v549
    %v1689 = vunpack.c.h.b16 %v549
    %v1690 = vunpack.c.l.b16 %v550
    %v1691 = vunpack.c.h.b16 %v550
    %v1692 = vunpack.c.l.b16 %v551
    %v1693 = vunpack.c.h.b16 %v551
    %v1694 = vunpack.c.l.b16 %v552
    %v1695 = vunpack.c.h.b16 %v552
    %v1696 = vunpack.c.l.b16 %v553
    %v1697 = vunpack.c.h.b16 %v553
    %v1698 = vunpack.c.l.b16 %v554
    %v1699 = vunpack.c.h.b16 %v554
    %v1700 = vunpack.c.l.b16 %v555
    %v1701 = vunpack.c.h.b16 %v555
    %v1702 = vunpack.c.l.b16 %v556
    %v1703 = vunpack.c.h.b16 %v556
    %v1704 = vunpack.c.l.b16 %v557
    %v1705 = vunpack.c.h.b16 %v557
    %v1706 = vunpack.c.l.b16 %v558
    %v1707 = vunpack.c.h.b16 %v558
    %v1708 = vunpack.c.l.b16 %v559
    %v1709 = vunpack.c.h.b16 %v559
    %v1710 = vunpack.c.l.b16 %v560
    %v1711 = vunpack.c.h.b16 %v560
    %v1712 = vunpack.c.l.b16 %v561
    %v1713 = vunpack.c.h.b16 %v561
    %v1714 = vunpack.c.l.b16 %v562
    %v1715 = vunpack.c.h.b16 %v562
    %v1716 = vunpack.c.l.b16 %v563
    %v1717 = vunpack.c.h.b16 %v563
    %v1718 = vunpack.c.l.b16 %v564
    %v1719 = vunpack.c.h.b16 %v564
    %v1720 = vunpack.c.l.b16 %v565
    %v1721 = vunpack.c.h.b16 %v565
    %v1722 = vunpack.c.l.b16 %v566
    %v1723 = vunpack.c.h.b16 %v566
    %v1724 = vunpack.c.l.b16 %v567
    %v1725 = vunpack.c.h.b16 %v567
    %v1726 = vunpack.c.l.b16 %v568
    %v1727 = vunpack.c.h.b16 %v568
    %v1728 = vunpack.c.l.b16 %v569
    %v1729 = vunpack.c.h.b16 %v569
    %v1730 = vunpack.c.l.b16 %v570
    %v1731 = vunpack.c.h.b16 %v570
    %v1732 = vunpack.c.l.b16 %v571
    %v1733 = vunpack.c.h.b16 %v571
    %v1734 = vunpack.c.l.b16 %v572
    %v1735 = vunpack.c.h.b16 %v572
    %v1736 = vunpack.c.l.b16 %v573
    %v1737 = vunpack.c.h.b16 %v573
    %v1738 = vunpack.c.l.b16 %v574
    %v1739 = vunpack.c.h.b16 %v574
    %v1740 = vunpack.c.l.b16 %v575
    %v1741 = vunpack.c.h.b16 %v575
    %v1742 = vunpack.c.l.b16 %v576
    %v1743 = vunpack.c.h.b16 %v576
    %v1744 = vunpack.c.l.b16 %v577
    %v1745 = vunpack.c.h.b16 %v577
    %v1746 = vunpack.c.l.b16 %v578
    %v1747 = vunpack.c.h.b16 %v578
    %v1748 = vunpack.c.l.b16 %v579
    %v1749 = vunpack.c.h.b16 %v579
    %v1750 = vunpack.c.l.b16 %v580
    %v1751 = vunpack.c.h.b16 %v580
    %v1752 = vunpack.c.l.b16 %v581
    %v1753 = vunpack.c.h.b16 %v581
    %v1754 = vunpack.c.l.b16 %v582
    %v1755 = vunpack.c.h.b16 %v582
    %v1756 = vunpack.c.l.b16 %v583
    %v1757 = vunpack.c.h.b16 %v583
    %v1758 = vunpack.c.l.b16 %v584
    %v1759 = vunpack.c.h.b16 %v584
    %v1760 = vunpack.c.l.b16 %v585
    %v1761 = vunpack.c.h.b16 %v585
    %v1762 = vunpack.c.l.b16 %v586
    %v1763 = vunpack.c.h.b16 %v586
    %v1764 = vunpack.c.l.b16 %v587
    %v1765 = vunpack.c.h.b16 %v587
    %v1766 = vunpack.c.l.b16 %v588
    %v1767 = vunpack.c.h.b16 %v588
    %v1768 = vunpack.c.l.b16 %v589
    %v1769 = vunpack.c.h.b16 %v589
    %v1770 = vunpack.c.l.b16 %v590
    %v1771 = vunpack.c.h.b16 %v590
    %v1772 = vunpack.c.l.b16 %v591
    %v1773 = vunpack.c.h.b16 %v591
    %v1774 = vunpack.c.l.b16 %v592
    %v1775 = vunpack.c.h.b16 %v592
    %v1776 = vunpack.c.l.b16 %v593
    %v1777 = vunpack.c.h.b16 %v593
    %v1778 = vunpack.c.l.b16 %v594
    %v1779 = vunpack.c.h.b16 %v594
    %v1780 = vunpack.c.l.b16 %v595
    %v1781 = vunpack.c.h.b16 %v595
    %v1782 = vunpack.c.l.b16 %v596
    %v1783 = vunpack.c.h.b16 %v596
    %v1784 = vunpack.c.l.b16 %v597
    %v1785 = vunpack.c.h.b16 %v597
    %v1786 = vunpack.c.l.b16 %v598
    %v1787 = vunpack.c.h.b16 %v598
    %v1788 = vunpack.c.l.b16 %v599
    %v1789 = vunpack.c.h.b16 %v599
    %v1790 = vunpack.c.l.b16 %v600
    %v1791 = vunpack.c.h.b16 %v600
    %v1792 = vunpack.c.l.b16 %v601
    %v1793 = vunpack.c.h.b16 %v601
    %v1794 = vunpack.c.l.b16 %v602
    %v1795 = vunpack.c.h.b16 %v602
    %v1796 = vunpack.c.l.b16 %v603
    %v1797 = vunpack.c.h.b16 %v603
    %v1798 = vunpack.c.l.b16 %v604
    %v1799 = vunpack.c.h.b16 %v604
    %v1800 = vunpack.c.l.b16 %v605
    %v1801 = vunpack.c.h.b16 %v605
    %v1802 = vunpack.c.l.b16 %v606
    %v1803 = vunpack.c.h.b16 %v606
    %v1804 = vunpack.c.l.b16 %v607
    %v1805 = vunpack.c.h.b16 %v607
    %v1806 = vunpack.c.l.b16 %v608
    %v1807 = vunpack.c.h.b16 %v608
    %v1808 = vunpack.c.l.b16 %v609
    %v1809 = vunpack.c.h.b16 %v609
    %v1810 = vunpack.c.l.b16 %v610
    %v1811 = vunpack.c.h.b16 %v610
    %v1812 = vunpack.c.l.b16 %v611
    %v1813 = vunpack.c.h.b16 %v611
    %v1814 = vunpack.c.l.b16 %v612
    %v1815 = vunpack.c.h.b16 %v612
    %v1816 = vunpack.c.l.b16 %v613
    %v1817 = vunpack.c.h.b16 %v613
    %v1818 = vunpack.c.l.b16 %v614
    %v1819 = vunpack.c.h.b16 %v614
    %v1820 = vunpack.c.l.b16 %v615
    %v1821 = vunpack.c.h.b16 %v615
    %v1822 = vunpack.c.l.b16 %v616
    %v1823 = vunpack.c.h.b16 %v616
    %v1824 = vunpack.c.l.b16 %v617
    %v1825 = vunpack.c.h.b16 %v617
    %v1826 = vunpack.c.l.b16 %v618
    %v1827 = vunpack.c.h.b16 %v618
    %v1828 = vunpack.c.l.b16 %v619
    %v1829 = vunpack.c.h.b16 %v619
    %v1830 = vunpack.c.l.b16 %v620
    %v1831 = vunpack.c.h.b16 %v620
    %v1832 = vunpack.c.l.b16 %v621
    %v1833 = vunpack.c.h.b16 %v621
    %v1834 = vunpack.c.l.b16 %v622
    %v1835 = vunpack.c.h.b16 %v622
    %v1836 = vunpack.c.l.b16 %v623
    %v1837 = vunpack.c.h.b16 %v623
    %v1838 = vunpack.c.l.b16 %v624
    %v1839 = vunpack.c.h.b16 %v624
    %v1840 = vunpack.c.l.b16 %v625
    %v1841 = vunpack.c.h.b16 %v625
    %v1842 = vpack.c.b16 %v1086, %v1074
    %v1843 = vpack.c.b16 %v1087, %v1075
    %v1844 = vpack.c.b16 %v1088, %v1076
    %v1845 = vpack.c.b16 %v1089, %v1077
    %v1846 = vpack.c.b16 %v1090, %v1078
    %v1847 = vpack.c.b16 %v1091, %v1079
    %v1848 = vpack.c.b16 %v1092, %v1080
    %v1849 = vpack.c.b16 %v1093, %v1081
    %v1850 = vpack.c.b16 %v1094, %v1082
    %v1851 = vpack.c.b16 %v1095, %v1083
    %v1852 = vpack.c.b16 %v1096, %v1084
    %v1853 = vpack.c.b16 %v1097, %v1085
    %v1854 = vpack.c.b16 %v1110, %v1098
    %v1855 = vpack.c.b16 %v1111, %v1099
    %v1856 = vpack.c.b16 %v1112, %v1100
    %v1857 = vpack.c.b16 %v1113, %v1101
    %v1858 = vpack.c.b16 %v1114, %v1102
    %v1859 = vpack.c.b16 %v1115, %v1103
    %v1860 = vpack.c.b16 %v1116, %v1104
    %v1861 = vpack.c.b16 %v1117, %v1105
    %v1862 = vpack.c.b16 %v1118, %v1106
    %v1863 = vpack.c.b16 %v1119, %v1107
    %v1864 = vpack.c.b16 %v1120, %v1108
    %v1865 = vpack.c.b16 %v1121, %v1109
    %v1866 = vpack.c.b16 %v1134, %v1122
    %v1867 = vpack.c.b16 %v1135, %v1123
    %v1868 = vpack.c.b16 %v1136, %v1124
    %v1869 = vpack.c.b16 %v1137, %v1125
    %v1870 = vpack.c.b16 %v1138, %v1126
    %v1871 = vpack.c.b16 %v1139, %v1127
    %v1872 = vpack.c.b16 %v1140, %v1128
    %v1873 = vpack.c.b16 %v1141, %v1129
    %v1874 = vpack.c.b16 %v1142, %v1130
    %v1875 = vpack.c.b16 %v1143, %v1131
    %v1876 = vpack.c.b16 %v1144, %v1132
    %v1877 = vpack.c.b16 %v1145, %v1133
    %v1878 = vpack.c.b16 %v1158, %v1146
    %v1879 = vpack.c.b16 %v1159, %v1147
    %v1880 = vpack.c.b16 %v1160, %v1148
    %v1881 = vpack.c.b16 %v1161, %v1149
    %v1882 = vpack.c.b16 %v1162, %v1150
    %v1883 = vpack.c.b16 %v1163, %v1151
    %v1884 = vpack.c.b16 %v1164, %v1152
    %v1885 = vpack.c.b16 %v1165, %v1153
    %v1886 = vpack.c.b16 %v1166, %v1154
    %v1887 = vpack.c.b16 %v1167, %v1155
    %v1888 = vpack.c.b16 %v1168, %v1156
    %v1889 = vpack.c.b16 %v1169, %v1157
    %v1890 = vpack.c.b16 %v1182, %v1170
    %v1891 = vpack.c.b16 %v1183, %v1171
    %v1892 = vpack.c.b16 %v1184, %v1172
    %v1893 = vpack.c.b16 %v1185, %v1173
    %v1894 = vpack.c.b16 %v1186, %v1174
    %v1895 = vpack.c.b16 %v1187, %v1175
    %v1896 = vpack.c.b16 %v1188, %v1176
    %v1897 = vpack.c.b16 %v1189, %v1177
    %v1898 = vpack.c.b16 %v1190, %v1178
    %v1899 = vpack.c.b16 %v1191, %v1179
    %v1900 = vpack.c.b16 %v1192, %v1180
    %v1901 = vpack.c.b16 %v1193, %v1181
    %v1902 = vpack.c.b16 %v1206, %v1194
    %v1903 = vpack.c.b16 %v1207, %v1195
    %v1904 = vpack.c.b16 %v1208, %v1196
    %v1905 = vpack.c.b16 %v1209, %v1197
    %v1906 = vpack.c.b16 %v1210, %v1198
    %v1907 = vpack.c.b16 %v1211, %v1199
    %v1908 = vpack.c.b16 %v1212, %v1200
    %v1909 = vpack.c.b16 %v1213, %v1201
    %v1910 = vpack.c.b16 %v1214, %v1202
    %v1911 = vpack.c.b16 %v1215, %v1203
    %v1912 = vpack.c.b16 %v1216, %v1204
    %v1913 = vpack.c.b16 %v1217, %v1205
    %v1914 = vpack.c.b16 %v1230, %v1218
    %v1915 = vpack.c.b16 %v1231, %v1219
    %v1916 = vpack.c.b16 %v1232, %v1220
    %v1917 = vpack.c.b16 %v1233, %v1221
    %v1918 = vpack.c.b16 %v1234, %v1222
    %v1919 = vpack.c.b16 %v1235, %v1223
    %v1920 = vpack.c.b16 %v1236, %v1224
    %v1921 = vpack.c.b16 %v1237, %v1225
    %v1922 = vpack.c.b16 %v1238, %v1226
    %v1923 = vpack.c.b16 %v1239, %v1227
    %v1924 = vpack.c.b16 %v1240, %v1228
    %v1925 = vpack.c.b16 %v1241, %v1229
    %v1926 = vpack.c.b16 %v1254, %v1242
    %v1927 = vpack.c.b16 %v1255, %v1243
    %v1928 = vpack.c.b16 %v1256, %v1244
    %v1929 = vpack.c.b16 %v1257, %v1245
    %v1930 = vpack.c.b16 %v1258, %v1246
    %v1931 = vpack.c.b16 %v1259, %v1247
    %v1932 = vpack.c.b16 %v1260, %v1248
    %v1933 = vpack.c.b16 %v1261, %v1249
    %v1934 = vpack.c.b16 %v1262, %v1250
    %v1935 = vpack.c.b16 %v1263, %v1251
    %v1936 = vpack.c.b16 %v1264, %v1252
    %v1937 = vpack.c.b16 %v1265, %v1253
    %v1938 = vpack.c.b16 %v1278, %v1266
    %v1939 = vpack.c.b16 %v1279, %v1267
    %v1940 = vpack.c.b16 %v1280, %v1268
    %v1941 = vpack.c.b16 %v1281, %v1269
    %v1942 = vpack.c.b16 %v1282, %v1270
    %v1943 = vpack.c.b16 %v1283, %v1271
    %v1944 = vpack.c.b16 %v1284, %v1272
    %v1945 = vpack.c.b16 %v1285, %v1273
    %v1946 = vpack.c.b16 %v1286, %v1274
    %v1947 = vpack.c.b16 %v1287, %v1275
    %v1948 = vpack.c.b16 %v1288, %v1276
    %v1949 = vpack.c.b16 %v1289, %v1277
    %v1950 = vpack.c.b16 %v1302, %v1290
    %v1951 = vpack.c.b16 %v1303, %v1291
    %v1952 = vpack.c.b16 %v1304, %v1292
    %v1953 = vpack.c.b16 %v1305, %v1293
    %v1954 = vpack.c.b16 %v1306, %v1294
    %v1955 = vpack.c.b16 %v1307, %v1295
    %v1956 = vpack.c.b16 %v1308, %v1296
    %v1957 = vpack.c.b16 %v1309, %v1297
    %v1958 = vpack.c.b16 %v1310, %v1298
    %v1959 = vpack.c.b16 %v1311, %v1299
    %v1960 = vpack.c.b16 %v1312, %v1300
    %v1961 = vpack.c.b16 %v1313, %v1301
    %v1962 = vpack.c.b16 %v1326, %v1314
    %v1963 = vpack.c.b16 %v1327, %v1315
    %v1964 = vpack.c.b16 %v1328, %v1316
    %v1965 = vpack.c.b16 %v1329, %v1317
    %v1966 = vpack.c.b16 %v1330, %v1318
    %v1967 = vpack.c.b16 %v1331, %v1319
    %v1968 = vpack.c.b16 %v1332, %v1320
    %v1969 = vpack.c.b16 %v1333, %v1321
    %v1970 = vpack.c.b16 %v1334, %v1322
    %v1971 = vpack.c.b16 %v1335, %v1323
    %v1972 = vpack.c.b16 %v1336, %v1324
    %v1973 = vpack.c.b16 %v1337, %v1325
    %v1974 = vpack.c.b16 %v1350, %v1338
    %v1975 = vpack.c.b16 %v1351, %v1339
    %v1976 = vpack.c.b16 %v1352, %v1340
    %v1977 = vpack.c.b16 %v1353, %v1341
    %v1978 = vpack.c.b16 %v1354, %v1342
    %v1979 = vpack.c.b16 %v1355, %v1343
    %v1980 = vpack.c.b16 %v1356, %v1344
    %v1981 = vpack.c.b16 %v1357, %v1345
    %v1982 = vpack.c.b16 %v1358, %v1346
    %v1983 = vpack.c.b16 %v1359, %v1347
    %v1984 = vpack.c.b16 %v1360, %v1348
    %v1985 = vpack.c.b16 %v1361, %v1349
    %v1986 = vpack.c.b16 %v1374, %v1362
    %v1987 = vpack.c.b16 %v1375, %v1363
    %v1988 = vpack.c.b16 %v1376, %v1364
    %v1989 = vpack.c.b16 %v1377, %v1365
    %v1990 = vpack.c.b16 %v1378, %v1366
    %v1991 = vpack.c.b16 %v1379, %v1367
    %v1992 = vpack.c.b16 %v1380, %v1368
    %v1993 = vpack.c.b16 %v1381, %v1369
    %v1994 = vpack.c.b16 %v1382, %v1370
    %v1995 = vpack.c.b16 %v1383, %v1371
    %v1996 = vpack.c.b16 %v1384, %v1372
    %v1997 = vpack.c.b16 %v1385, %v1373
    %v1998 = vpack.c.b16 %v1398, %v1386
    %v1999 = vpack.c.b16 %v1399, %v1387
    %v2000 = vpack.c.b16 %v1400, %v1388
    %v2001 = vpack.c.b16 %v1401, %v1389
    %v2002 = vpack.c.b16 %v1402, %v1390
    %v2003 = vpack.c.b16 %v1403, %v1391
    %v2004 = vpack.c.b16 %v1404, %v1392
    %v2005 = vpack.c.b16 %v1405, %v1393
    %v2006 = vpack.c.b16 %v1406, %v1394
    %v2007 = vpack.c.b16 %v1407, %v1395
    %v2008 = vpack.c.b16 %v1408, %v1396
    %v2009 = vpack.c.b16 %v1409, %v1397
    %v2010 = vpack.c.b16 %v1422, %v1410
    %v2011 = vpack.c.b16 %v1423, %v1411
    %v2012 = vpack.c.b16 %v1424, %v1412
    %v2013 = vpack.c.b16 %v1425, %v1413
    %v2014 = vpack.c.b16 %v1426, %v1414
    %v2015 = vpack.c.b16 %v1427, %v1415
    %v2016 = vpack.c.b16 %v1428, %v1416
    %v2017 = vpack.c.b16 %v1429, %v1417
    %v2018 = vpack.c.b16 %v1430, %v1418
    %v2019 = vpack.c.b16 %v1431, %v1419
    %v2020 = vpack.c.b16 %v1432, %v1420
    %v2021 = vpack.c.b16 %v1433, %v1421
    %v2022 = vpack.c.b16 %v1446, %v1434
    %v2023 = vpack.c.b16 %v1447, %v1435
    %v2024 = vpack.c.b16 %v1448, %v1436
    %v2025 = vpack.c.b16 %v1449, %v1437
    %v2026 = vpack.c.b16 %v1450, %v1438
    %v2027 = vpack.c.b16 %v1451, %v1439
    %v2028 = vpack.c.b16 %v1452, %v1440
    %v2029 = vpack.c.b16 %v1453, %v1441
    %v2030 = vpack.c.b16 %v1454, %v1442
    %v2031 = vpack.c.b16 %v1455, %v1443
    %v2032 = vpack.c.b16 %v1456, %v1444
    %v2033 = vpack.c.b16 %v1457, %v1445
    %v2034 = vpack.c.b16 %v1470, %v1458
    %v2035 = vpack.c.b16 %v1471, %v1459
    %v2036 = vpack.c.b16 %v1472, %v1460
    %v2037 = vpack.c.b16 %v1473, %v1461
    %v2038 = vpack.c.b16 %v1474, %v1462
    %v2039 = vpack.c.b16 %v1475, %v1463
    %v2040 = vpack.c.b16 %v1476, %v1464
    %v2041 = vpack.c.b16 %v1477, %v1465
    %v2042 = vpack.c.b16 %v1478, %v1466
    %v2043 = vpack.c.b16 %v1479, %v1467
    %v2044 = vpack.c.b16 %v1480, %v1468
    %v2045 = vpack.c.b16 %v1481, %v1469
    %v2046 = vpack.c.b16 %v1494, %v1482
    %v2047 = vpack.c.b16 %v1495, %v1483
    %v2048 = vpack.c.b16 %v1496, %v1484
    %v2049 = vpack.c.b16 %v1497, %v1485
    %v2050 = vpack.c.b16 %v1498, %v1486
    %v2051 = vpack.c.b16 %v1499, %v1487
    %v2052 = vpack.c.b16 %v1500, %v1488
    %v2053 = vpack.c.b16 %v1501, %v1489
    %v2054 = vpack.c.b16 %v1502, %v1490
    %v2055 = vpack.c.b16 %v1503, %v1491
    %v2056 = vpack.c.b16 %v1504, %v1492
    %v2057 = vpack.c.b16 %v1505, %v1493
    %v2058 = vpack.c.b16 %v1518, %v1506
    %v2059 = vpack.c.b16 %v1519, %v1507
    %v2060 = vpack.c.b16 %v1520, %v1508
    %v2061 = vpack.c.b16 %v1521, %v1509
    %v2062 = vpack.c.b16 %v1522, %v1510
    %v2063 = vpack.c.b16 %v1523, %v1511
    %v2064 = vpack.c.b16 %v1524, %v1512
    %v2065 = vpack.c.b16 %v1525, %v1513
    %v2066 = vpack.c.b16 %v1526, %v1514
    %v2067 = vpack.c.b16 %v1527, %v1515
    %v2068 = vpack.c.b16 %v1528, %v1516
    %v2069 = vpack.c.b16 %v1529, %v1517
    %v2070 = vpack.c.b16 %v1542, %v1530
    %v2071 = vpack.c.b16 %v1543, %v1531
    %v2072 = vpack.c.b16 %v1544, %v1532
    %v2073 = vpack.c.b16 %v1545, %v1533
    %v2074 = vpack.c.b16 %v1546, %v1534
    %v2075 = vpack.c.b16 %v1547, %v1535
    %v2076 = vpack.c.b16 %v1548, %v1536
    %v2077 = vpack.c.b16 %v1549, %v1537
    %v2078 = vpack.c.b16 %v1550, %v1538
    %v2079 = vpack.c.b16 %v1551, %v1539
    %v2080 = vpack.c.b16 %v1552, %v1540
    %v2081 = vpack.c.b16 %v1553, %v1541
    %v2082 = vpack.c.b16 %v1566, %v1554
    %v2083 = vpack.c.b16 %v1567, %v1555
    %v2084 = vpack.c.b16 %v1568, %v1556
    %v2085 = vpack.c.b16 %v1569, %v1557
    %v2086 = vpack.c.b16 %v1570, %v1558
    %v2087 = vpack.c.b16 %v1571, %v1559
    %v2088 = vpack.c.b16 %v1572, %v1560
    %v2089 = vpack.c.b16 %v1573, %v1561
    %v2090 = vpack.c.b16 %v1574, %v1562
    %v2091 = vpack.c.b16 %v1575, %v1563
    %v2092 = vpack.c.b16 %v1576, %v1564
    %v2093 = vpack.c.b16 %v1577, %v1565
    %v2094 = vpack.c.b16 %v1590, %v1578
    %v2095 = vpack.c.b16 %v1591, %v1579
    %v2096 = vpack.c.b16 %v1592, %v1580
    %v2097 = vpack.c.b16 %v1593, %v1581
    %v2098 = vpack.c.b16 %v1594, %v1582
    %v2099 = vpack.c.b16 %v1595, %v1583
    %v2100 = vpack.c.b16 %v1596, %v1584
    %v2101 = vpack.c.b16 %v1597, %v1585
    %v2102 = vpack.c.b16 %v1598, %v1586
    %v2103 = vpack.c.b16 %v1599, %v1587
    %v2104 = vpack.c.b16 %v1600, %v1588
    %v2105 = vpack.c.b16 %v1601, %v1589
    %v2106 = vpack.c.b16 %v1614, %v1602
    %v2107 = vpack.c.b16 %v1615, %v1603
    %v2108 = vpack.c.b16 %v1616, %v1604
    %v2109 = vpack.c.b16 %v1617, %v1605
    %v2110 = vpack.c.b16 %v1618, %v1606
    %v2111 = vpack.c.b16 %v1619, %v1607
    %v2112 = vpack.c.b16 %v1620, %v1608
    %v2113 = vpack.c.b16 %v1621, %v1609
    %v2114 = vpack.c.b16 %v1622, %v1610
    %v2115 = vpack.c.b16 %v1623, %v1611
    %v2116 = vpack.c.b16 %v1624, %v1612
    %v2117 = vpack.c.b16 %v1625, %v1613
    %v2118 = vpack.c.b16 %v1638, %v1626
    %v2119 = vpack.c.b16 %v1639, %v1627
    %v2120 = vpack.c.b16 %v1640, %v1628
    %v2121 = vpack.c.b16 %v1641, %v1629
    %v2122 = vpack.c.b16 %v1642, %v1630
    %v2123 = vpack.c.b16 %v1643, %v1631
    %v2124 = vpack.c.b16 %v1644, %v1632
    %v2125 = vpack.c.b16 %v1645, %v1633
    %v2126 = vpack.c.b16 %v1646, %v1634
    %v2127 = vpack.c.b16 %v1647, %v1635
    %v2128 = vpack.c.b16 %v1648, %v1636
    %v2129 = vpack.c.b16 %v1649, %v1637
    %v2130 = vpack.c.b16 %v1662, %v1650
    %v2131 = vpack.c.b16 %v1663, %v1651
    %v2132 = vpack.c.b16 %v1664, %v1652
    %v2133 = vpack.c.b16 %v1665, %v1653
    %v2134 = vpack.c.b16 %v1666, %v1654
    %v2135 = vpack.c.b16 %v1667, %v1655
    %v2136 = vpack.c.b16 %v1668, %v1656
    %v2137 = vpack.c.b16 %v1669, %v1657
    %v2138 = vpack.c.b16 %v1670, %v1658
    %v2139 = vpack.c.b16 %v1671, %v1659
    %v2140 = vpack.c.b16 %v1672, %v1660
    %v2141 = vpack.c.b16 %v1673, %v1661
    %v2142 = vpack.c.b16 %v1686, %v1674
    %v2143 = vpack.c.b16 %v1687, %v1675
    %v2144 = vpack.c.b16 %v1688, %v1676
    %v2145 = vpack.c.b16 %v1689, %v1677
    %v2146 = vpack.c.b16 %v1690, %v1678
    %v2147 = vpack.c.b16 %v1691, %v1679
    %v2148 = vpack.c.b16 %v1692, %v1680
    %v2149 = vpack.c.b16 %v1693, %v1681
    %v2150 = vpack.c.b16 %v1694, %v1682
    %v2151 = vpack.c.b16 %v1695, %v1683
    %v2152 = vpack.c.b16 %v1696, %v1684
    %v2153 = vpack.c.b16 %v1697, %v1685
    %v2154 = vpack.c.b16 %v1710, %v1698
    %v2155 = vpack.c.b16 %v1711, %v1699
    %v2156 = vpack.c.b16 %v1712, %v1700
    %v2157 = vpack.c.b16 %v1713, %v1701
    %v2158 = vpack.c.b16 %v1714, %v1702
    %v2159 = vpack.c.b16 %v1715, %v1703
    %v2160 = vpack.c.b16 %v1716, %v1704
    %v2161 = vpack.c.b16 %v1717, %v1705
    %v2162 = vpack.c.b16 %v1718, %v1706
    %v2163 = vpack.c.b16 %v1719, %v1707
    %v2164 = vpack.c.b16 %v1720, %v1708
    %v2165 = vpack.c.b16 %v1721, %v1709
    %v2166 = vpack.c.b16 %v1734, %v1722
    %v2167 = vpack.c.b16 %v1735, %v1723
    %v2168 = vpack.c.b16 %v1736, %v1724
    %v2169 = vpack.c.b16 %v1737, %v1725
    %v2170 = vpack.c.b16 %v1738, %v1726
    %v2171 = vpack.c.b16 %v1739, %v1727
    %v2172 = vpack.c.b16 %v1740, %v1728
    %v2173 = vpack.c.b16 %v1741, %v1729
    %v2174 = vpack.c.b16 %v1742, %v1730
    %v2175 = vpack.c.b16 %v1743, %v1731
    %v2176 = vpack.c.b16 %v1744, %v1732
    %v2177 = vpack.c.b16 %v1745, %v1733
    %v2178 = vpack.c.b16 %v1758, %v1746
    %v2179 = vpack.c.b16 %v1759, %v1747
    %v2180 = vpack.c.b16 %v1760, %v1748
    %v2181 = vpack.c.b16 %v1761, %v1749
    %v2182 = vpack.c.b16 %v1762, %v1750
    %v2183 = vpack.c.b16 %v1763, %v1751
    %v2184 = vpack.c.b16 %v1764, %v1752
    %v2185 = vpack.c.b16 %v1765, %v1753
    %v2186 = vpack.c.b16 %v1766, %v1754
    %v2187 = vpack.c.b16 %v1767, %v1755
    %v2188 = vpack.c.b16 %v1768, %v1756
    %v2189 = vpack.c.b16 %v1769, %v1757
    %v2190 = vpack.c.b16 %v1782, %v1770
    %v2191 = vpack.c.b16 %v1783, %v1771
    %v2192 = vpack.c.b16 %v1784, %v1772
    %v2193 = vpack.c.b16 %v1785, %v1773
    %v2194 = vpack.c.b16 %v1786, %v1774
    %v2195 = vpack.c.b16 %v1787, %v1775
    %v2196 = vpack.c.b16 %v1788, %v1776
    %v2197 = vpack.c.b16 %v1789, %v1777
    %v2198 = vpack.c.b16 %v1790, %v1778
    %v2199 = vpack.c.b16 %v1791, %v1779
    %v2200 = vpack.c.b16 %v1792, %v1780
    %v2201 = vpack.c.b16 %v1793, %v1781
    %v2202 = vpack.c.b16 %v1806, %v1794
    %v2203 = vpack.c.b16 %v1807, %v1795
    %v2204 = vpack.c.b16 %v1808, %v1796
    %v2205 = vpack.c.b16 %v1809, %v1797
    %v2206 = vpack.c.b16 %v1810, %v1798
    %v2207 = vpack.c.b16 %v1811, %v1799
    %v2208 = vpack.c.b16 %v1812, %v1800
    %v2209 = vpack.c.b16 %v1813, %v1801
    %v2210 = vpack.c.b16 %v1814, %v1802
    %v2211 = vpack.c.b16 %v1815, %v1803
    %v2212 = vpack.c.b16 %v1816, %v1804
    %v2213 = vpack.c.b16 %v1817, %v1805
    %v2214 = vpack.c.b16 %v1830, %v1818
    %v2215 = vpack.c.b16 %v1831, %v1819
    %v2216 = vpack.c.b16 %v1832, %v1820
    %v2217 = vpack.c.b16 %v1833, %v1821
    %v2218 = vpack.c.b16 %v1834, %v1822
    %v2219 = vpack.c.b16 %v1835, %v1823
    %v2220 = vpack.c.b16 %v1836, %v1824
    %v2221 = vpack.c.b16 %v1837, %v1825
    %v2222 = vpack.c.b16 %v1838, %v1826
    %v2223 = vpack.c.b16 %v1839, %v1827
    %v2224 = vpack.c.b16 %v1840, %v1828
    %v2225 = vpack.c.b16 %v1841, %v1829
    %2610 = vmatprep.subr.bf16.mxu0 %v1927
    %2611 = vmatpush1.bf16.msra.mxu0 %v1926
    %2612 = vmatprep.subr.bf16.mxu0 %v1915
    %2613 = vmatpush1.bf16.msra.mxu0 %v1914
    %2614 = vmatprep.subr.bf16.mxu0 %v1903
    %2615 = vmatpush1.bf16.msra.mxu0 %v1902
    %2616 = vmatprep.subr.bf16.mxu0 %v1891
    %2617 = vmatpush1.bf16.msra.mxu0 %v1890
    %2618 = vmatprep.subr.bf16.mxu0 %v1879
    %2619 = vmatpush1.bf16.msra.mxu0 %v1878
    %2620 = vmatprep.subr.bf16.mxu0 %v1867
    %2621 = vmatpush1.bf16.msra.mxu0 %v1866
    %2622 = vmatprep.subr.bf16.mxu0 %v1855
    %2623 = vmatpush1.bf16.msra.mxu0 %v1854
    %2624 = vmatprep.subr.bf16.mxu0 %v1843
    %2625 = vmatpush1.bf16.msra.mxu0 %v1842
    %2626 = vmatprep.subr.bf16.mxu0 %v2023
    %2627 = vmatpush2.bf16.msra.mxu0 %v2022
    %2628 = vmatprep.subr.bf16.mxu0 %v2011
    %2629 = vmatpush2.bf16.msra.mxu0 %v2010
    %2630 = vmatprep.subr.bf16.mxu0 %v1999
    %2631 = vmatpush2.bf16.msra.mxu0 %v1998
    %2632 = vmatprep.subr.bf16.mxu0 %v1987
    %2633 = vmatpush2.bf16.msra.mxu0 %v1986
    %2634 = vmatprep.subr.bf16.mxu0 %v1975
    %2635 = vmatpush2.bf16.msra.mxu0 %v1974
    %2636 = vmatprep.subr.bf16.mxu0 %v1963
    %2637 = vmatpush2.bf16.msra.mxu0 %v1962
    %2638 = vmatprep.subr.bf16.mxu0 %v1951
    %2639 = vmatpush2.bf16.msra.mxu0 %v1950
    %2640 = vmatprep.subr.bf16.mxu0 %v1939
    %2641 = vmatpush2.bf16.msra.mxu0 %v1938
    %2642 = vmatprep.mubr.bf16.mxu0 %v239
    %2643 = vmatmul.mubr.bf16.gmra.mxu0 %v238
    %v2644 = vpop.f32.mrf.mxu0
    %v2645 = vadd.f32 %v633, %v2644
    %v2646 = vpop.f32.mrf.mxu0
    %v2647 = vadd.f32 %v637, %v2646
    %v2648 = vpop.f32.mrf.mxu0
    %v2649 = vadd.f32 %v633, %v2648
    %v2650 = vpop.f32.mrf.mxu0
    %v2651 = vadd.f32 %v637, %v2650
    %2652 = vdwg.mxu0
    %2653 = vmatprep.subr.bf16.mxu0 %v2119
    %2654 = vmatpush1.bf16.msra.mxu0 %v2118
    %2655 = vmatprep.subr.bf16.mxu0 %v2107
    %2656 = vmatpush1.bf16.msra.mxu0 %v2106
    %2657 = vmatprep.subr.bf16.mxu0 %v2095
    %2658 = vmatpush1.bf16.msra.mxu0 %v2094
    %2659 = vmatprep.subr.bf16.mxu0 %v2083
    %2660 = vmatpush1.bf16.msra.mxu0 %v2082
    %2661 = vmatprep.subr.bf16.mxu0 %v2071
    %2662 = vmatpush1.bf16.msra.mxu0 %v2070
    %2663 = vmatprep.subr.bf16.mxu0 %v2059
    %2664 = vmatpush1.bf16.msra.mxu0 %v2058
    %2665 = vmatprep.subr.bf16.mxu0 %v2047
    %2666 = vmatpush1.bf16.msra.mxu0 %v2046
    %2667 = vmatprep.subr.bf16.mxu0 %v2035
    %2668 = vmatpush1.bf16.msra.mxu0 %v2034
    %2669 = vmatprep.subr.bf16.mxu0 %v2215
    %2670 = vmatpush2.bf16.msra.mxu0 %v2214
    %2671 = vmatprep.subr.bf16.mxu0 %v2203
    %2672 = vmatpush2.bf16.msra.mxu0 %v2202
    %2673 = vmatprep.subr.bf16.mxu0 %v2191
    %2674 = vmatpush2.bf16.msra.mxu0 %v2190
    %2675 = vmatprep.subr.bf16.mxu0 %v2179
    %2676 = vmatpush2.bf16.msra.mxu0 %v2178
    %2677 = vmatprep.subr.bf16.mxu0 %v2167
    %2678 = vmatpush2.bf16.msra.mxu0 %v2166
    %2679 = vmatprep.subr.bf16.mxu0 %v2155
    %2680 = vmatpush2.bf16.msra.mxu0 %v2154
    %2681 = vmatprep.subr.bf16.mxu0 %v2143
    %2682 = vmatpush2.bf16.msra.mxu0 %v2142
    %2683 = vmatprep.subr.bf16.mxu0 %v2131
    %2684 = vmatpush2.bf16.msra.mxu0 %v2130
    %2685 = vmatprep.mubr.bf16.mxu0 %v241
    %2686 = vmatmul.mubr.bf16.gmra.mxu0 %v240
    %v2687 = vpop.f32.mrf.mxu0
    %v2688 = vadd.f32 %v2645, %v2687
    %v2689 = vpop.f32.mrf.mxu0
    %v2690 = vadd.f32 %v2647, %v2689
    %v2691 = vpop.f32.mrf.mxu0
    %v2692 = vadd.f32 %v2649, %v2691
    %v2693 = vpop.f32.mrf.mxu0
    %v2694 = vadd.f32 %v2651, %v2693
    %2695 = vdwg.mxu0
    %2696 = vmatprep.subr.bf16.mxu0 %v1929
    %2697 = vmatpush1.bf16.msra.mxu0 %v1928
    %2698 = vmatprep.subr.bf16.mxu0 %v1917
    %2699 = vmatpush1.bf16.msra.mxu0 %v1916
    %2700 = vmatprep.subr.bf16.mxu0 %v1905
    %2701 = vmatpush1.bf16.msra.mxu0 %v1904
    %2702 = vmatprep.subr.bf16.mxu0 %v1893
    %2703 = vmatpush1.bf16.msra.mxu0 %v1892
    %2704 = vmatprep.subr.bf16.mxu0 %v1881
    %2705 = vmatpush1.bf16.msra.mxu0 %v1880
    %2706 = vmatprep.subr.bf16.mxu0 %v1869
    %2707 = vmatpush1.bf16.msra.mxu0 %v1868
    %2708 = vmatprep.subr.bf16.mxu0 %v1857
    %2709 = vmatpush1.bf16.msra.mxu0 %v1856
    %2710 = vmatprep.subr.bf16.mxu0 %v1845
    %2711 = vmatpush1.bf16.msra.mxu0 %v1844
    %2712 = vmatprep.subr.bf16.mxu0 %v2025
    %2713 = vmatpush2.bf16.msra.mxu0 %v2024
    %2714 = vmatprep.subr.bf16.mxu0 %v2013
    %2715 = vmatpush2.bf16.msra.mxu0 %v2012
    %2716 = vmatprep.subr.bf16.mxu0 %v2001
    %2717 = vmatpush2.bf16.msra.mxu0 %v2000
    %2718 = vmatprep.subr.bf16.mxu0 %v1989
    %2719 = vmatpush2.bf16.msra.mxu0 %v1988
    %2720 = vmatprep.subr.bf16.mxu0 %v1977
    %2721 = vmatpush2.bf16.msra.mxu0 %v1976
    %2722 = vmatprep.subr.bf16.mxu0 %v1965
    %2723 = vmatpush2.bf16.msra.mxu0 %v1964
    %2724 = vmatprep.subr.bf16.mxu0 %v1953
    %2725 = vmatpush2.bf16.msra.mxu0 %v1952
    %2726 = vmatprep.subr.bf16.mxu0 %v1941
    %2727 = vmatpush2.bf16.msra.mxu0 %v1940
    %2728 = vmatprep.mubr.bf16.mxu0 %v239
    %2729 = vmatmul.mubr.bf16.gmra.mxu0 %v238
    %v2730 = vpop.f32.mrf.mxu0
    %v2731 = vadd.f32 %v641, %v2730
    %v2732 = vpop.f32.mrf.mxu0
    %v2733 = vadd.f32 %v645, %v2732
    %v2734 = vpop.f32.mrf.mxu0
    %v2735 = vadd.f32 %v641, %v2734
    %v2736 = vpop.f32.mrf.mxu0
    %v2737 = vadd.f32 %v645, %v2736
    %2738 = vdwg.mxu0
    %2739 = vmatprep.subr.bf16.mxu0 %v2121
    %2740 = vmatpush1.bf16.msra.mxu0 %v2120
    %2741 = vmatprep.subr.bf16.mxu0 %v2109
    %2742 = vmatpush1.bf16.msra.mxu0 %v2108
    %2743 = vmatprep.subr.bf16.mxu0 %v2097
    %2744 = vmatpush1.bf16.msra.mxu0 %v2096
    %2745 = vmatprep.subr.bf16.mxu0 %v2085
    %2746 = vmatpush1.bf16.msra.mxu0 %v2084
    %2747 = vmatprep.subr.bf16.mxu0 %v2073
    %2748 = vmatpush1.bf16.msra.mxu0 %v2072
    %2749 = vmatprep.subr.bf16.mxu0 %v2061
    %2750 = vmatpush1.bf16.msra.mxu0 %v2060
    %2751 = vmatprep.subr.bf16.mxu0 %v2049
    %2752 = vmatpush1.bf16.msra.mxu0 %v2048
    %2753 = vmatprep.subr.bf16.mxu0 %v2037
    %2754 = vmatpush1.bf16.msra.mxu0 %v2036
    %2755 = vmatprep.subr.bf16.mxu0 %v2217
    %2756 = vmatpush2.bf16.msra.mxu0 %v2216
    %2757 = vmatprep.subr.bf16.mxu0 %v2205
    %2758 = vmatpush2.bf16.msra.mxu0 %v2204
    %2759 = vmatprep.subr.bf16.mxu0 %v2193
    %2760 = vmatpush2.bf16.msra.mxu0 %v2192
    %2761 = vmatprep.subr.bf16.mxu0 %v2181
    %2762 = vmatpush2.bf16.msra.mxu0 %v2180
    %2763 = vmatprep.subr.bf16.mxu0 %v2169
    %2764 = vmatpush2.bf16.msra.mxu0 %v2168
    %2765 = vmatprep.subr.bf16.mxu0 %v2157
    %2766 = vmatpush2.bf16.msra.mxu0 %v2156
    %2767 = vmatprep.subr.bf16.mxu0 %v2145
    %2768 = vmatpush2.bf16.msra.mxu0 %v2144
    %2769 = vmatprep.subr.bf16.mxu0 %v2133
    %2770 = vmatpush2.bf16.msra.mxu0 %v2132
    %2771 = vmatprep.mubr.bf16.mxu0 %v241
    %2772 = vmatmul.mubr.bf16.gmra.mxu0 %v240
    %v2773 = vpop.f32.mrf.mxu0
    %v2774 = vadd.f32 %v2731, %v2773
    %v2775 = vpop.f32.mrf.mxu0
    %v2776 = vadd.f32 %v2733, %v2775
    %v2777 = vpop.f32.mrf.mxu0
    %v2778 = vadd.f32 %v2735, %v2777
    %v2779 = vpop.f32.mrf.mxu0
    %v2780 = vadd.f32 %v2737, %v2779
    %2781 = vdwg.mxu0
    %2782 = vmatprep.subr.bf16.mxu0 %v1931
    %2783 = vmatpush1.bf16.msra.mxu0 %v1930
    %2784 = vmatprep.subr.bf16.mxu0 %v1919
    %2785 = vmatpush1.bf16.msra.mxu0 %v1918
    %2786 = vmatprep.subr.bf16.mxu0 %v1907
    %2787 = vmatpush1.bf16.msra.mxu0 %v1906
    %2788 = vmatprep.subr.bf16.mxu0 %v1895
    %2789 = vmatpush1.bf16.msra.mxu0 %v1894
    %2790 = vmatprep.subr.bf16.mxu0 %v1883
    %2791 = vmatpush1.bf16.msra.mxu0 %v1882
    %2792 = vmatprep.subr.bf16.mxu0 %v1871
    %2793 = vmatpush1.bf16.msra.mxu0 %v1870
    %2794 = vmatprep.subr.bf16.mxu0 %v1859
    %2795 = vmatpush1.bf16.msra.mxu0 %v1858
    %2796 = vmatprep.subr.bf16.mxu0 %v1847
    %2797 = vmatpush1.bf16.msra.mxu0 %v1846
    %2798 = vmatprep.subr.bf16.mxu0 %v2027
    %2799 = vmatpush2.bf16.msra.mxu0 %v2026
    %2800 = vmatprep.subr.bf16.mxu0 %v2015
    %2801 = vmatpush2.bf16.msra.mxu0 %v2014
    %2802 = vmatprep.subr.bf16.mxu0 %v2003
    %2803 = vmatpush2.bf16.msra.mxu0 %v2002
    %2804 = vmatprep.subr.bf16.mxu0 %v1991
    %2805 = vmatpush2.bf16.msra.mxu0 %v1990
    %2806 = vmatprep.subr.bf16.mxu0 %v1979
    %2807 = vmatpush2.bf16.msra.mxu0 %v1978
    %2808 = vmatprep.subr.bf16.mxu0 %v1967
    %2809 = vmatpush2.bf16.msra.mxu0 %v1966
    %2810 = vmatprep.subr.bf16.mxu0 %v1955
    %2811 = vmatpush2.bf16.msra.mxu0 %v1954
    %2812 = vmatprep.subr.bf16.mxu0 %v1943
    %2813 = vmatpush2.bf16.msra.mxu0 %v1942
    %2814 = vmatprep.mubr.bf16.mxu0 %v239
    %2815 = vmatmul.mubr.bf16.gmra.mxu0 %v238
    %v2816 = vpop.f32.mrf.mxu0
    %v2817 = vadd.f32 %v649, %v2816
    %v2818 = vpop.f32.mrf.mxu0
    %v2819 = vadd.f32 %v653, %v2818
    %v2820 = vpop.f32.mrf.mxu0
    %v2821 = vadd.f32 %v649, %v2820
    %v2822 = vpop.f32.mrf.mxu0
    %v2823 = vadd.f32 %v653, %v2822
    %2824 = vdwg.mxu0
    %2825 = vmatprep.subr.bf16.mxu0 %v2123
    %2826 = vmatpush1.bf16.msra.mxu0 %v2122
    %2827 = vmatprep.subr.bf16.mxu0 %v2111
    %2828 = vmatpush1.bf16.msra.mxu0 %v2110
    %2829 = vmatprep.subr.bf16.mxu0 %v2099
    %2830 = vmatpush1.bf16.msra.mxu0 %v2098
    %2831 = vmatprep.subr.bf16.mxu0 %v2087
    %2832 = vmatpush1.bf16.msra.mxu0 %v2086
    %2833 = vmatprep.subr.bf16.mxu0 %v2075
    %2834 = vmatpush1.bf16.msra.mxu0 %v2074
    %2835 = vmatprep.subr.bf16.mxu0 %v2063
    %2836 = vmatpush1.bf16.msra.mxu0 %v2062
    %2837 = vmatprep.subr.bf16.mxu0 %v2051
    %2838 = vmatpush1.bf16.msra.mxu0 %v2050
    %2839 = vmatprep.subr.bf16.mxu0 %v2039
    %2840 = vmatpush1.bf16.msra.mxu0 %v2038
    %2841 = vmatprep.subr.bf16.mxu0 %v2219
    %2842 = vmatpush2.bf16.msra.mxu0 %v2218
    %2843 = vmatprep.subr.bf16.mxu0 %v2207
    %2844 = vmatpush2.bf16.msra.mxu0 %v2206
    %2845 = vmatprep.subr.bf16.mxu0 %v2195
    %2846 = vmatpush2.bf16.msra.mxu0 %v2194
    %2847 = vmatprep.subr.bf16.mxu0 %v2183
    %2848 = vmatpush2.bf16.msra.mxu0 %v2182
    %2849 = vmatprep.subr.bf16.mxu0 %v2171
    %2850 = vmatpush2.bf16.msra.mxu0 %v2170
    %2851 = vmatprep.subr.bf16.mxu0 %v2159
    %2852 = vmatpush2.bf16.msra.mxu0 %v2158
    %2853 = vmatprep.subr.bf16.mxu0 %v2147
    %2854 = vmatpush2.bf16.msra.mxu0 %v2146
    %2855 = vmatprep.subr.bf16.mxu0 %v2135
    %2856 = vmatpush2.bf16.msra.mxu0 %v2134
    %2857 = vmatprep.mubr.bf16.mxu0 %v241
    %2858 = vmatmul.mubr.bf16.gmra.mxu0 %v240
    %v2859 = vpop.f32.mrf.mxu0
    %v2860 = vadd.f32 %v2817, %v2859
    %v2861 = vpop.f32.mrf.mxu0
    %v2862 = vadd.f32 %v2819, %v2861
    %v2863 = vpop.f32.mrf.mxu0
    %v2864 = vadd.f32 %v2821, %v2863
    %v2865 = vpop.f32.mrf.mxu0
    %v2866 = vadd.f32 %v2823, %v2865
    %2867 = vdwg.mxu0
    %2868 = vmatprep.subr.bf16.mxu0 %v1933
    %2869 = vmatpush1.bf16.msra.mxu0 %v1932
    %2870 = vmatprep.subr.bf16.mxu0 %v1921
    %2871 = vmatpush1.bf16.msra.mxu0 %v1920
    %2872 = vmatprep.subr.bf16.mxu0 %v1909
    %2873 = vmatpush1.bf16.msra.mxu0 %v1908
    %2874 = vmatprep.subr.bf16.mxu0 %v1897
    %2875 = vmatpush1.bf16.msra.mxu0 %v1896
    %2876 = vmatprep.subr.bf16.mxu0 %v1885
    %2877 = vmatpush1.bf16.msra.mxu0 %v1884
    %2878 = vmatprep.subr.bf16.mxu0 %v1873
    %2879 = vmatpush1.bf16.msra.mxu0 %v1872
    %2880 = vmatprep.subr.bf16.mxu0 %v1861
    %2881 = vmatpush1.bf16.msra.mxu0 %v1860
    %2882 = vmatprep.subr.bf16.mxu0 %v1849
    %2883 = vmatpush1.bf16.msra.mxu0 %v1848
    %2884 = vmatprep.subr.bf16.mxu0 %v2029
    %2885 = vmatpush2.bf16.msra.mxu0 %v2028
    %2886 = vmatprep.subr.bf16.mxu0 %v2017
    %2887 = vmatpush2.bf16.msra.mxu0 %v2016
    %2888 = vmatprep.subr.bf16.mxu0 %v2005
    %2889 = vmatpush2.bf16.msra.mxu0 %v2004
    %2890 = vmatprep.subr.bf16.mxu0 %v1993
    %2891 = vmatpush2.bf16.msra.mxu0 %v1992
    %2892 = vmatprep.subr.bf16.mxu0 %v1981
    %2893 = vmatpush2.bf16.msra.mxu0 %v1980
    %2894 = vmatprep.subr.bf16.mxu0 %v1969
    %2895 = vmatpush2.bf16.msra.mxu0 %v1968
    %2896 = vmatprep.subr.bf16.mxu0 %v1957
    %2897 = vmatpush2.bf16.msra.mxu0 %v1956
    %2898 = vmatprep.subr.bf16.mxu0 %v1945
    %2899 = vmatpush2.bf16.msra.mxu0 %v1944
    %2900 = vmatprep.mubr.bf16.mxu0 %v239
    %2901 = vmatmul.mubr.bf16.gmra.mxu0 %v238
    %v2902 = vpop.f32.mrf.mxu0
    %v2903 = vadd.f32 %v657, %v2902
    %v2904 = vpop.f32.mrf.mxu0
    %v2905 = vadd.f32 %v661, %v2904
    %v2906 = vpop.f32.mrf.mxu0
    %v2907 = vadd.f32 %v657, %v2906
    %v2908 = vpop.f32.mrf.mxu0
    %v2909 = vadd.f32 %v661, %v2908
    %2910 = vdwg.mxu0
    %2911 = vmatprep.subr.bf16.mxu0 %v2125
    %2912 = vmatpush1.bf16.msra.mxu0 %v2124
    %2913 = vmatprep.subr.bf16.mxu0 %v2113
    %2914 = vmatpush1.bf16.msra.mxu0 %v2112
    %2915 = vmatprep.subr.bf16.mxu0 %v2101
    %2916 = vmatpush1.bf16.msra.mxu0 %v2100
    %2917 = vmatprep.subr.bf16.mxu0 %v2089
    %2918 = vmatpush1.bf16.msra.mxu0 %v2088
    %2919 = vmatprep.subr.bf16.mxu0 %v2077
    %2920 = vmatpush1.bf16.msra.mxu0 %v2076
    %2921 = vmatprep.subr.bf16.mxu0 %v2065
    %2922 = vmatpush1.bf16.msra.mxu0 %v2064
    %2923 = vmatprep.subr.bf16.mxu0 %v2053
    %2924 = vmatpush1.bf16.msra.mxu0 %v2052
    %2925 = vmatprep.subr.bf16.mxu0 %v2041
    %2926 = vmatpush1.bf16.msra.mxu0 %v2040
    %2927 = vmatprep.subr.bf16.mxu0 %v2221
    %2928 = vmatpush2.bf16.msra.mxu0 %v2220
    %2929 = vmatprep.subr.bf16.mxu0 %v2209
    %2930 = vmatpush2.bf16.msra.mxu0 %v2208
    %2931 = vmatprep.subr.bf16.mxu0 %v2197
    %2932 = vmatpush2.bf16.msra.mxu0 %v2196
    %2933 = vmatprep.subr.bf16.mxu0 %v2185
    %2934 = vmatpush2.bf16.msra.mxu0 %v2184
    %2935 = vmatprep.subr.bf16.mxu0 %v2173
    %2936 = vmatpush2.bf16.msra.mxu0 %v2172
    %2937 = vmatprep.subr.bf16.mxu0 %v2161
    %2938 = vmatpush2.bf16.msra.mxu0 %v2160
    %2939 = vmatprep.subr.bf16.mxu0 %v2149
    %2940 = vmatpush2.bf16.msra.mxu0 %v2148
    %2941 = vmatprep.subr.bf16.mxu0 %v2137
    %2942 = vmatpush2.bf16.msra.mxu0 %v2136
    %2943 = vmatprep.mubr.bf16.mxu0 %v241
    %2944 = vmatmul.mubr.bf16.gmra.mxu0 %v240
    %v2945 = vpop.f32.mrf.mxu0
    %v2946 = vadd.f32 %v2903, %v2945
    %v2947 = vpop.f32.mrf.mxu0
    %v2948 = vadd.f32 %v2905, %v2947
    %v2949 = vpop.f32.mrf.mxu0
    %v2950 = vadd.f32 %v2907, %v2949
    %v2951 = vpop.f32.mrf.mxu0
    %v2952 = vadd.f32 %v2909, %v2951
    %2953 = vdwg.mxu0
    %2954 = vmatprep.subr.bf16.mxu0 %v1935
    %2955 = vmatpush1.bf16.msra.mxu0 %v1934
    %2956 = vmatprep.subr.bf16.mxu0 %v1923
    %2957 = vmatpush1.bf16.msra.mxu0 %v1922
    %2958 = vmatprep.subr.bf16.mxu0 %v1911
    %2959 = vmatpush1.bf16.msra.mxu0 %v1910
    %2960 = vmatprep.subr.bf16.mxu0 %v1899
    %2961 = vmatpush1.bf16.msra.mxu0 %v1898
    %2962 = vmatprep.subr.bf16.mxu0 %v1887
    %2963 = vmatpush1.bf16.msra.mxu0 %v1886
    %2964 = vmatprep.subr.bf16.mxu0 %v1875
    %2965 = vmatpush1.bf16.msra.mxu0 %v1874
    %2966 = vmatprep.subr.bf16.mxu0 %v1863
    %2967 = vmatpush1.bf16.msra.mxu0 %v1862
    %2968 = vmatprep.subr.bf16.mxu0 %v1851
    %2969 = vmatpush1.bf16.msra.mxu0 %v1850
    %2970 = vmatprep.subr.bf16.mxu0 %v2031
    %2971 = vmatpush2.bf16.msra.mxu0 %v2030
    %2972 = vmatprep.subr.bf16.mxu0 %v2019
    %2973 = vmatpush2.bf16.msra.mxu0 %v2018
    %2974 = vmatprep.subr.bf16.mxu0 %v2007
    %2975 = vmatpush2.bf16.msra.mxu0 %v2006
    %2976 = vmatprep.subr.bf16.mxu0 %v1995
    %2977 = vmatpush2.bf16.msra.mxu0 %v1994
    %2978 = vmatprep.subr.bf16.mxu0 %v1983
    %2979 = vmatpush2.bf16.msra.mxu0 %v1982
    %2980 = vmatprep.subr.bf16.mxu0 %v1971
    %2981 = vmatpush2.bf16.msra.mxu0 %v1970
    %2982 = vmatprep.subr.bf16.mxu0 %v1959
    %2983 = vmatpush2.bf16.msra.mxu0 %v1958
    %2984 = vmatprep.subr.bf16.mxu0 %v1947
    %2985 = vmatpush2.bf16.msra.mxu0 %v1946
    %2986 = vmatprep.mubr.bf16.mxu0 %v239
    %2987 = vmatmul.mubr.bf16.gmra.mxu0 %v238
    %v2988 = vpop.f32.mrf.mxu0
    %v2989 = vadd.f32 %v665, %v2988
    %v2990 = vpop.f32.mrf.mxu0
    %v2991 = vadd.f32 %v669, %v2990
    %v2992 = vpop.f32.mrf.mxu0
    %v2993 = vadd.f32 %v665, %v2992
    %v2994 = vpop.f32.mrf.mxu0
    %v2995 = vadd.f32 %v669, %v2994
    %2996 = vdwg.mxu0
    %2997 = vmatprep.subr.bf16.mxu0 %v2127
    %2998 = vmatpush1.bf16.msra.mxu0 %v2126
    %2999 = vmatprep.subr.bf16.mxu0 %v2115
    %3000 = vmatpush1.bf16.msra.mxu0 %v2114
    %3001 = vmatprep.subr.bf16.mxu0 %v2103
    %3002 = vmatpush1.bf16.msra.mxu0 %v2102
    %3003 = vmatprep.subr.bf16.mxu0 %v2091
    %3004 = vmatpush1.bf16.msra.mxu0 %v2090
    %3005 = vmatprep.subr.bf16.mxu0 %v2079
    %3006 = vmatpush1.bf16.msra.mxu0 %v2078
    %3007 = vmatprep.subr.bf16.mxu0 %v2067
    %3008 = vmatpush1.bf16.msra.mxu0 %v2066
    %3009 = vmatprep.subr.bf16.mxu0 %v2055
    %3010 = vmatpush1.bf16.msra.mxu0 %v2054
    %3011 = vmatprep.subr.bf16.mxu0 %v2043
    %3012 = vmatpush1.bf16.msra.mxu0 %v2042
    %3013 = vmatprep.subr.bf16.mxu0 %v2223
    %3014 = vmatpush2.bf16.msra.mxu0 %v2222
    %3015 = vmatprep.subr.bf16.mxu0 %v2211
    %3016 = vmatpush2.bf16.msra.mxu0 %v2210
    %3017 = vmatprep.subr.bf16.mxu0 %v2199
    %3018 = vmatpush2.bf16.msra.mxu0 %v2198
    %3019 = vmatprep.subr.bf16.mxu0 %v2187
    %3020 = vmatpush2.bf16.msra.mxu0 %v2186
    %3021 = vmatprep.subr.bf16.mxu0 %v2175
    %3022 = vmatpush2.bf16.msra.mxu0 %v2174
    %3023 = vmatprep.subr.bf16.mxu0 %v2163
    %3024 = vmatpush2.bf16.msra.mxu0 %v2162
    %3025 = vmatprep.subr.bf16.mxu0 %v2151
    %3026 = vmatpush2.bf16.msra.mxu0 %v2150
    %3027 = vmatprep.subr.bf16.mxu0 %v2139
    %3028 = vmatpush2.bf16.msra.mxu0 %v2138
    %3029 = vmatprep.mubr.bf16.mxu0 %v241
    %3030 = vmatmul.mubr.bf16.gmra.mxu0 %v240
    %v3031 = vpop.f32.mrf.mxu0
    %v3032 = vadd.f32 %v2989, %v3031
    %v3033 = vpop.f32.mrf.mxu0
    %v3034 = vadd.f32 %v2991, %v3033
    %v3035 = vpop.f32.mrf.mxu0
    %v3036 = vadd.f32 %v2993, %v3035
    %v3037 = vpop.f32.mrf.mxu0
    %v3038 = vadd.f32 %v2995, %v3037
    %3039 = vdwg.mxu0
    %3040 = vmatprep.subr.bf16.mxu0 %v1937
    %3041 = vmatpush1.bf16.msra.mxu0 %v1936
    %3042 = vmatprep.subr.bf16.mxu0 %v1925
    %3043 = vmatpush1.bf16.msra.mxu0 %v1924
    %3044 = vmatprep.subr.bf16.mxu0 %v1913
    %3045 = vmatpush1.bf16.msra.mxu0 %v1912
    %3046 = vmatprep.subr.bf16.mxu0 %v1901
    %3047 = vmatpush1.bf16.msra.mxu0 %v1900
    %3048 = vmatprep.subr.bf16.mxu0 %v1889
    %3049 = vmatpush1.bf16.msra.mxu0 %v1888
    %3050 = vmatprep.subr.bf16.mxu0 %v1877
    %3051 = vmatpush1.bf16.msra.mxu0 %v1876
    %3052 = vmatprep.subr.bf16.mxu0 %v1865
    %3053 = vmatpush1.bf16.msra.mxu0 %v1864
    %3054 = vmatprep.subr.bf16.mxu0 %v1853
    %3055 = vmatpush1.bf16.msra.mxu0 %v1852
    %3056 = vmatprep.subr.bf16.mxu0 %v2033
    %3057 = vmatpush2.bf16.msra.mxu0 %v2032
    %3058 = vmatprep.subr.bf16.mxu0 %v2021
    %3059 = vmatpush2.bf16.msra.mxu0 %v2020
    %3060 = vmatprep.subr.bf16.mxu0 %v2009
    %3061 = vmatpush2.bf16.msra.mxu0 %v2008
    %3062 = vmatprep.subr.bf16.mxu0 %v1997
    %3063 = vmatpush2.bf16.msra.mxu0 %v1996
    %3064 = vmatprep.subr.bf16.mxu0 %v1985
    %3065 = vmatpush2.bf16.msra.mxu0 %v1984
    %3066 = vmatprep.subr.bf16.mxu0 %v1973
    %3067 = vmatpush2.bf16.msra.mxu0 %v1972
    %3068 = vmatprep.subr.bf16.mxu0 %v1961
    %3069 = vmatpush2.bf16.msra.mxu0 %v1960
    %3070 = vmatprep.subr.bf16.mxu0 %v1949
    %3071 = vmatpush2.bf16.msra.mxu0 %v1948
    %3072 = vmatprep.mubr.bf16.mxu0 %v239
    %3073 = vmatmul.mubr.bf16.gmra.mxu0 %v238
    %v3074 = vpop.f32.mrf.mxu0
    %v3075 = vadd.f32 %v673, %v3074
    %v3076 = vpop.f32.mrf.mxu0
    %v3077 = vadd.f32 %v677, %v3076
    %v3078 = vpop.f32.mrf.mxu0
    %v3079 = vadd.f32 %v673, %v3078
    %v3080 = vpop.f32.mrf.mxu0
    %v3081 = vadd.f32 %v677, %v3080
    %3082 = vdwg.mxu0
    %3083 = vmatprep.subr.bf16.mxu0 %v2129
    %3084 = vmatpush1.bf16.msra.mxu0 %v2128
    %3085 = vmatprep.subr.bf16.mxu0 %v2117
    %3086 = vmatpush1.bf16.msra.mxu0 %v2116
    %3087 = vmatprep.subr.bf16.mxu0 %v2105
    %3088 = vmatpush1.bf16.msra.mxu0 %v2104
    %3089 = vmatprep.subr.bf16.mxu0 %v2093
    %3090 = vmatpush1.bf16.msra.mxu0 %v2092
    %3091 = vmatprep.subr.bf16.mxu0 %v2081
    %3092 = vmatpush1.bf16.msra.mxu0 %v2080
    %3093 = vmatprep.subr.bf16.mxu0 %v2069
    %3094 = vmatpush1.bf16.msra.mxu0 %v2068
    %3095 = vmatprep.subr.bf16.mxu0 %v2057
    %3096 = vmatpush1.bf16.msra.mxu0 %v2056
    %3097 = vmatprep.subr.bf16.mxu0 %v2045
    %3098 = vmatpush1.bf16.msra.mxu0 %v2044
    %3099 = vmatprep.subr.bf16.mxu0 %v2225
    %3100 = vmatpush2.bf16.msra.mxu0 %v2224
    %3101 = vmatprep.subr.bf16.mxu0 %v2213
    %3102 = vmatpush2.bf16.msra.mxu0 %v2212
    %3103 = vmatprep.subr.bf16.mxu0 %v2201
    %3104 = vmatpush2.bf16.msra.mxu0 %v2200
    %3105 = vmatprep.subr.bf16.mxu0 %v2189
    %3106 = vmatpush2.bf16.msra.mxu0 %v2188
    %3107 = vmatprep.subr.bf16.mxu0 %v2177
    %3108 = vmatpush2.bf16.msra.mxu0 %v2176
    %3109 = vmatprep.subr.bf16.mxu0 %v2165
    %3110 = vmatpush2.bf16.msra.mxu0 %v2164
    %3111 = vmatprep.subr.bf16.mxu0 %v2153
    %3112 = vmatpush2.bf16.msra.mxu0 %v2152
    %3113 = vmatprep.subr.bf16.mxu0 %v2141
    %3114 = vmatpush2.bf16.msra.mxu0 %v2140
    %3115 = vmatprep.mubr.bf16.mxu0 %v241
    %3116 = vmatmul.mubr.bf16.gmra.mxu0 %v240
    %v3117 = vpop.f32.mrf.mxu0
    %v3118 = vadd.f32 %v3075, %v3117
    %v3119 = vpop.f32.mrf.mxu0
    %v3120 = vadd.f32 %v3077, %v3119
    %v3121 = vpop.f32.mrf.mxu0
    %v3122 = vadd.f32 %v3079, %v3121
    %v3123 = vpop.f32.mrf.mxu0
    %v3124 = vadd.f32 %v3081, %v3123
    %3125 = vdwg.mxu0
    %3126 = vmatprep.subr.mxu0 0.0
    %3127 = vmatpush1.xpose.msra.mxu0 0.0
    %3128 = vmatprep.subr.mxu0 0.0
    %3129 = vmatpush1.xpose.msra.mxu0 0.0
    %3130 = vmatprep.subr.mxu0 0.0
    %3131 = vmatpush1.xpose.msra.mxu0 0.0
    %3132 = vmatprep.subr.mxu0 0.0
    %3133 = vmatpush1.xpose.msra.mxu0 0.0
    %3134 = vmatprep.subr.mxu0 0.0
    %3135 = vmatpush1.xpose.msra.mxu0 0.0
    %3136 = vmatprep.subr.mxu0 0.0
    %3137 = vmatpush1.xpose.msra.mxu0 0.0
    %3138 = vmatprep.subr.mxu0 0.0
    %3139 = vmatpush1.xpose.msra.mxu0 0.0
    %3140 = vmatprep.subr.mxu0 0.0
    %3141 = vmatpush1.xpose.msra.mxu0 0.0
    %3142 = vmatprep.subr.mxu0 0.0
    %3143 = vmatpush1.xpose.msra.mxu0 0.0
    %3144 = vmatprep.subr.mxu0 0.0
    %3145 = vmatpush1.xpose.msra.mxu0 0.0
    %3146 = vmatprep.subr.mxu0 0.0
    %3147 = vmatpush1.xpose.msra.mxu0 0.0
    %3148 = vmatprep.subr.mxu0 0.0
    %3149 = vmatpush1.xpose.msra.mxu0 0.0
    %3150 = vmatprep.subr.mxu0 0.0
    %3151 = vmatpush1.xpose.msra.mxu0 0.0
    %3152 = vmatprep.subr.mxu0 0.0
    %3153 = vmatpush1.xpose.msra.mxu0 0.0
    %3154 = vmatprep.subr.mxu0 0.0
    %3155 = vmatpush1.xpose.msra.mxu0 0.0
    %3156 = vmatprep.subr.mxu0 0.0
    %3157 = vmatpush1.xpose.msra.mxu0 %v2860
    %3158 = vmatprep.subr.mxu0 0.0
    %3159 = vmatpush2.xpose.msra.mxu0 0.0
    %3160 = vmatprep.subr.mxu0 0.0
    %3161 = vmatpush2.xpose.msra.mxu0 0.0
    %3162 = vmatprep.subr.mxu0 0.0
    %3163 = vmatpush2.xpose.msra.mxu0 0.0
    %3164 = vmatprep.subr.mxu0 0.0
    %3165 = vmatpush2.xpose.msra.mxu0 0.0
    %3166 = vmatprep.subr.mxu0 0.0
    %3167 = vmatpush2.xpose.msra.mxu0 0.0
    %3168 = vmatprep.subr.mxu0 0.0
    %3169 = vmatpush2.xpose.msra.mxu0 0.0
    %3170 = vmatprep.subr.mxu0 0.0
    %3171 = vmatpush2.xpose.msra.mxu0 0.0
    %3172 = vmatprep.subr.mxu0 0.0
    %3173 = vmatpush2.xpose.msra.mxu0 0.0
    %3174 = vmatprep.subr.mxu0 0.0
    %3175 = vmatpush2.xpose.msra.mxu0 0.0
    %3176 = vmatprep.subr.mxu0 0.0
    %3177 = vmatpush2.xpose.msra.mxu0 0.0
    %3178 = vmatprep.subr.mxu0 0.0
    %3179 = vmatpush2.xpose.msra.mxu0 0.0
    %3180 = vmatprep.subr.mxu0 0.0
    %3181 = vmatpush2.xpose.msra.mxu0 0.0
    %3182 = vmatprep.subr.mxu0 0.0
    %3183 = vmatpush2.xpose.msra.mxu0 0.0
    %3184 = vmatprep.subr.mxu0 0.0
    %3185 = vmatpush2.xpose.msra.mxu0 0.0
    %3186 = vmatprep.subr.mxu0 0.0
    %3187 = vmatpush2.xpose.msra.mxu0 0.0
    %3188 = vmatprep.subr.mxu0 0.0
    %3189 = vmatpush2.xpose.msra.mxu0 0.0
    %3190 = vmatprep.mubr.f32.mxu0 0.0
    %3191 = vmatmul.mubr.f32.gmra.mxu0 %v2688
    %v3192 = vpop.f32.mrf.mxu0
    %v3193 = vadd.f32 0.0, %v3192
    %v3194 = vpop.f32.mrf.mxu0
    %3195 = vdwg.mxu0
    %vm3196 = vcmask 64512
    %v3197 = vsel %vm3196, %v3193, -inf
    %3198 = vmax.xlane.f32.xlu0 %v3197
    %v3199 = vpop.xlane.xlu0 %3198
    %v3200 = vsub.f32 %v3193, %v3199
    %v3201 = vmul.f32 %v3200, 1.442695
    %v3202 = vpow.pop %v3201
    %v3203 = vsel %vm3196, %v3202, 0.0
    %3204 = vadd.xlane.f32.xlu0 %v3203
    %v3205 = vpop.xlane.xlu0 %3204
    %v3206 = vrcp.pop %v3205
    %v3207 = vmul.f32 %v3202, %v3206
    %v3208 = vadd.f32 %v3207, 0.0
    %v3210 = vsel %vm3196, %v3207, 0
    %3212 = vmatprep.subr.mxu0 0.0
    %3213 = vmatpush1.msra.mxu0 0.0
    %3214 = vmatprep.subr.mxu0 0.0
    %3215 = vmatpush1.msra.mxu0 0.0
    %3216 = vmatprep.subr.mxu0 0.0
    %3217 = vmatpush1.msra.mxu0 0.0
    %3218 = vmatprep.subr.mxu0 0.0
    %3219 = vmatpush1.msra.mxu0 0.0
    %3220 = vmatprep.subr.mxu0 0.0
    %3221 = vmatpush1.msra.mxu0 0.0
    %3222 = vmatprep.subr.mxu0 0.0
    %3223 = vmatpush1.msra.mxu0 0.0
    %3224 = vmatprep.subr.mxu0 0.0
    %3225 = vmatpush1.msra.mxu0 0.0
    %3226 = vmatprep.subr.mxu0 0.0
    %3227 = vmatpush1.msra.mxu0 0.0
    %3228 = vmatprep.subr.mxu0 0.0
    %3229 = vmatpush1.msra.mxu0 0.0
    %3230 = vmatprep.subr.mxu0 0.0
    %3231 = vmatpush1.msra.mxu0 0.0
    %3232 = vmatprep.subr.mxu0 0.0
    %3233 = vmatpush1.msra.mxu0 0.0
    %3234 = vmatprep.subr.mxu0 0.0
    %3235 = vmatpush1.msra.mxu0 0.0
    %3236 = vmatprep.subr.mxu0 0.0
    %3237 = vmatpush1.msra.mxu0 0.0
    %3238 = vmatprep.subr.mxu0 0.0
    %3239 = vmatpush1.msra.mxu0 0.0
    %3240 = vmatprep.subr.mxu0 0.0
    %3241 = vmatpush1.msra.mxu0 0.0
    %3242 = vmatprep.subr.mxu0 0.0
    %3243 = vmatpush1.msra.mxu0 %v3032
    %3244 = vmatprep.subr.mxu0 0.0
    %3245 = vmatpush2.msra.mxu0 0.0
    %3246 = vmatprep.subr.mxu0 0.0
    %3247 = vmatpush2.msra.mxu0 0.0
    %3248 = vmatprep.subr.mxu0 0.0
    %3249 = vmatpush2.msra.mxu0 0.0
    %3250 = vmatprep.subr.mxu0 0.0
    %3251 = vmatpush2.msra.mxu0 0.0
    %3252 = vmatprep.subr.mxu0 0.0
    %3253 = vmatpush2.msra.mxu0 0.0
    %3254 = vmatprep.subr.mxu0 0.0
    %3255 = vmatpush2.msra.mxu0 0.0
    %3256 = vmatprep.subr.mxu0 0.0
    %3257 = vmatpush2.msra.mxu0 0.0
    %3258 = vmatprep.subr.mxu0 0.0
    %3259 = vmatpush2.msra.mxu0 0.0
    %3260 = vmatprep.subr.mxu0 0.0
    %3261 = vmatpush2.msra.mxu0 0.0
    %3262 = vmatprep.subr.mxu0 0.0
    %3263 = vmatpush2.msra.mxu0 0.0
    %3264 = vmatprep.subr.mxu0 0.0
    %3265 = vmatpush2.msra.mxu0 0.0
    %3266 = vmatprep.subr.mxu0 0.0
    %3267 = vmatpush2.msra.mxu0 0.0
    %3268 = vmatprep.subr.mxu0 0.0
    %3269 = vmatpush2.msra.mxu0 0.0
    %3270 = vmatprep.subr.mxu0 0.0
    %3271 = vmatpush2.msra.mxu0 0.0
    %3272 = vmatprep.subr.mxu0 0.0
    %3273 = vmatpush2.msra.mxu0 0.0
    %3274 = vmatprep.subr.mxu0 0.0
    %3275 = vmatpush2.msra.mxu0 0.0
    %3276 = vmatprep.mubr.f32.mxu0 0.0
    %3277 = vmatmul.mubr.f32.gmra.mxu0 %v3210
    %v3278 = vpop.f32.mrf.mxu0
    %v3279 = vadd.f32 0.0, %v3278
    %v3280 = vpop.f32.mrf.mxu0
    %3281 = vdwg.mxu0
    %3282 = vmatprep.subr.mxu0 0.0
    %3283 = vmatpush1.xpose.msra.mxu0 0.0
    %3284 = vmatprep.subr.mxu0 0.0
    %3285 = vmatpush1.xpose.msra.mxu0 0.0
    %3286 = vmatprep.subr.mxu0 0.0
    %3287 = vmatpush1.xpose.msra.mxu0 0.0
    %3288 = vmatprep.subr.mxu0 0.0
    %3289 = vmatpush1.xpose.msra.mxu0 0.0
    %3290 = vmatprep.subr.mxu0 0.0
    %3291 = vmatpush1.xpose.msra.mxu0 0.0
    %3292 = vmatprep.subr.mxu0 0.0
    %3293 = vmatpush1.xpose.msra.mxu0 0.0
    %3294 = vmatprep.subr.mxu0 0.0
    %3295 = vmatpush1.xpose.msra.mxu0 0.0
    %3296 = vmatprep.subr.mxu0 0.0
    %3297 = vmatpush1.xpose.msra.mxu0 0.0
    %3298 = vmatprep.subr.mxu0 0.0
    %3299 = vmatpush1.xpose.msra.mxu0 0.0
    %3300 = vmatprep.subr.mxu0 0.0
    %3301 = vmatpush1.xpose.msra.mxu0 0.0
    %3302 = vmatprep.subr.mxu0 0.0
    %3303 = vmatpush1.xpose.msra.mxu0 0.0
    %3304 = vmatprep.subr.mxu0 0.0
    %3305 = vmatpush1.xpose.msra.mxu0 0.0
    %3306 = vmatprep.subr.mxu0 0.0
    %3307 = vmatpush1.xpose.msra.mxu0 0.0
    %3308 = vmatprep.subr.mxu0 0.0
    %3309 = vmatpush1.xpose.msra.mxu0 0.0
    %3310 = vmatprep.subr.mxu0 0.0
    %3311 = vmatpush1.xpose.msra.mxu0 0.0
    %3312 = vmatprep.subr.mxu0 0.0
    %3313 = vmatpush1.xpose.msra.mxu0 %v2862
    %3314 = vmatprep.subr.mxu0 0.0
    %3315 = vmatpush2.xpose.msra.mxu0 0.0
    %3316 = vmatprep.subr.mxu0 0.0
    %3317 = vmatpush2.xpose.msra.mxu0 0.0
    %3318 = vmatprep.subr.mxu0 0.0
    %3319 = vmatpush2.xpose.msra.mxu0 0.0
    %3320 = vmatprep.subr.mxu0 0.0
    %3321 = vmatpush2.xpose.msra.mxu0 0.0
    %3322 = vmatprep.subr.mxu0 0.0
    %3323 = vmatpush2.xpose.msra.mxu0 0.0
    %3324 = vmatprep.subr.mxu0 0.0
    %3325 = vmatpush2.xpose.msra.mxu0 0.0
    %3326 = vmatprep.subr.mxu0 0.0
    %3327 = vmatpush2.xpose.msra.mxu0 0.0
    %3328 = vmatprep.subr.mxu0 0.0
    %3329 = vmatpush2.xpose.msra.mxu0 0.0
    %3330 = vmatprep.subr.mxu0 0.0
    %3331 = vmatpush2.xpose.msra.mxu0 0.0
    %3332 = vmatprep.subr.mxu0 0.0
    %3333 = vmatpush2.xpose.msra.mxu0 0.0
    %3334 = vmatprep.subr.mxu0 0.0
    %3335 = vmatpush2.xpose.msra.mxu0 0.0
    %3336 = vmatprep.subr.mxu0 0.0
    %3337 = vmatpush2.xpose.msra.mxu0 0.0
    %3338 = vmatprep.subr.mxu0 0.0
    %3339 = vmatpush2.xpose.msra.mxu0 0.0
    %3340 = vmatprep.subr.mxu0 0.0
    %3341 = vmatpush2.xpose.msra.mxu0 0.0
    %3342 = vmatprep.subr.mxu0 0.0
    %3343 = vmatpush2.xpose.msra.mxu0 0.0
    %3344 = vmatprep.subr.mxu0 0.0
    %3345 = vmatpush2.xpose.msra.mxu0 0.0
    %3346 = vmatprep.mubr.f32.mxu0 0.0
    %3347 = vmatmul.mubr.f32.gmra.mxu0 %v2690
    %v3348 = vpop.f32.mrf.mxu0
    %v3349 = vadd.f32 0.0, %v3348
    %v3350 = vpop.f32.mrf.mxu0
    %3351 = vdwg.mxu0
    %v3352 = vsel %vm3196, %v3349, -inf
    %3353 = vmax.xlane.f32.xlu0 %v3352
    %v3354 = vpop.xlane.xlu0 %3353
    %v3355 = vsub.f32 %v3349, %v3354
    %v3356 = vmul.f32 %v3355, 1.442695
    %v3357 = vpow.pop %v3356
    %v3358 = vsel %vm3196, %v3357, 0.0
    %3359 = vadd.xlane.f32.xlu0 %v3358
    %v3360 = vpop.xlane.xlu0 %3359
    %v3361 = vrcp.pop %v3360
    %v3362 = vmul.f32 %v3357, %v3361
    %v3363 = vadd.f32 %v3208, %v3362
    %v3365 = vsel %vm3196, %v3362, 0
    %3367 = vmatprep.subr.mxu0 0.0
    %3368 = vmatpush1.msra.mxu0 0.0
    %3369 = vmatprep.subr.mxu0 0.0
    %3370 = vmatpush1.msra.mxu0 0.0
    %3371 = vmatprep.subr.mxu0 0.0
    %3372 = vmatpush1.msra.mxu0 0.0
    %3373 = vmatprep.subr.mxu0 0.0
    %3374 = vmatpush1.msra.mxu0 0.0
    %3375 = vmatprep.subr.mxu0 0.0
    %3376 = vmatpush1.msra.mxu0 0.0
    %3377 = vmatprep.subr.mxu0 0.0
    %3378 = vmatpush1.msra.mxu0 0.0
    %3379 = vmatprep.subr.mxu0 0.0
    %3380 = vmatpush1.msra.mxu0 0.0
    %3381 = vmatprep.subr.mxu0 0.0
    %3382 = vmatpush1.msra.mxu0 0.0
    %3383 = vmatprep.subr.mxu0 0.0
    %3384 = vmatpush1.msra.mxu0 0.0
    %3385 = vmatprep.subr.mxu0 0.0
    %3386 = vmatpush1.msra.mxu0 0.0
    %3387 = vmatprep.subr.mxu0 0.0
    %3388 = vmatpush1.msra.mxu0 0.0
    %3389 = vmatprep.subr.mxu0 0.0
    %3390 = vmatpush1.msra.mxu0 0.0
    %3391 = vmatprep.subr.mxu0 0.0
    %3392 = vmatpush1.msra.mxu0 0.0
    %3393 = vmatprep.subr.mxu0 0.0
    %3394 = vmatpush1.msra.mxu0 0.0
    %3395 = vmatprep.subr.mxu0 0.0
    %3396 = vmatpush1.msra.mxu0 0.0
    %3397 = vmatprep.subr.mxu0 0.0
    %3398 = vmatpush1.msra.mxu0 %v3034
    %3399 = vmatprep.subr.mxu0 0.0
    %3400 = vmatpush2.msra.mxu0 0.0
    %3401 = vmatprep.subr.mxu0 0.0
    %3402 = vmatpush2.msra.mxu0 0.0
    %3403 = vmatprep.subr.mxu0 0.0
    %3404 = vmatpush2.msra.mxu0 0.0
    %3405 = vmatprep.subr.mxu0 0.0
    %3406 = vmatpush2.msra.mxu0 0.0
    %3407 = vmatprep.subr.mxu0 0.0
    %3408 = vmatpush2.msra.mxu0 0.0
    %3409 = vmatprep.subr.mxu0 0.0
    %3410 = vmatpush2.msra.mxu0 0.0
    %3411 = vmatprep.subr.mxu0 0.0
    %3412 = vmatpush2.msra.mxu0 0.0
    %3413 = vmatprep.subr.mxu0 0.0
    %3414 = vmatpush2.msra.mxu0 0.0
    %3415 = vmatprep.subr.mxu0 0.0
    %3416 = vmatpush2.msra.mxu0 0.0
    %3417 = vmatprep.subr.mxu0 0.0
    %3418 = vmatpush2.msra.mxu0 0.0
    %3419 = vmatprep.subr.mxu0 0.0
    %3420 = vmatpush2.msra.mxu0 0.0
    %3421 = vmatprep.subr.mxu0 0.0
    %3422 = vmatpush2.msra.mxu0 0.0
    %3423 = vmatprep.subr.mxu0 0.0
    %3424 = vmatpush2.msra.mxu0 0.0
    %3425 = vmatprep.subr.mxu0 0.0
    %3426 = vmatpush2.msra.mxu0 0.0
    %3427 = vmatprep.subr.mxu0 0.0
    %3428 = vmatpush2.msra.mxu0 0.0
    %3429 = vmatprep.subr.mxu0 0.0
    %3430 = vmatpush2.msra.mxu0 0.0
    %3431 = vmatprep.mubr.f32.mxu0 0.0
    %3432 = vmatmul.mubr.f32.gmra.mxu0 %v3365
    %v3433 = vpop.f32.mrf.mxu0
    %v3434 = vadd.f32 0.0, %v3433
    %v3435 = vpop.f32.mrf.mxu0
    %3436 = vdwg.mxu0
    %3437 = vmatprep.subr.mxu0 0.0
    %3438 = vmatpush1.xpose.msra.mxu0 0.0
    %3439 = vmatprep.subr.mxu0 0.0
    %3440 = vmatpush1.xpose.msra.mxu0 0.0
    %3441 = vmatprep.subr.mxu0 0.0
    %3442 = vmatpush1.xpose.msra.mxu0 0.0
    %3443 = vmatprep.subr.mxu0 0.0
    %3444 = vmatpush1.xpose.msra.mxu0 0.0
    %3445 = vmatprep.subr.mxu0 0.0
    %3446 = vmatpush1.xpose.msra.mxu0 0.0
    %3447 = vmatprep.subr.mxu0 0.0
    %3448 = vmatpush1.xpose.msra.mxu0 0.0
    %3449 = vmatprep.subr.mxu0 0.0
    %3450 = vmatpush1.xpose.msra.mxu0 0.0
    %3451 = vmatprep.subr.mxu0 0.0
    %3452 = vmatpush1.xpose.msra.mxu0 0.0
    %3453 = vmatprep.subr.mxu0 0.0
    %3454 = vmatpush1.xpose.msra.mxu0 0.0
    %3455 = vmatprep.subr.mxu0 0.0
    %3456 = vmatpush1.xpose.msra.mxu0 0.0
    %3457 = vmatprep.subr.mxu0 0.0
    %3458 = vmatpush1.xpose.msra.mxu0 0.0
    %3459 = vmatprep.subr.mxu0 0.0
    %3460 = vmatpush1.xpose.msra.mxu0 0.0
    %3461 = vmatprep.subr.mxu0 0.0
    %3462 = vmatpush1.xpose.msra.mxu0 0.0
    %3463 = vmatprep.subr.mxu0 0.0
    %3464 = vmatpush1.xpose.msra.mxu0 0.0
    %3465 = vmatprep.subr.mxu0 0.0
    %3466 = vmatpush1.xpose.msra.mxu0 0.0
    %3467 = vmatprep.subr.mxu0 0.0
    %3468 = vmatpush1.xpose.msra.mxu0 %v2946
    %3469 = vmatprep.subr.mxu0 0.0
    %3470 = vmatpush2.xpose.msra.mxu0 0.0
    %3471 = vmatprep.subr.mxu0 0.0
    %3472 = vmatpush2.xpose.msra.mxu0 0.0
    %3473 = vmatprep.subr.mxu0 0.0
    %3474 = vmatpush2.xpose.msra.mxu0 0.0
    %3475 = vmatprep.subr.mxu0 0.0
    %3476 = vmatpush2.xpose.msra.mxu0 0.0
    %3477 = vmatprep.subr.mxu0 0.0
    %3478 = vmatpush2.xpose.msra.mxu0 0.0
    %3479 = vmatprep.subr.mxu0 0.0
    %3480 = vmatpush2.xpose.msra.mxu0 0.0
    %3481 = vmatprep.subr.mxu0 0.0
    %3482 = vmatpush2.xpose.msra.mxu0 0.0
    %3483 = vmatprep.subr.mxu0 0.0
    %3484 = vmatpush2.xpose.msra.mxu0 0.0
    %3485 = vmatprep.subr.mxu0 0.0
    %3486 = vmatpush2.xpose.msra.mxu0 0.0
    %3487 = vmatprep.subr.mxu0 0.0
    %3488 = vmatpush2.xpose.msra.mxu0 0.0
    %3489 = vmatprep.subr.mxu0 0.0
    %3490 = vmatpush2.xpose.msra.mxu0 0.0
    %3491 = vmatprep.subr.mxu0 0.0
    %3492 = vmatpush2.xpose.msra.mxu0 0.0
    %3493 = vmatprep.subr.mxu0 0.0
    %3494 = vmatpush2.xpose.msra.mxu0 0.0
    %3495 = vmatprep.subr.mxu0 0.0
    %3496 = vmatpush2.xpose.msra.mxu0 0.0
    %3497 = vmatprep.subr.mxu0 0.0
    %3498 = vmatpush2.xpose.msra.mxu0 0.0
    %3499 = vmatprep.subr.mxu0 0.0
    %3500 = vmatpush2.xpose.msra.mxu0 0.0
    %3501 = vmatprep.mubr.f32.mxu0 0.0
    %3502 = vmatmul.mubr.f32.gmra.mxu0 %v2774
    %v3503 = vpop.f32.mrf.mxu0
    %v3504 = vadd.f32 0.0, %v3503
    %v3505 = vpop.f32.mrf.mxu0
    %3506 = vdwg.mxu0
    %v3507 = vsel %vm3196, %v3504, -inf
    %3508 = vmax.xlane.f32.xlu0 %v3507
    %v3509 = vpop.xlane.xlu0 %3508
    %v3510 = vsub.f32 %v3504, %v3509
    %v3511 = vmul.f32 %v3510, 1.442695
    %v3512 = vpow.pop %v3511
    %v3513 = vsel %vm3196, %v3512, 0.0
    %3514 = vadd.xlane.f32.xlu0 %v3513
    %v3515 = vpop.xlane.xlu0 %3514
    %v3516 = vrcp.pop %v3515
    %v3517 = vmul.f32 %v3512, %v3516
    %v3518 = vadd.f32 %v3363, %v3517
    %v3520 = vsel %vm3196, %v3517, 0
    %3522 = vmatprep.subr.mxu0 0.0
    %3523 = vmatpush1.msra.mxu0 0.0
    %3524 = vmatprep.subr.mxu0 0.0
    %3525 = vmatpush1.msra.mxu0 0.0
    %3526 = vmatprep.subr.mxu0 0.0
    %3527 = vmatpush1.msra.mxu0 0.0
    %3528 = vmatprep.subr.mxu0 0.0
    %3529 = vmatpush1.msra.mxu0 0.0
    %3530 = vmatprep.subr.mxu0 0.0
    %3531 = vmatpush1.msra.mxu0 0.0
    %3532 = vmatprep.subr.mxu0 0.0
    %3533 = vmatpush1.msra.mxu0 0.0
    %3534 = vmatprep.subr.mxu0 0.0
    %3535 = vmatpush1.msra.mxu0 0.0
    %3536 = vmatprep.subr.mxu0 0.0
    %3537 = vmatpush1.msra.mxu0 0.0
    %3538 = vmatprep.subr.mxu0 0.0
    %3539 = vmatpush1.msra.mxu0 0.0
    %3540 = vmatprep.subr.mxu0 0.0
    %3541 = vmatpush1.msra.mxu0 0.0
    %3542 = vmatprep.subr.mxu0 0.0
    %3543 = vmatpush1.msra.mxu0 0.0
    %3544 = vmatprep.subr.mxu0 0.0
    %3545 = vmatpush1.msra.mxu0 0.0
    %3546 = vmatprep.subr.mxu0 0.0
    %3547 = vmatpush1.msra.mxu0 0.0
    %3548 = vmatprep.subr.mxu0 0.0
    %3549 = vmatpush1.msra.mxu0 0.0
    %3550 = vmatprep.subr.mxu0 0.0
    %3551 = vmatpush1.msra.mxu0 0.0
    %3552 = vmatprep.subr.mxu0 0.0
    %3553 = vmatpush1.msra.mxu0 %v3118
    %3554 = vmatprep.subr.mxu0 0.0
    %3555 = vmatpush2.msra.mxu0 0.0
    %3556 = vmatprep.subr.mxu0 0.0
    %3557 = vmatpush2.msra.mxu0 0.0
    %3558 = vmatprep.subr.mxu0 0.0
    %3559 = vmatpush2.msra.mxu0 0.0
    %3560 = vmatprep.subr.mxu0 0.0
    %3561 = vmatpush2.msra.mxu0 0.0
    %3562 = vmatprep.subr.mxu0 0.0
    %3563 = vmatpush2.msra.mxu0 0.0
    %3564 = vmatprep.subr.mxu0 0.0
    %3565 = vmatpush2.msra.mxu0 0.0
    %3566 = vmatprep.subr.mxu0 0.0
    %3567 = vmatpush2.msra.mxu0 0.0
    %3568 = vmatprep.subr.mxu0 0.0
    %3569 = vmatpush2.msra.mxu0 0.0
    %3570 = vmatprep.subr.mxu0 0.0
    %3571 = vmatpush2.msra.mxu0 0.0
    %3572 = vmatprep.subr.mxu0 0.0
    %3573 = vmatpush2.msra.mxu0 0.0
    %3574 = vmatprep.subr.mxu0 0.0
    %3575 = vmatpush2.msra.mxu0 0.0
    %3576 = vmatprep.subr.mxu0 0.0
    %3577 = vmatpush2.msra.mxu0 0.0
    %3578 = vmatprep.subr.mxu0 0.0
    %3579 = vmatpush2.msra.mxu0 0.0
    %3580 = vmatprep.subr.mxu0 0.0
    %3581 = vmatpush2.msra.mxu0 0.0
    %3582 = vmatprep.subr.mxu0 0.0
    %3583 = vmatpush2.msra.mxu0 0.0
    %3584 = vmatprep.subr.mxu0 0.0
    %3585 = vmatpush2.msra.mxu0 0.0
    %3586 = vmatprep.mubr.f32.mxu0 0.0
    %3587 = vmatmul.mubr.f32.gmra.mxu0 %v3520
    %v3588 = vpop.f32.mrf.mxu0
    %v3589 = vadd.f32 0.0, %v3588
    %v3590 = vpop.f32.mrf.mxu0
    %3591 = vdwg.mxu0
    %3592 = vmatprep.subr.mxu0 0.0
    %3593 = vmatpush1.xpose.msra.mxu0 0.0
    %3594 = vmatprep.subr.mxu0 0.0
    %3595 = vmatpush1.xpose.msra.mxu0 0.0
    %3596 = vmatprep.subr.mxu0 0.0
    %3597 = vmatpush1.xpose.msra.mxu0 0.0
    %3598 = vmatprep.subr.mxu0 0.0
    %3599 = vmatpush1.xpose.msra.mxu0 0.0
    %3600 = vmatprep.subr.mxu0 0.0
    %3601 = vmatpush1.xpose.msra.mxu0 0.0
    %3602 = vmatprep.subr.mxu0 0.0
    %3603 = vmatpush1.xpose.msra.mxu0 0.0
    %3604 = vmatprep.subr.mxu0 0.0
    %3605 = vmatpush1.xpose.msra.mxu0 0.0
    %3606 = vmatprep.subr.mxu0 0.0
    %3607 = vmatpush1.xpose.msra.mxu0 0.0
    %3608 = vmatprep.subr.mxu0 0.0
    %3609 = vmatpush1.xpose.msra.mxu0 0.0
    %3610 = vmatprep.subr.mxu0 0.0
    %3611 = vmatpush1.xpose.msra.mxu0 0.0
    %3612 = vmatprep.subr.mxu0 0.0
    %3613 = vmatpush1.xpose.msra.mxu0 0.0
    %3614 = vmatprep.subr.mxu0 0.0
    %3615 = vmatpush1.xpose.msra.mxu0 0.0
    %3616 = vmatprep.subr.mxu0 0.0
    %3617 = vmatpush1.xpose.msra.mxu0 0.0
    %3618 = vmatprep.subr.mxu0 0.0
    %3619 = vmatpush1.xpose.msra.mxu0 0.0
    %3620 = vmatprep.subr.mxu0 0.0
    %3621 = vmatpush1.xpose.msra.mxu0 0.0
    %3622 = vmatprep.subr.mxu0 0.0
    %3623 = vmatpush1.xpose.msra.mxu0 %v2948
    %3624 = vmatprep.subr.mxu0 0.0
    %3625 = vmatpush2.xpose.msra.mxu0 0.0
    %3626 = vmatprep.subr.mxu0 0.0
    %3627 = vmatpush2.xpose.msra.mxu0 0.0
    %3628 = vmatprep.subr.mxu0 0.0
    %3629 = vmatpush2.xpose.msra.mxu0 0.0
    %3630 = vmatprep.subr.mxu0 0.0
    %3631 = vmatpush2.xpose.msra.mxu0 0.0
    %3632 = vmatprep.subr.mxu0 0.0
    %3633 = vmatpush2.xpose.msra.mxu0 0.0
    %3634 = vmatprep.subr.mxu0 0.0
    %3635 = vmatpush2.xpose.msra.mxu0 0.0
    %3636 = vmatprep.subr.mxu0 0.0
    %3637 = vmatpush2.xpose.msra.mxu0 0.0
    %3638 = vmatprep.subr.mxu0 0.0
    %3639 = vmatpush2.xpose.msra.mxu0 0.0
    %3640 = vmatprep.subr.mxu0 0.0
    %3641 = vmatpush2.xpose.msra.mxu0 0.0
    %3642 = vmatprep.subr.mxu0 0.0
    %3643 = vmatpush2.xpose.msra.mxu0 0.0
    %3644 = vmatprep.subr.mxu0 0.0
    %3645 = vmatpush2.xpose.msra.mxu0 0.0
    %3646 = vmatprep.subr.mxu0 0.0
    %3647 = vmatpush2.xpose.msra.mxu0 0.0
    %3648 = vmatprep.subr.mxu0 0.0
    %3649 = vmatpush2.xpose.msra.mxu0 0.0
    %3650 = vmatprep.subr.mxu0 0.0
    %3651 = vmatpush2.xpose.msra.mxu0 0.0
    %3652 = vmatprep.subr.mxu0 0.0
    %3653 = vmatpush2.xpose.msra.mxu0 0.0
    %3654 = vmatprep.subr.mxu0 0.0
    %3655 = vmatpush2.xpose.msra.mxu0 0.0
    %3656 = vmatprep.mubr.f32.mxu0 0.0
    %3657 = vmatmul.mubr.f32.gmra.mxu0 %v2776
    %v3658 = vpop.f32.mrf.mxu0
    %v3659 = vadd.f32 0.0, %v3658
    %v3660 = vpop.f32.mrf.mxu0
    %3661 = vdwg.mxu0
    %v3662 = vsel %vm3196, %v3659, -inf
    %3663 = vmax.xlane.f32.xlu0 %v3662
    %v3664 = vpop.xlane.xlu0 %3663
    %v3665 = vsub.f32 %v3659, %v3664
    %v3666 = vmul.f32 %v3665, 1.442695
    %v3667 = vpow.pop %v3666
    %v3668 = vsel %vm3196, %v3667, 0.0
    %3669 = vadd.xlane.f32.xlu0 %v3668
    %v3670 = vpop.xlane.xlu0 %3669
    %v3671 = vrcp.pop %v3670
    %v3672 = vmul.f32 %v3667, %v3671
    %v3673 = vadd.f32 %v3518, %v3672
    %v3675 = vsel %vm3196, %v3672, 0
    %3677 = vmatprep.subr.mxu0 0.0
    %3678 = vmatpush1.msra.mxu0 0.0
    %3679 = vmatprep.subr.mxu0 0.0
    %3680 = vmatpush1.msra.mxu0 0.0
    %3681 = vmatprep.subr.mxu0 0.0
    %3682 = vmatpush1.msra.mxu0 0.0
    %3683 = vmatprep.subr.mxu0 0.0
    %3684 = vmatpush1.msra.mxu0 0.0
    %3685 = vmatprep.subr.mxu0 0.0
    %3686 = vmatpush1.msra.mxu0 0.0
    %3687 = vmatprep.subr.mxu0 0.0
    %3688 = vmatpush1.msra.mxu0 0.0
    %3689 = vmatprep.subr.mxu0 0.0
    %3690 = vmatpush1.msra.mxu0 0.0
    %3691 = vmatprep.subr.mxu0 0.0
    %3692 = vmatpush1.msra.mxu0 0.0
    %3693 = vmatprep.subr.mxu0 0.0
    %3694 = vmatpush1.msra.mxu0 0.0
    %3695 = vmatprep.subr.mxu0 0.0
    %3696 = vmatpush1.msra.mxu0 0.0
    %3697 = vmatprep.subr.mxu0 0.0
    %3698 = vmatpush1.msra.mxu0 0.0
    %3699 = vmatprep.subr.mxu0 0.0
    %3700 = vmatpush1.msra.mxu0 0.0
    %3701 = vmatprep.subr.mxu0 0.0
    %3702 = vmatpush1.msra.mxu0 0.0
    %3703 = vmatprep.subr.mxu0 0.0
    %3704 = vmatpush1.msra.mxu0 0.0
    %3705 = vmatprep.subr.mxu0 0.0
    %3706 = vmatpush1.msra.mxu0 0.0
    %3707 = vmatprep.subr.mxu0 0.0
    %3708 = vmatpush1.msra.mxu0 %v3120
    %3709 = vmatprep.subr.mxu0 0.0
    %3710 = vmatpush2.msra.mxu0 0.0
    %3711 = vmatprep.subr.mxu0 0.0
    %3712 = vmatpush2.msra.mxu0 0.0
    %3713 = vmatprep.subr.mxu0 0.0
    %3714 = vmatpush2.msra.mxu0 0.0
    %3715 = vmatprep.subr.mxu0 0.0
    %3716 = vmatpush2.msra.mxu0 0.0
    %3717 = vmatprep.subr.mxu0 0.0
    %3718 = vmatpush2.msra.mxu0 0.0
    %3719 = vmatprep.subr.mxu0 0.0
    %3720 = vmatpush2.msra.mxu0 0.0
    %3721 = vmatprep.subr.mxu0 0.0
    %3722 = vmatpush2.msra.mxu0 0.0
    %3723 = vmatprep.subr.mxu0 0.0
    %3724 = vmatpush2.msra.mxu0 0.0
    %3725 = vmatprep.subr.mxu0 0.0
    %3726 = vmatpush2.msra.mxu0 0.0
    %3727 = vmatprep.subr.mxu0 0.0
    %3728 = vmatpush2.msra.mxu0 0.0
    %3729 = vmatprep.subr.mxu0 0.0
    %3730 = vmatpush2.msra.mxu0 0.0
    %3731 = vmatprep.subr.mxu0 0.0
    %3732 = vmatpush2.msra.mxu0 0.0
    %3733 = vmatprep.subr.mxu0 0.0
    %3734 = vmatpush2.msra.mxu0 0.0
    %3735 = vmatprep.subr.mxu0 0.0
    %3736 = vmatpush2.msra.mxu0 0.0
    %3737 = vmatprep.subr.mxu0 0.0
    %3738 = vmatpush2.msra.mxu0 0.0
    %3739 = vmatprep.subr.mxu0 0.0
    %3740 = vmatpush2.msra.mxu0 0.0
    %3741 = vmatprep.mubr.f32.mxu0 0.0
    %3742 = vmatmul.mubr.f32.gmra.mxu0 %v3675
    %v3743 = vpop.f32.mrf.mxu0
    %v3744 = vadd.f32 0.0, %v3743
    %v3745 = vpop.f32.mrf.mxu0
    %3746 = vdwg.mxu0
    %v3747 = vmul.f32 %v3673, 0.25
    %3748 = vmatprep.subr.mxu0 0.0
    %3749 = vmatpush1.xpose.msra.mxu0 0.0
    %3750 = vmatprep.subr.mxu0 0.0
    %3751 = vmatpush1.xpose.msra.mxu0 0.0
    %3752 = vmatprep.subr.mxu0 0.0
    %3753 = vmatpush1.xpose.msra.mxu0 0.0
    %3754 = vmatprep.subr.mxu0 0.0
    %3755 = vmatpush1.xpose.msra.mxu0 0.0
    %3756 = vmatprep.subr.mxu0 0.0
    %3757 = vmatpush1.xpose.msra.mxu0 0.0
    %3758 = vmatprep.subr.mxu0 0.0
    %3759 = vmatpush1.xpose.msra.mxu0 0.0
    %3760 = vmatprep.subr.mxu0 0.0
    %3761 = vmatpush1.xpose.msra.mxu0 0.0
    %3762 = vmatprep.subr.mxu0 0.0
    %3763 = vmatpush1.xpose.msra.mxu0 0.0
    %3764 = vmatprep.subr.mxu0 0.0
    %3765 = vmatpush1.xpose.msra.mxu0 0.0
    %3766 = vmatprep.subr.mxu0 0.0
    %3767 = vmatpush1.xpose.msra.mxu0 0.0
    %3768 = vmatprep.subr.mxu0 0.0
    %3769 = vmatpush1.xpose.msra.mxu0 0.0
    %3770 = vmatprep.subr.mxu0 0.0
    %3771 = vmatpush1.xpose.msra.mxu0 0.0
    %3772 = vmatprep.subr.mxu0 0.0
    %3773 = vmatpush1.xpose.msra.mxu0 0.0
    %3774 = vmatprep.subr.mxu0 0.0
    %3775 = vmatpush1.xpose.msra.mxu0 0.0
    %3776 = vmatprep.subr.mxu0 0.0
    %3777 = vmatpush1.xpose.msra.mxu0 0.0
    %3778 = vmatprep.subr.mxu0 0.0
    %3779 = vmatpush1.xpose.msra.mxu0 %v2864
    %3780 = vmatprep.subr.mxu0 0.0
    %3781 = vmatpush2.xpose.msra.mxu0 0.0
    %3782 = vmatprep.subr.mxu0 0.0
    %3783 = vmatpush2.xpose.msra.mxu0 0.0
    %3784 = vmatprep.subr.mxu0 0.0
    %3785 = vmatpush2.xpose.msra.mxu0 0.0
    %3786 = vmatprep.subr.mxu0 0.0
    %3787 = vmatpush2.xpose.msra.mxu0 0.0
    %3788 = vmatprep.subr.mxu0 0.0
    %3789 = vmatpush2.xpose.msra.mxu0 0.0
    %3790 = vmatprep.subr.mxu0 0.0
    %3791 = vmatpush2.xpose.msra.mxu0 0.0
    %3792 = vmatprep.subr.mxu0 0.0
    %3793 = vmatpush2.xpose.msra.mxu0 0.0
    %3794 = vmatprep.subr.mxu0 0.0
    %3795 = vmatpush2.xpose.msra.mxu0 0.0
    %3796 = vmatprep.subr.mxu0 0.0
    %3797 = vmatpush2.xpose.msra.mxu0 0.0
    %3798 = vmatprep.subr.mxu0 0.0
    %3799 = vmatpush2.xpose.msra.mxu0 0.0
    %3800 = vmatprep.subr.mxu0 0.0
    %3801 = vmatpush2.xpose.msra.mxu0 0.0
    %3802 = vmatprep.subr.mxu0 0.0
    %3803 = vmatpush2.xpose.msra.mxu0 0.0
    %3804 = vmatprep.subr.mxu0 0.0
    %3805 = vmatpush2.xpose.msra.mxu0 0.0
    %3806 = vmatprep.subr.mxu0 0.0
    %3807 = vmatpush2.xpose.msra.mxu0 0.0
    %3808 = vmatprep.subr.mxu0 0.0
    %3809 = vmatpush2.xpose.msra.mxu0 0.0
    %3810 = vmatprep.subr.mxu0 0.0
    %3811 = vmatpush2.xpose.msra.mxu0 0.0
    %3812 = vmatprep.mubr.f32.mxu0 0.0
    %3813 = vmatmul.mubr.f32.gmra.mxu0 %v2692
    %v3814 = vpop.f32.mrf.mxu0
    %v3815 = vadd.f32 0.0, %v3814
    %v3816 = vpop.f32.mrf.mxu0
    %3817 = vdwg.mxu0
    %v3818 = vsel %vm3196, %v3815, -inf
    %3819 = vmax.xlane.f32.xlu0 %v3818
    %v3820 = vpop.xlane.xlu0 %3819
    %v3821 = vsub.f32 %v3815, %v3820
    %v3822 = vmul.f32 %v3821, 1.442695
    %v3823 = vpow.pop %v3822
    %v3824 = vsel %vm3196, %v3823, 0.0
    %3825 = vadd.xlane.f32.xlu0 %v3824
    %v3826 = vpop.xlane.xlu0 %3825
    %v3827 = vrcp.pop %v3826
    %v3828 = vmul.f32 %v3823, %v3827
    %v3829 = vadd.f32 %v3828, 0.0
    %v3831 = vsel %vm3196, %v3828, 0
    %3833 = vmatprep.subr.mxu0 0.0
    %3834 = vmatpush1.msra.mxu0 0.0
    %3835 = vmatprep.subr.mxu0 0.0
    %3836 = vmatpush1.msra.mxu0 0.0
    %3837 = vmatprep.subr.mxu0 0.0
    %3838 = vmatpush1.msra.mxu0 0.0
    %3839 = vmatprep.subr.mxu0 0.0
    %3840 = vmatpush1.msra.mxu0 0.0
    %3841 = vmatprep.subr.mxu0 0.0
    %3842 = vmatpush1.msra.mxu0 0.0
    %3843 = vmatprep.subr.mxu0 0.0
    %3844 = vmatpush1.msra.mxu0 0.0
    %3845 = vmatprep.subr.mxu0 0.0
    %3846 = vmatpush1.msra.mxu0 0.0
    %3847 = vmatprep.subr.mxu0 0.0
    %3848 = vmatpush1.msra.mxu0 0.0
    %3849 = vmatprep.subr.mxu0 0.0
    %3850 = vmatpush1.msra.mxu0 0.0
    %3851 = vmatprep.subr.mxu0 0.0
    %3852 = vmatpush1.msra.mxu0 0.0
    %3853 = vmatprep.subr.mxu0 0.0
    %3854 = vmatpush1.msra.mxu0 0.0
    %3855 = vmatprep.subr.mxu0 0.0
    %3856 = vmatpush1.msra.mxu0 0.0
    %3857 = vmatprep.subr.mxu0 0.0
    %3858 = vmatpush1.msra.mxu0 0.0
    %3859 = vmatprep.subr.mxu0 0.0
    %3860 = vmatpush1.msra.mxu0 0.0
    %3861 = vmatprep.subr.mxu0 0.0
    %3862 = vmatpush1.msra.mxu0 0.0
    %3863 = vmatprep.subr.mxu0 0.0
    %3864 = vmatpush1.msra.mxu0 %v3036
    %3865 = vmatprep.subr.mxu0 0.0
    %3866 = vmatpush2.msra.mxu0 0.0
    %3867 = vmatprep.subr.mxu0 0.0
    %3868 = vmatpush2.msra.mxu0 0.0
    %3869 = vmatprep.subr.mxu0 0.0
    %3870 = vmatpush2.msra.mxu0 0.0
    %3871 = vmatprep.subr.mxu0 0.0
    %3872 = vmatpush2.msra.mxu0 0.0
    %3873 = vmatprep.subr.mxu0 0.0
    %3874 = vmatpush2.msra.mxu0 0.0
    %3875 = vmatprep.subr.mxu0 0.0
    %3876 = vmatpush2.msra.mxu0 0.0
    %3877 = vmatprep.subr.mxu0 0.0
    %3878 = vmatpush2.msra.mxu0 0.0
    %3879 = vmatprep.subr.mxu0 0.0
    %3880 = vmatpush2.msra.mxu0 0.0
    %3881 = vmatprep.subr.mxu0 0.0
    %3882 = vmatpush2.msra.mxu0 0.0
    %3883 = vmatprep.subr.mxu0 0.0
    %3884 = vmatpush2.msra.mxu0 0.0
    %3885 = vmatprep.subr.mxu0 0.0
    %3886 = vmatpush2.msra.mxu0 0.0
    %3887 = vmatprep.subr.mxu0 0.0
    %3888 = vmatpush2.msra.mxu0 0.0
    %3889 = vmatprep.subr.mxu0 0.0
    %3890 = vmatpush2.msra.mxu0 0.0
    %3891 = vmatprep.subr.mxu0 0.0
    %3892 = vmatpush2.msra.mxu0 0.0
    %3893 = vmatprep.subr.mxu0 0.0
    %3894 = vmatpush2.msra.mxu0 0.0
    %3895 = vmatprep.subr.mxu0 0.0
    %3896 = vmatpush2.msra.mxu0 0.0
    %3897 = vmatprep.mubr.f32.mxu0 0.0
    %3898 = vmatmul.mubr.f32.gmra.mxu0 %v3831
    %v3899 = vpop.f32.mrf.mxu0
    %v3900 = vadd.f32 0.0, %v3899
    %v3901 = vpop.f32.mrf.mxu0
    %3902 = vdwg.mxu0
    %3903 = vmatprep.subr.mxu0 0.0
    %3904 = vmatpush1.xpose.msra.mxu0 0.0
    %3905 = vmatprep.subr.mxu0 0.0
    %3906 = vmatpush1.xpose.msra.mxu0 0.0
    %3907 = vmatprep.subr.mxu0 0.0
    %3908 = vmatpush1.xpose.msra.mxu0 0.0
    %3909 = vmatprep.subr.mxu0 0.0
    %3910 = vmatpush1.xpose.msra.mxu0 0.0
    %3911 = vmatprep.subr.mxu0 0.0
    %3912 = vmatpush1.xpose.msra.mxu0 0.0
    %3913 = vmatprep.subr.mxu0 0.0
    %3914 = vmatpush1.xpose.msra.mxu0 0.0
    %3915 = vmatprep.subr.mxu0 0.0
    %3916 = vmatpush1.xpose.msra.mxu0 0.0
    %3917 = vmatprep.subr.mxu0 0.0
    %3918 = vmatpush1.xpose.msra.mxu0 0.0
    %3919 = vmatprep.subr.mxu0 0.0
    %3920 = vmatpush1.xpose.msra.mxu0 0.0
    %3921 = vmatprep.subr.mxu0 0.0
    %3922 = vmatpush1.xpose.msra.mxu0 0.0
    %3923 = vmatprep.subr.mxu0 0.0
    %3924 = vmatpush1.xpose.msra.mxu0 0.0
    %3925 = vmatprep.subr.mxu0 0.0
    %3926 = vmatpush1.xpose.msra.mxu0 0.0
    %3927 = vmatprep.subr.mxu0 0.0
    %3928 = vmatpush1.xpose.msra.mxu0 0.0
    %3929 = vmatprep.subr.mxu0 0.0
    %3930 = vmatpush1.xpose.msra.mxu0 0.0
    %3931 = vmatprep.subr.mxu0 0.0
    %3932 = vmatpush1.xpose.msra.mxu0 0.0
    %3933 = vmatprep.subr.mxu0 0.0
    %3934 = vmatpush1.xpose.msra.mxu0 %v2866
    %3935 = vmatprep.subr.mxu0 0.0
    %3936 = vmatpush2.xpose.msra.mxu0 0.0
    %3937 = vmatprep.subr.mxu0 0.0
    %3938 = vmatpush2.xpose.msra.mxu0 0.0
    %3939 = vmatprep.subr.mxu0 0.0
    %3940 = vmatpush2.xpose.msra.mxu0 0.0
    %3941 = vmatprep.subr.mxu0 0.0
    %3942 = vmatpush2.xpose.msra.mxu0 0.0
    %3943 = vmatprep.subr.mxu0 0.0
    %3944 = vmatpush2.xpose.msra.mxu0 0.0
    %3945 = vmatprep.subr.mxu0 0.0
    %3946 = vmatpush2.xpose.msra.mxu0 0.0
    %3947 = vmatprep.subr.mxu0 0.0
    %3948 = vmatpush2.xpose.msra.mxu0 0.0
    %3949 = vmatprep.subr.mxu0 0.0
    %3950 = vmatpush2.xpose.msra.mxu0 0.0
    %3951 = vmatprep.subr.mxu0 0.0
    %3952 = vmatpush2.xpose.msra.mxu0 0.0
    %3953 = vmatprep.subr.mxu0 0.0
    %3954 = vmatpush2.xpose.msra.mxu0 0.0
    %3955 = vmatprep.subr.mxu0 0.0
    %3956 = vmatpush2.xpose.msra.mxu0 0.0
    %3957 = vmatprep.subr.mxu0 0.0
    %3958 = vmatpush2.xpose.msra.mxu0 0.0
    %3959 = vmatprep.subr.mxu0 0.0
    %3960 = vmatpush2.xpose.msra.mxu0 0.0
    %3961 = vmatprep.subr.mxu0 0.0
    %3962 = vmatpush2.xpose.msra.mxu0 0.0
    %3963 = vmatprep.subr.mxu0 0.0
    %3964 = vmatpush2.xpose.msra.mxu0 0.0
    %3965 = vmatprep.subr.mxu0 0.0
    %3966 = vmatpush2.xpose.msra.mxu0 0.0
    %3967 = vmatprep.mubr.f32.mxu0 0.0
    %3968 = vmatmul.mubr.f32.gmra.mxu0 %v2694
    %v3969 = vpop.f32.mrf.mxu0
    %v3970 = vadd.f32 0.0, %v3969
    %v3971 = vpop.f32.mrf.mxu0
    %3972 = vdwg.mxu0
    %v3973 = vsel %vm3196, %v3970, -inf
    %3974 = vmax.xlane.f32.xlu0 %v3973
    %v3975 = vpop.xlane.xlu0 %3974
    %v3976 = vsub.f32 %v3970, %v3975
    %v3977 = vmul.f32 %v3976, 1.442695
    %v3978 = vpow.pop %v3977
    %v3979 = vsel %vm3196, %v3978, 0.0
    %3980 = vadd.xlane.f32.xlu0 %v3979
    %v3981 = vpop.xlane.xlu0 %3980
    %v3982 = vrcp.pop %v3981
    %v3983 = vmul.f32 %v3978, %v3982
    %v3984 = vadd.f32 %v3829, %v3983
    %v3986 = vsel %vm3196, %v3983, 0
    %3988 = vmatprep.subr.mxu0 0.0
    %3989 = vmatpush1.msra.mxu0 0.0
    %3990 = vmatprep.subr.mxu0 0.0
    %3991 = vmatpush1.msra.mxu0 0.0
    %3992 = vmatprep.subr.mxu0 0.0
    %3993 = vmatpush1.msra.mxu0 0.0
    %3994 = vmatprep.subr.mxu0 0.0
    %3995 = vmatpush1.msra.mxu0 0.0
    %3996 = vmatprep.subr.mxu0 0.0
    %3997 = vmatpush1.msra.mxu0 0.0
    %3998 = vmatprep.subr.mxu0 0.0
    %3999 = vmatpush1.msra.mxu0 0.0
    %4000 = vmatprep.subr.mxu0 0.0
    %4001 = vmatpush1.msra.mxu0 0.0
    %4002 = vmatprep.subr.mxu0 0.0
    %4003 = vmatpush1.msra.mxu0 0.0
    %4004 = vmatprep.subr.mxu0 0.0
    %4005 = vmatpush1.msra.mxu0 0.0
    %4006 = vmatprep.subr.mxu0 0.0
    %4007 = vmatpush1.msra.mxu0 0.0
    %4008 = vmatprep.subr.mxu0 0.0
    %4009 = vmatpush1.msra.mxu0 0.0
    %4010 = vmatprep.subr.mxu0 0.0
    %4011 = vmatpush1.msra.mxu0 0.0
    %4012 = vmatprep.subr.mxu0 0.0
    %4013 = vmatpush1.msra.mxu0 0.0
    %4014 = vmatprep.subr.mxu0 0.0
    %4015 = vmatpush1.msra.mxu0 0.0
    %4016 = vmatprep.subr.mxu0 0.0
    %4017 = vmatpush1.msra.mxu0 0.0
    %4018 = vmatprep.subr.mxu0 0.0
    %4019 = vmatpush1.msra.mxu0 %v3038
    %4020 = vmatprep.subr.mxu0 0.0
    %4021 = vmatpush2.msra.mxu0 0.0
    %4022 = vmatprep.subr.mxu0 0.0
    %4023 = vmatpush2.msra.mxu0 0.0
    %4024 = vmatprep.subr.mxu0 0.0
    %4025 = vmatpush2.msra.mxu0 0.0
    %4026 = vmatprep.subr.mxu0 0.0
    %4027 = vmatpush2.msra.mxu0 0.0
    %4028 = vmatprep.subr.mxu0 0.0
    %4029 = vmatpush2.msra.mxu0 0.0
    %4030 = vmatprep.subr.mxu0 0.0
    %4031 = vmatpush2.msra.mxu0 0.0
    %4032 = vmatprep.subr.mxu0 0.0
    %4033 = vmatpush2.msra.mxu0 0.0
    %4034 = vmatprep.subr.mxu0 0.0
    %4035 = vmatpush2.msra.mxu0 0.0
    %4036 = vmatprep.subr.mxu0 0.0
    %4037 = vmatpush2.msra.mxu0 0.0
    %4038 = vmatprep.subr.mxu0 0.0
    %4039 = vmatpush2.msra.mxu0 0.0
    %4040 = vmatprep.subr.mxu0 0.0
    %4041 = vmatpush2.msra.mxu0 0.0
    %4042 = vmatprep.subr.mxu0 0.0
    %4043 = vmatpush2.msra.mxu0 0.0
    %4044 = vmatprep.subr.mxu0 0.0
    %4045 = vmatpush2.msra.mxu0 0.0
    %4046 = vmatprep.subr.mxu0 0.0
    %4047 = vmatpush2.msra.mxu0 0.0
    %4048 = vmatprep.subr.mxu0 0.0
    %4049 = vmatpush2.msra.mxu0 0.0
    %4050 = vmatprep.subr.mxu0 0.0
    %4051 = vmatpush2.msra.mxu0 0.0
    %4052 = vmatprep.mubr.f32.mxu0 0.0
    %4053 = vmatmul.mubr.f32.gmra.mxu0 %v3986
    %v4054 = vpop.f32.mrf.mxu0
    %v4055 = vadd.f32 0.0, %v4054
    %v4056 = vpop.f32.mrf.mxu0
    %4057 = vdwg.mxu0
    %4058 = vmatprep.subr.mxu0 0.0
    %4059 = vmatpush1.xpose.msra.mxu0 0.0
    %4060 = vmatprep.subr.mxu0 0.0
    %4061 = vmatpush1.xpose.msra.mxu0 0.0
    %4062 = vmatprep.subr.mxu0 0.0
    %4063 = vmatpush1.xpose.msra.mxu0 0.0
    %4064 = vmatprep.subr.mxu0 0.0
    %4065 = vmatpush1.xpose.msra.mxu0 0.0
    %4066 = vmatprep.subr.mxu0 0.0
    %4067 = vmatpush1.xpose.msra.mxu0 0.0
    %4068 = vmatprep.subr.mxu0 0.0
    %4069 = vmatpush1.xpose.msra.mxu0 0.0
    %4070 = vmatprep.subr.mxu0 0.0
    %4071 = vmatpush1.xpose.msra.mxu0 0.0
    %4072 = vmatprep.subr.mxu0 0.0
    %4073 = vmatpush1.xpose.msra.mxu0 0.0
    %4074 = vmatprep.subr.mxu0 0.0
    %4075 = vmatpush1.xpose.msra.mxu0 0.0
    %4076 = vmatprep.subr.mxu0 0.0
    %4077 = vmatpush1.xpose.msra.mxu0 0.0
    %4078 = vmatprep.subr.mxu0 0.0
    %4079 = vmatpush1.xpose.msra.mxu0 0.0
    %4080 = vmatprep.subr.mxu0 0.0
    %4081 = vmatpush1.xpose.msra.mxu0 0.0
    %4082 = vmatprep.subr.mxu0 0.0
    %4083 = vmatpush1.xpose.msra.mxu0 0.0
    %4084 = vmatprep.subr.mxu0 0.0
    %4085 = vmatpush1.xpose.msra.mxu0 0.0
    %4086 = vmatprep.subr.mxu0 0.0
    %4087 = vmatpush1.xpose.msra.mxu0 0.0
    %4088 = vmatprep.subr.mxu0 0.0
    %4089 = vmatpush1.xpose.msra.mxu0 %v2950
    %4090 = vmatprep.subr.mxu0 0.0
    %4091 = vmatpush2.xpose.msra.mxu0 0.0
    %4092 = vmatprep.subr.mxu0 0.0
    %4093 = vmatpush2.xpose.msra.mxu0 0.0
    %4094 = vmatprep.subr.mxu0 0.0
    %4095 = vmatpush2.xpose.msra.mxu0 0.0
    %4096 = vmatprep.subr.mxu0 0.0
    %4097 = vmatpush2.xpose.msra.mxu0 0.0
    %4098 = vmatprep.subr.mxu0 0.0
    %4099 = vmatpush2.xpose.msra.mxu0 0.0
    %4100 = vmatprep.subr.mxu0 0.0
    %4101 = vmatpush2.xpose.msra.mxu0 0.0
    %4102 = vmatprep.subr.mxu0 0.0
    %4103 = vmatpush2.xpose.msra.mxu0 0.0
    %4104 = vmatprep.subr.mxu0 0.0
    %4105 = vmatpush2.xpose.msra.mxu0 0.0
    %4106 = vmatprep.subr.mxu0 0.0
    %4107 = vmatpush2.xpose.msra.mxu0 0.0
    %4108 = vmatprep.subr.mxu0 0.0
    %4109 = vmatpush2.xpose.msra.mxu0 0.0
    %4110 = vmatprep.subr.mxu0 0.0
    %4111 = vmatpush2.xpose.msra.mxu0 0.0
    %4112 = vmatprep.subr.mxu0 0.0
    %4113 = vmatpush2.xpose.msra.mxu0 0.0
    %4114 = vmatprep.subr.mxu0 0.0
    %4115 = vmatpush2.xpose.msra.mxu0 0.0
    %4116 = vmatprep.subr.mxu0 0.0
    %4117 = vmatpush2.xpose.msra.mxu0 0.0
    %4118 = vmatprep.subr.mxu0 0.0
    %4119 = vmatpush2.xpose.msra.mxu0 0.0
    %4120 = vmatprep.subr.mxu0 0.0
    %4121 = vmatpush2.xpose.msra.mxu0 0.0
    %4122 = vmatprep.mubr.f32.mxu0 0.0
    %4123 = vmatmul.mubr.f32.gmra.mxu0 %v2778
    %v4124 = vpop.f32.mrf.mxu0
    %v4125 = vadd.f32 0.0, %v4124
    %v4126 = vpop.f32.mrf.mxu0
    %4127 = vdwg.mxu0
    %v4128 = vsel %vm3196, %v4125, -inf
    %4129 = vmax.xlane.f32.xlu0 %v4128
    %v4130 = vpop.xlane.xlu0 %4129
    %v4131 = vsub.f32 %v4125, %v4130
    %v4132 = vmul.f32 %v4131, 1.442695
    %v4133 = vpow.pop %v4132
    %v4134 = vsel %vm3196, %v4133, 0.0
    %4135 = vadd.xlane.f32.xlu0 %v4134
    %v4136 = vpop.xlane.xlu0 %4135
    %v4137 = vrcp.pop %v4136
    %v4138 = vmul.f32 %v4133, %v4137
    %v4139 = vadd.f32 %v3984, %v4138
    %v4141 = vsel %vm3196, %v4138, 0
    %4143 = vmatprep.subr.mxu0 0.0
    %4144 = vmatpush1.msra.mxu0 0.0
    %4145 = vmatprep.subr.mxu0 0.0
    %4146 = vmatpush1.msra.mxu0 0.0
    %4147 = vmatprep.subr.mxu0 0.0
    %4148 = vmatpush1.msra.mxu0 0.0
    %4149 = vmatprep.subr.mxu0 0.0
    %4150 = vmatpush1.msra.mxu0 0.0
    %4151 = vmatprep.subr.mxu0 0.0
    %4152 = vmatpush1.msra.mxu0 0.0
    %4153 = vmatprep.subr.mxu0 0.0
    %4154 = vmatpush1.msra.mxu0 0.0
    %4155 = vmatprep.subr.mxu0 0.0
    %4156 = vmatpush1.msra.mxu0 0.0
    %4157 = vmatprep.subr.mxu0 0.0
    %4158 = vmatpush1.msra.mxu0 0.0
    %4159 = vmatprep.subr.mxu0 0.0
    %4160 = vmatpush1.msra.mxu0 0.0
    %4161 = vmatprep.subr.mxu0 0.0
    %4162 = vmatpush1.msra.mxu0 0.0
    %4163 = vmatprep.subr.mxu0 0.0
    %4164 = vmatpush1.msra.mxu0 0.0
    %4165 = vmatprep.subr.mxu0 0.0
    %4166 = vmatpush1.msra.mxu0 0.0
    %4167 = vmatprep.subr.mxu0 0.0
    %4168 = vmatpush1.msra.mxu0 0.0
    %4169 = vmatprep.subr.mxu0 0.0
    %4170 = vmatpush1.msra.mxu0 0.0
    %4171 = vmatprep.subr.mxu0 0.0
    %4172 = vmatpush1.msra.mxu0 0.0
    %4173 = vmatprep.subr.mxu0 0.0
    %4174 = vmatpush1.msra.mxu0 %v3122
    %4175 = vmatprep.subr.mxu0 0.0
    %4176 = vmatpush2.msra.mxu0 0.0
    %4177 = vmatprep.subr.mxu0 0.0
    %4178 = vmatpush2.msra.mxu0 0.0
    %4179 = vmatprep.subr.mxu0 0.0
    %4180 = vmatpush2.msra.mxu0 0.0
    %4181 = vmatprep.subr.mxu0 0.0
    %4182 = vmatpush2.msra.mxu0 0.0
    %4183 = vmatprep.subr.mxu0 0.0
    %4184 = vmatpush2.msra.mxu0 0.0
    %4185 = vmatprep.subr.mxu0 0.0
    %4186 = vmatpush2.msra.mxu0 0.0
    %4187 = vmatprep.subr.mxu0 0.0
    %4188 = vmatpush2.msra.mxu0 0.0
    %4189 = vmatprep.subr.mxu0 0.0
    %4190 = vmatpush2.msra.mxu0 0.0
    %4191 = vmatprep.subr.mxu0 0.0
    %4192 = vmatpush2.msra.mxu0 0.0
    %4193 = vmatprep.subr.mxu0 0.0
    %4194 = vmatpush2.msra.mxu0 0.0
    %4195 = vmatprep.subr.mxu0 0.0
    %4196 = vmatpush2.msra.mxu0 0.0
    %4197 = vmatprep.subr.mxu0 0.0
    %4198 = vmatpush2.msra.mxu0 0.0
    %4199 = vmatprep.subr.mxu0 0.0
    %4200 = vmatpush2.msra.mxu0 0.0
    %4201 = vmatprep.subr.mxu0 0.0
    %4202 = vmatpush2.msra.mxu0 0.0
    %4203 = vmatprep.subr.mxu0 0.0
    %4204 = vmatpush2.msra.mxu0 0.0
    %4205 = vmatprep.subr.mxu0 0.0
    %4206 = vmatpush2.msra.mxu0 0.0
    %4207 = vmatprep.mubr.f32.mxu0 0.0
    %4208 = vmatmul.mubr.f32.gmra.mxu0 %v4141
    %v4209 = vpop.f32.mrf.mxu0
    %v4210 = vadd.f32 0.0, %v4209
    %v4211 = vpop.f32.mrf.mxu0
    %4212 = vdwg.mxu0
    %4213 = vmatprep.subr.mxu0 0.0
    %4214 = vmatpush1.xpose.msra.mxu0 0.0
    %4215 = vmatprep.subr.mxu0 0.0
    %4216 = vmatpush1.xpose.msra.mxu0 0.0
    %4217 = vmatprep.subr.mxu0 0.0
    %4218 = vmatpush1.xpose.msra.mxu0 0.0
    %4219 = vmatprep.subr.mxu0 0.0
    %4220 = vmatpush1.xpose.msra.mxu0 0.0
    %4221 = vmatprep.subr.mxu0 0.0
    %4222 = vmatpush1.xpose.msra.mxu0 0.0
    %4223 = vmatprep.subr.mxu0 0.0
    %4224 = vmatpush1.xpose.msra.mxu0 0.0
    %4225 = vmatprep.subr.mxu0 0.0
    %4226 = vmatpush1.xpose.msra.mxu0 0.0
    %4227 = vmatprep.subr.mxu0 0.0
    %4228 = vmatpush1.xpose.msra.mxu0 0.0
    %4229 = vmatprep.subr.mxu0 0.0
    %4230 = vmatpush1.xpose.msra.mxu0 0.0
    %4231 = vmatprep.subr.mxu0 0.0
    %4232 = vmatpush1.xpose.msra.mxu0 0.0
    %4233 = vmatprep.subr.mxu0 0.0
    %4234 = vmatpush1.xpose.msra.mxu0 0.0
    %4235 = vmatprep.subr.mxu0 0.0
    %4236 = vmatpush1.xpose.msra.mxu0 0.0
    %4237 = vmatprep.subr.mxu0 0.0
    %4238 = vmatpush1.xpose.msra.mxu0 0.0
    %4239 = vmatprep.subr.mxu0 0.0
    %4240 = vmatpush1.xpose.msra.mxu0 0.0
    %4241 = vmatprep.subr.mxu0 0.0
    %4242 = vmatpush1.xpose.msra.mxu0 0.0
    %4243 = vmatprep.subr.mxu0 0.0
    %4244 = vmatpush1.xpose.msra.mxu0 %v2952
    %4245 = vmatprep.subr.mxu0 0.0
    %4246 = vmatpush2.xpose.msra.mxu0 0.0
    %4247 = vmatprep.subr.mxu0 0.0
    %4248 = vmatpush2.xpose.msra.mxu0 0.0
    %4249 = vmatprep.subr.mxu0 0.0
    %4250 = vmatpush2.xpose.msra.mxu0 0.0
    %4251 = vmatprep.subr.mxu0 0.0
    %4252 = vmatpush2.xpose.msra.mxu0 0.0
    %4253 = vmatprep.subr.mxu0 0.0
    %4254 = vmatpush2.xpose.msra.mxu0 0.0
    %4255 = vmatprep.subr.mxu0 0.0
    %4256 = vmatpush2.xpose.msra.mxu0 0.0
    %4257 = vmatprep.subr.mxu0 0.0
    %4258 = vmatpush2.xpose.msra.mxu0 0.0
    %4259 = vmatprep.subr.mxu0 0.0
    %4260 = vmatpush2.xpose.msra.mxu0 0.0
    %4261 = vmatprep.subr.mxu0 0.0
    %4262 = vmatpush2.xpose.msra.mxu0 0.0
    %4263 = vmatprep.subr.mxu0 0.0
    %4264 = vmatpush2.xpose.msra.mxu0 0.0
    %4265 = vmatprep.subr.mxu0 0.0
    %4266 = vmatpush2.xpose.msra.mxu0 0.0
    %4267 = vmatprep.subr.mxu0 0.0
    %4268 = vmatpush2.xpose.msra.mxu0 0.0
    %4269 = vmatprep.subr.mxu0 0.0
    %4270 = vmatpush2.xpose.msra.mxu0 0.0
    %4271 = vmatprep.subr.mxu0 0.0
    %4272 = vmatpush2.xpose.msra.mxu0 0.0
    %4273 = vmatprep.subr.mxu0 0.0
    %4274 = vmatpush2.xpose.msra.mxu0 0.0
    %4275 = vmatprep.subr.mxu0 0.0
    %4276 = vmatpush2.xpose.msra.mxu0 0.0
    %4277 = vmatprep.mubr.f32.mxu0 0.0
    %4278 = vmatmul.mubr.f32.gmra.mxu0 %v2780
    %v4279 = vpop.f32.mrf.mxu0
    %v4280 = vadd.f32 0.0, %v4279
    %v4281 = vpop.f32.mrf.mxu0
    %4282 = vdwg.mxu0
    %v4283 = vsel %vm3196, %v4280, -inf
    %4284 = vmax.xlane.f32.xlu0 %v4283
    %v4285 = vpop.xlane.xlu0 %4284
    %v4286 = vsub.f32 %v4280, %v4285
    %v4287 = vmul.f32 %v4286, 1.442695
    %v4288 = vpow.pop %v4287
    %v4289 = vsel %vm3196, %v4288, 0.0
    %4290 = vadd.xlane.f32.xlu0 %v4289
    %v4291 = vpop.xlane.xlu0 %4290
    %v4292 = vrcp.pop %v4291
    %v4293 = vmul.f32 %v4288, %v4292
    %v4294 = vadd.f32 %v4139, %v4293
    %v4296 = vsel %vm3196, %v4293, 0
    %4298 = vmatprep.subr.mxu0 0.0
    %4299 = vmatpush1.msra.mxu0 0.0
    %4300 = vmatprep.subr.mxu0 0.0
    %4301 = vmatpush1.msra.mxu0 0.0
    %4302 = vmatprep.subr.mxu0 0.0
    %4303 = vmatpush1.msra.mxu0 0.0
    %4304 = vmatprep.subr.mxu0 0.0
    %4305 = vmatpush1.msra.mxu0 0.0
    %4306 = vmatprep.subr.mxu0 0.0
    %4307 = vmatpush1.msra.mxu0 0.0
    %4308 = vmatprep.subr.mxu0 0.0
    %4309 = vmatpush1.msra.mxu0 0.0
    %4310 = vmatprep.subr.mxu0 0.0
    %4311 = vmatpush1.msra.mxu0 0.0
    %4312 = vmatprep.subr.mxu0 0.0
    %4313 = vmatpush1.msra.mxu0 0.0
    %4314 = vmatprep.subr.mxu0 0.0
    %4315 = vmatpush1.msra.mxu0 0.0
    %4316 = vmatprep.subr.mxu0 0.0
    %4317 = vmatpush1.msra.mxu0 0.0
    %4318 = vmatprep.subr.mxu0 0.0
    %4319 = vmatpush1.msra.mxu0 0.0
    %4320 = vmatprep.subr.mxu0 0.0
    %4321 = vmatpush1.msra.mxu0 0.0
    %4322 = vmatprep.subr.mxu0 0.0
    %4323 = vmatpush1.msra.mxu0 0.0
    %4324 = vmatprep.subr.mxu0 0.0
    %4325 = vmatpush1.msra.mxu0 0.0
    %4326 = vmatprep.subr.mxu0 0.0
    %4327 = vmatpush1.msra.mxu0 0.0
    %4328 = vmatprep.subr.mxu0 0.0
    %4329 = vmatpush1.msra.mxu0 %v3124
    %4330 = vmatprep.subr.mxu0 0.0
    %4331 = vmatpush2.msra.mxu0 0.0
    %4332 = vmatprep.subr.mxu0 0.0
    %4333 = vmatpush2.msra.mxu0 0.0
    %4334 = vmatprep.subr.mxu0 0.0
    %4335 = vmatpush2.msra.mxu0 0.0
    %4336 = vmatprep.subr.mxu0 0.0
    %4337 = vmatpush2.msra.mxu0 0.0
    %4338 = vmatprep.subr.mxu0 0.0
    %4339 = vmatpush2.msra.mxu0 0.0
    %4340 = vmatprep.subr.mxu0 0.0
    %4341 = vmatpush2.msra.mxu0 0.0
    %4342 = vmatprep.subr.mxu0 0.0
    %4343 = vmatpush2.msra.mxu0 0.0
    %4344 = vmatprep.subr.mxu0 0.0
    %4345 = vmatpush2.msra.mxu0 0.0
    %4346 = vmatprep.subr.mxu0 0.0
    %4347 = vmatpush2.msra.mxu0 0.0
    %4348 = vmatprep.subr.mxu0 0.0
    %4349 = vmatpush2.msra.mxu0 0.0
    %4350 = vmatprep.subr.mxu0 0.0
    %4351 = vmatpush2.msra.mxu0 0.0
    %4352 = vmatprep.subr.mxu0 0.0
    %4353 = vmatpush2.msra.mxu0 0.0
    %4354 = vmatprep.subr.mxu0 0.0
    %4355 = vmatpush2.msra.mxu0 0.0
    %4356 = vmatprep.subr.mxu0 0.0
    %4357 = vmatpush2.msra.mxu0 0.0
    %4358 = vmatprep.subr.mxu0 0.0
    %4359 = vmatpush2.msra.mxu0 0.0
    %4360 = vmatprep.subr.mxu0 0.0
    %4361 = vmatpush2.msra.mxu0 0.0
    %4362 = vmatprep.mubr.f32.mxu0 0.0
    %4363 = vmatmul.mubr.f32.gmra.mxu0 %v4296
    %v4364 = vpop.f32.mrf.mxu0
    %v4365 = vadd.f32 0.0, %v4364
    %v4366 = vpop.f32.mrf.mxu0
    %4367 = vdwg.mxu0
    %v4368 = vmul.f32 %v4294, 0.25
    %4369 = vst.msk [vmem:[#allocation15] sm:$0xff] %vm3196, %v3747
    %4370 = vst.msk [vmem:[#allocation15 + $0x8] sm:$0xff] %vm3196, %v4368
    %v4371 = vpack.c.bf16 %v3900, %v3279
    %v4372 = vpack.c.bf16 %v4055, %v3434
    %v4373 = vpack.c.bf16 %v4210, %v3589
    %v4374 = vpack.c.bf16 %v4365, %v3744
    %v4375 = vld [vmem:[#allocation11] sm:$0xff]
    %v4376 = vld [vmem:[#allocation11 + $0x8] sm:$0xff]
    %v4377 = vld [vmem:[#allocation11 + $0x10] sm:$0xff]
    %v4378 = vld [vmem:[#allocation11 + $0x18] sm:$0xff]
    %v4379 = vld [vmem:[#allocation11 + $0x20] sm:$0xff]
    %v4380 = vld [vmem:[#allocation11 + $0x28] sm:$0xff]
    %v4381 = vld [vmem:[#allocation11 + $0x30] sm:$0xff]
    %v4382 = vld [vmem:[#allocation11 + $0x38] sm:$0xff]
    %v4383 = vld [vmem:[#allocation11 + $0x40] sm:$0xff]
    %v4384 = vld [vmem:[#allocation11 + $0x48] sm:$0xff]
    %v4385 = vld [vmem:[#allocation11 + $0x50] sm:$0xff]
    %v4386 = vld [vmem:[#allocation11 + $0x58] sm:$0xff]
    %v4387 = vld [vmem:[#allocation11 + $0x60] sm:$0xff]
    %v4388 = vld [vmem:[#allocation11 + $0x68] sm:$0xff]
    %v4389 = vld [vmem:[#allocation11 + $0x70] sm:$0xff]
    %v4390 = vld [vmem:[#allocation11 + $0x78] sm:$0xff]
    %v4391 = vld [vmem:[#allocation11 + $0x80] sm:$0xff]
    %v4392 = vld [vmem:[#allocation11 + $0x88] sm:$0xff]
    %v4393 = vld [vmem:[#allocation11 + $0x90] sm:$0xff]
    %v4394 = vld [vmem:[#allocation11 + $0x98] sm:$0xff]
    %v4395 = vld [vmem:[#allocation11 + $0xa0] sm:$0xff]
    %v4396 = vld [vmem:[#allocation11 + $0xa8] sm:$0xff]
    %v4397 = vld [vmem:[#allocation11 + $0xb0] sm:$0xff]
    %v4398 = vld [vmem:[#allocation11 + $0xb8] sm:$0xff]
    %v4399 = vld [vmem:[#allocation11 + $0xc0] sm:$0xff]
    %v4400 = vld [vmem:[#allocation11 + $0xc8] sm:$0xff]
    %v4401 = vld [vmem:[#allocation11 + $0xd0] sm:$0xff]
    %v4402 = vld [vmem:[#allocation11 + $0xd8] sm:$0xff]
    %v4403 = vld [vmem:[#allocation11 + $0xe0] sm:$0xff]
    %v4404 = vld [vmem:[#allocation11 + $0xe8] sm:$0xff]
    %v4405 = vld [vmem:[#allocation11 + $0xf0] sm:$0xff]
    %v4406 = vld [vmem:[#allocation11 + $0xf8] sm:$0xff]
    %v4407 = vld [vmem:[#allocation11 + $0x100] sm:$0xff]
    %v4408 = vld [vmem:[#allocation11 + $0x108] sm:$0xff]
    %v4409 = vld [vmem:[#allocation11 + $0x110] sm:$0xff]
    %v4410 = vld [vmem:[#allocation11 + $0x118] sm:$0xff]
    %v4411 = vld [vmem:[#allocation11 + $0x120] sm:$0xff]
    %v4412 = vld [vmem:[#allocation11 + $0x128] sm:$0xff]
    %v4413 = vld [vmem:[#allocation11 + $0x130] sm:$0xff]
    %v4414 = vld [vmem:[#allocation11 + $0x138] sm:$0xff]
    %v4415 = vld [vmem:[#allocation11 + $0x140] sm:$0xff]
    %v4416 = vld [vmem:[#allocation11 + $0x148] sm:$0xff]
    %v4417 = vld [vmem:[#allocation11 + $0x150] sm:$0xff]
    %v4418 = vld [vmem:[#allocation11 + $0x158] sm:$0xff]
    %v4419 = vld [vmem:[#allocation11 + $0x160] sm:$0xff]
    %v4420 = vld [vmem:[#allocation11 + $0x168] sm:$0xff]
    %v4421 = vld [vmem:[#allocation11 + $0x170] sm:$0xff]
    %v4422 = vld [vmem:[#allocation11 + $0x178] sm:$0xff]
    %v4423 = vld [vmem:[#allocation11 + $0x180] sm:$0xff]
    %v4424 = vld [vmem:[#allocation11 + $0x188] sm:$0xff]
    %v4425 = vld [vmem:[#allocation11 + $0x190] sm:$0xff]
    %v4426 = vld [vmem:[#allocation11 + $0x198] sm:$0xff]
    %v4427 = vld [vmem:[#allocation11 + $0x1a0] sm:$0xff]
    %v4428 = vld [vmem:[#allocation11 + $0x1a8] sm:$0xff]
    %v4429 = vld [vmem:[#allocation11 + $0x1b0] sm:$0xff]
    %v4430 = vld [vmem:[#allocation11 + $0x1b8] sm:$0xff]
    %v4431 = vld [vmem:[#allocation11 + $0x1c0] sm:$0xff]
    %v4432 = vld [vmem:[#allocation11 + $0x1c8] sm:$0xff]
    %v4433 = vld [vmem:[#allocation11 + $0x1d0] sm:$0xff]
    %v4434 = vld [vmem:[#allocation11 + $0x1d8] sm:$0xff]
    %v4435 = vld [vmem:[#allocation11 + $0x1e0] sm:$0xff]
    %v4436 = vld [vmem:[#allocation11 + $0x1e8] sm:$0xff]
    %v4437 = vld [vmem:[#allocation11 + $0x1f0] sm:$0xff]
    %v4438 = vld [vmem:[#allocation11 + $0x1f8] sm:$0xff]
    %v4439 = vld [vmem:[#allocation11 + $0x200] sm:$0xff]
    %v4440 = vld [vmem:[#allocation11 + $0x208] sm:$0xff]
    %v4441 = vld [vmem:[#allocation11 + $0x210] sm:$0xff]
    %v4442 = vld [vmem:[#allocation11 + $0x218] sm:$0xff]
    %v4443 = vld [vmem:[#allocation11 + $0x220] sm:$0xff]
    %v4444 = vld [vmem:[#allocation11 + $0x228] sm:$0xff]
    %v4445 = vld [vmem:[#allocation11 + $0x230] sm:$0xff]
    %v4446 = vld [vmem:[#allocation11 + $0x238] sm:$0xff]
    %v4447 = vld [vmem:[#allocation11 + $0x240] sm:$0xff]
    %v4448 = vld [vmem:[#allocation11 + $0x248] sm:$0xff]
    %v4449 = vld [vmem:[#allocation11 + $0x250] sm:$0xff]
    %v4450 = vld [vmem:[#allocation11 + $0x258] sm:$0xff]
    %v4451 = vld [vmem:[#allocation11 + $0x260] sm:$0xff]
    %v4452 = vld [vmem:[#allocation11 + $0x268] sm:$0xff]
    %v4453 = vld [vmem:[#allocation11 + $0x270] sm:$0xff]
    %v4454 = vld [vmem:[#allocation11 + $0x278] sm:$0xff]
    %v4455 = vld [vmem:[#allocation11 + $0x280] sm:$0xff]
    %v4456 = vld [vmem:[#allocation11 + $0x288] sm:$0xff]
    %v4457 = vld [vmem:[#allocation11 + $0x290] sm:$0xff]
    %v4458 = vld [vmem:[#allocation11 + $0x298] sm:$0xff]
    %v4459 = vld [vmem:[#allocation11 + $0x2a0] sm:$0xff]
    %v4460 = vld [vmem:[#allocation11 + $0x2a8] sm:$0xff]
    %v4461 = vld [vmem:[#allocation11 + $0x2b0] sm:$0xff]
    %v4462 = vld [vmem:[#allocation11 + $0x2b8] sm:$0xff]
    %v4463 = vld [vmem:[#allocation11 + $0x2c0] sm:$0xff]
    %v4464 = vld [vmem:[#allocation11 + $0x2c8] sm:$0xff]
    %v4465 = vld [vmem:[#allocation11 + $0x2d0] sm:$0xff]
    %v4466 = vld [vmem:[#allocation11 + $0x2d8] sm:$0xff]
    %v4467 = vld [vmem:[#allocation11 + $0x2e0] sm:$0xff]
    %v4468 = vld [vmem:[#allocation11 + $0x2e8] sm:$0xff]
    %v4469 = vld [vmem:[#allocation11 + $0x2f0] sm:$0xff]
    %v4470 = vld [vmem:[#allocation11 + $0x2f8] sm:$0xff]
    %v4471 = vld [vmem:[#allocation11 + $0x300] sm:$0xff]
    %v4472 = vld [vmem:[#allocation11 + $0x308] sm:$0xff]
    %v4473 = vld [vmem:[#allocation11 + $0x310] sm:$0xff]
    %v4474 = vld [vmem:[#allocation11 + $0x318] sm:$0xff]
    %v4475 = vld [vmem:[#allocation11 + $0x320] sm:$0xff]
    %v4476 = vld [vmem:[#allocation11 + $0x328] sm:$0xff]
    %v4477 = vld [vmem:[#allocation11 + $0x330] sm:$0xff]
    %v4478 = vld [vmem:[#allocation11 + $0x338] sm:$0xff]
    %v4479 = vld [vmem:[#allocation11 + $0x340] sm:$0xff]
    %v4480 = vld [vmem:[#allocation11 + $0x348] sm:$0xff]
    %v4481 = vld [vmem:[#allocation11 + $0x350] sm:$0xff]
    %v4482 = vld [vmem:[#allocation11 + $0x358] sm:$0xff]
    %v4483 = vld [vmem:[#allocation11 + $0x360] sm:$0xff]
    %v4484 = vld [vmem:[#allocation11 + $0x368] sm:$0xff]
    %v4485 = vld [vmem:[#allocation11 + $0x370] sm:$0xff]
    %v4486 = vld [vmem:[#allocation11 + $0x378] sm:$0xff]
    %v4487 = vld [vmem:[#allocation11 + $0x380] sm:$0xff]
    %v4488 = vld [vmem:[#allocation11 + $0x388] sm:$0xff]
    %v4489 = vld [vmem:[#allocation11 + $0x390] sm:$0xff]
    %v4490 = vld [vmem:[#allocation11 + $0x398] sm:$0xff]
    %v4491 = vld [vmem:[#allocation11 + $0x3a0] sm:$0xff]
    %v4492 = vld [vmem:[#allocation11 + $0x3a8] sm:$0xff]
    %v4493 = vld [vmem:[#allocation11 + $0x3b0] sm:$0xff]
    %v4494 = vld [vmem:[#allocation11 + $0x3b8] sm:$0xff]
    %v4495 = vld [vmem:[#allocation11 + $0x3c0] sm:$0xff]
    %v4496 = vld [vmem:[#allocation11 + $0x3c8] sm:$0xff]
    %v4497 = vld [vmem:[#allocation11 + $0x3d0] sm:$0xff]
    %v4498 = vld [vmem:[#allocation11 + $0x3d8] sm:$0xff]
    %v4499 = vld [vmem:[#allocation11 + $0x3e0] sm:$0xff]
    %v4500 = vld [vmem:[#allocation11 + $0x3e8] sm:$0xff]
    %v4501 = vld [vmem:[#allocation11 + $0x3f0] sm:$0xff]
    %v4502 = vld [vmem:[#allocation11 + $0x3f8] sm:$0xff]
    %v4503 = vld [vmem:[#allocation13] sm:$0xf]
    %v4505 = vlaneseq
    %v4506 = vshrl.u32 %v4505, 7
    %v4507 = vsub.s32 0, %v4506
    %v4508 = vrot.slane %v4503, %v4507
    %v4509 = vlaneseq
    %v4510 = vshrl.u32 %v4509, 7
    %v4511 = vsub.s32 1, %v4510
    %v4512 = vrot.slane %v4503, %v4511
    %v4513 = vlaneseq
    %v4514 = vshrl.u32 %v4513, 7
    %v4515 = vsub.s32 2, %v4514
    %v4516 = vrot.slane %v4503, %v4515
    %v4517 = vlaneseq
    %v4518 = vshrl.u32 %v4517, 7
    %v4519 = vsub.s32 3, %v4518
    %v4520 = vrot.slane %v4503, %v4519
    %v4653 = vunpack.c.l.b16 %v4375
    %v4654 = vunpack.c.h.b16 %v4375
    %v4655 = vunpack.c.l.b16 %v4376
    %v4656 = vunpack.c.h.b16 %v4376
    %v4657 = vunpack.c.l.b16 %v4377
    %v4658 = vunpack.c.h.b16 %v4377
    %v4659 = vunpack.c.l.b16 %v4378
    %v4660 = vunpack.c.h.b16 %v4378
    %v4661 = vunpack.c.l.b16 %v4379
    %v4662 = vunpack.c.h.b16 %v4379
    %v4663 = vunpack.c.l.b16 %v4380
    %v4664 = vunpack.c.h.b16 %v4380
    %v4665 = vunpack.c.l.b16 %v4381
    %v4666 = vunpack.c.h.b16 %v4381
    %v4667 = vunpack.c.l.b16 %v4382
    %v4668 = vunpack.c.h.b16 %v4382
    %v4669 = vunpack.c.l.b16 %v4383
    %v4670 = vunpack.c.h.b16 %v4383
    %v4671 = vunpack.c.l.b16 %v4384
    %v4672 = vunpack.c.h.b16 %v4384
    %v4673 = vunpack.c.l.b16 %v4385
    %v4674 = vunpack.c.h.b16 %v4385
    %v4675 = vunpack.c.l.b16 %v4386
    %v4676 = vunpack.c.h.b16 %v4386
    %v4677 = vunpack.c.l.b16 %v4387
    %v4678 = vunpack.c.h.b16 %v4387
    %v4679 = vunpack.c.l.b16 %v4388
    %v4680 = vunpack.c.h.b16 %v4388
    %v4681 = vunpack.c.l.b16 %v4389
    %v4682 = vunpack.c.h.b16 %v4389
    %v4683 = vunpack.c.l.b16 %v4390
    %v4684 = vunpack.c.h.b16 %v4390
    %v4685 = vunpack.c.l.b16 %v4391
    %v4686 = vunpack.c.h.b16 %v4391
    %v4687 = vunpack.c.l.b16 %v4392
    %v4688 = vunpack.c.h.b16 %v4392
    %v4689 = vunpack.c.l.b16 %v4393
    %v4690 = vunpack.c.h.b16 %v4393
    %v4691 = vunpack.c.l.b16 %v4394
    %v4692 = vunpack.c.h.b16 %v4394
    %v4693 = vunpack.c.l.b16 %v4395
    %v4694 = vunpack.c.h.b16 %v4395
    %v4695 = vunpack.c.l.b16 %v4396
    %v4696 = vunpack.c.h.b16 %v4396
    %v4697 = vunpack.c.l.b16 %v4397
    %v4698 = vunpack.c.h.b16 %v4397
    %v4699 = vunpack.c.l.b16 %v4398
    %v4700 = vunpack.c.h.b16 %v4398
    %v4701 = vunpack.c.l.b16 %v4399
    %v4702 = vunpack.c.h.b16 %v4399
    %v4703 = vunpack.c.l.b16 %v4400
    %v4704 = vunpack.c.h.b16 %v4400
    %v4705 = vunpack.c.l.b16 %v4401
    %v4706 = vunpack.c.h.b16 %v4401
    %v4707 = vunpack.c.l.b16 %v4402
    %v4708 = vunpack.c.h.b16 %v4402
    %v4709 = vunpack.c.l.b16 %v4403
    %v4710 = vunpack.c.h.b16 %v4403
    %v4711 = vunpack.c.l.b16 %v4404
    %v4712 = vunpack.c.h.b16 %v4404
    %v4713 = vunpack.c.l.b16 %v4405
    %v4714 = vunpack.c.h.b16 %v4405
    %v4715 = vunpack.c.l.b16 %v4406
    %v4716 = vunpack.c.h.b16 %v4406
    %v4717 = vunpack.c.l.b16 %v4407
    %v4718 = vunpack.c.h.b16 %v4407
    %v4719 = vunpack.c.l.b16 %v4408
    %v4720 = vunpack.c.h.b16 %v4408
    %v4721 = vunpack.c.l.b16 %v4409
    %v4722 = vunpack.c.h.b16 %v4409
    %v4723 = vunpack.c.l.b16 %v4410
    %v4724 = vunpack.c.h.b16 %v4410
    %v4725 = vunpack.c.l.b16 %v4411
    %v4726 = vunpack.c.h.b16 %v4411
    %v4727 = vunpack.c.l.b16 %v4412
    %v4728 = vunpack.c.h.b16 %v4412
    %v4729 = vunpack.c.l.b16 %v4413
    %v4730 = vunpack.c.h.b16 %v4413
    %v4731 = vunpack.c.l.b16 %v4414
    %v4732 = vunpack.c.h.b16 %v4414
    %v4733 = vunpack.c.l.b16 %v4415
    %v4734 = vunpack.c.h.b16 %v4415
    %v4735 = vunpack.c.l.b16 %v4416
    %v4736 = vunpack.c.h.b16 %v4416
    %v4737 = vunpack.c.l.b16 %v4417
    %v4738 = vunpack.c.h.b16 %v4417
    %v4739 = vunpack.c.l.b16 %v4418
    %v4740 = vunpack.c.h.b16 %v4418
    %v4741 = vunpack.c.l.b16 %v4419
    %v4742 = vunpack.c.h.b16 %v4419
    %v4743 = vunpack.c.l.b16 %v4420
    %v4744 = vunpack.c.h.b16 %v4420
    %v4745 = vunpack.c.l.b16 %v4421
    %v4746 = vunpack.c.h.b16 %v4421
    %v4747 = vunpack.c.l.b16 %v4422
    %v4748 = vunpack.c.h.b16 %v4422
    %v4749 = vunpack.c.l.b16 %v4423
    %v4750 = vunpack.c.h.b16 %v4423
    %v4751 = vunpack.c.l.b16 %v4424
    %v4752 = vunpack.c.h.b16 %v4424
    %v4753 = vunpack.c.l.b16 %v4425
    %v4754 = vunpack.c.h.b16 %v4425
    %v4755 = vunpack.c.l.b16 %v4426
    %v4756 = vunpack.c.h.b16 %v4426
    %v4757 = vunpack.c.l.b16 %v4427
    %v4758 = vunpack.c.h.b16 %v4427
    %v4759 = vunpack.c.l.b16 %v4428
    %v4760 = vunpack.c.h.b16 %v4428
    %v4761 = vunpack.c.l.b16 %v4429
    %v4762 = vunpack.c.h.b16 %v4429
    %v4763 = vunpack.c.l.b16 %v4430
    %v4764 = vunpack.c.h.b16 %v4430
    %v4765 = vunpack.c.l.b16 %v4431
    %v4766 = vunpack.c.h.b16 %v4431
    %v4767 = vunpack.c.l.b16 %v4432
    %v4768 = vunpack.c.h.b16 %v4432
    %v4769 = vunpack.c.l.b16 %v4433
    %v4770 = vunpack.c.h.b16 %v4433
    %v4771 = vunpack.c.l.b16 %v4434
    %v4772 = vunpack.c.h.b16 %v4434
    %v4773 = vunpack.c.l.b16 %v4435
    %v4774 = vunpack.c.h.b16 %v4435
    %v4775 = vunpack.c.l.b16 %v4436
    %v4776 = vunpack.c.h.b16 %v4436
    %v4777 = vunpack.c.l.b16 %v4437
    %v4778 = vunpack.c.h.b16 %v4437
    %v4779 = vunpack.c.l.b16 %v4438
    %v4780 = vunpack.c.h.b16 %v4438
    %v4781 = vunpack.c.l.b16 %v4439
    %v4782 = vunpack.c.h.b16 %v4439
    %v4783 = vunpack.c.l.b16 %v4440
    %v4784 = vunpack.c.h.b16 %v4440
    %v4785 = vunpack.c.l.b16 %v4441
    %v4786 = vunpack.c.h.b16 %v4441
    %v4787 = vunpack.c.l.b16 %v4442
    %v4788 = vunpack.c.h.b16 %v4442
    %v4789 = vunpack.c.l.b16 %v4443
    %v4790 = vunpack.c.h.b16 %v4443
    %v4791 = vunpack.c.l.b16 %v4444
    %v4792 = vunpack.c.h.b16 %v4444
    %v4793 = vunpack.c.l.b16 %v4445
    %v4794 = vunpack.c.h.b16 %v4445
    %v4795 = vunpack.c.l.b16 %v4446
    %v4796 = vunpack.c.h.b16 %v4446
    %v4797 = vunpack.c.l.b16 %v4447
    %v4798 = vunpack.c.h.b16 %v4447
    %v4799 = vunpack.c.l.b16 %v4448
    %v4800 = vunpack.c.h.b16 %v4448
    %v4801 = vunpack.c.l.b16 %v4449
    %v4802 = vunpack.c.h.b16 %v4449
    %v4803 = vunpack.c.l.b16 %v4450
    %v4804 = vunpack.c.h.b16 %v4450
    %v4805 = vunpack.c.l.b16 %v4451
    %v4806 = vunpack.c.h.b16 %v4451
    %v4807 = vunpack.c.l.b16 %v4452
    %v4808 = vunpack.c.h.b16 %v4452
    %v4809 = vunpack.c.l.b16 %v4453
    %v4810 = vunpack.c.h.b16 %v4453
    %v4811 = vunpack.c.l.b16 %v4454
    %v4812 = vunpack.c.h.b16 %v4454
    %v4813 = vunpack.c.l.b16 %v4455
    %v4814 = vunpack.c.h.b16 %v4455
    %v4815 = vunpack.c.l.b16 %v4456
    %v4816 = vunpack.c.h.b16 %v4456
    %v4817 = vunpack.c.l.b16 %v4457
    %v4818 = vunpack.c.h.b16 %v4457
    %v4819 = vunpack.c.l.b16 %v4458
    %v4820 = vunpack.c.h.b16 %v4458
    %v4821 = vunpack.c.l.b16 %v4459
    %v4822 = vunpack.c.h.b16 %v4459
    %v4823 = vunpack.c.l.b16 %v4460
    %v4824 = vunpack.c.h.b16 %v4460
    %v4825 = vunpack.c.l.b16 %v4461
    %v4826 = vunpack.c.h.b16 %v4461
    %v4827 = vunpack.c.l.b16 %v4462
    %v4828 = vunpack.c.h.b16 %v4462
    %v4829 = vunpack.c.l.b16 %v4463
    %v4830 = vunpack.c.h.b16 %v4463
    %v4831 = vunpack.c.l.b16 %v4464
    %v4832 = vunpack.c.h.b16 %v4464
    %v4833 = vunpack.c.l.b16 %v4465
    %v4834 = vunpack.c.h.b16 %v4465
    %v4835 = vunpack.c.l.b16 %v4466
    %v4836 = vunpack.c.h.b16 %v4466
    %v4837 = vunpack.c.l.b16 %v4467
    %v4838 = vunpack.c.h.b16 %v4467
    %v4839 = vunpack.c.l.b16 %v4468
    %v4840 = vunpack.c.h.b16 %v4468
    %v4841 = vunpack.c.l.b16 %v4469
    %v4842 = vunpack.c.h.b16 %v4469
    %v4843 = vunpack.c.l.b16 %v4470
    %v4844 = vunpack.c.h.b16 %v4470
    %v4845 = vunpack.c.l.b16 %v4471
    %v4846 = vunpack.c.h.b16 %v4471
    %v4847 = vunpack.c.l.b16 %v4472
    %v4848 = vunpack.c.h.b16 %v4472
    %v4849 = vunpack.c.l.b16 %v4473
    %v4850 = vunpack.c.h.b16 %v4473
    %v4851 = vunpack.c.l.b16 %v4474
    %v4852 = vunpack.c.h.b16 %v4474
    %v4853 = vunpack.c.l.b16 %v4475
    %v4854 = vunpack.c.h.b16 %v4475
    %v4855 = vunpack.c.l.b16 %v4476
    %v4856 = vunpack.c.h.b16 %v4476
    %v4857 = vunpack.c.l.b16 %v4477
    %v4858 = vunpack.c.h.b16 %v4477
    %v4859 = vunpack.c.l.b16 %v4478
    %v4860 = vunpack.c.h.b16 %v4478
    %v4861 = vunpack.c.l.b16 %v4479
    %v4862 = vunpack.c.h.b16 %v4479
    %v4863 = vunpack.c.l.b16 %v4480
    %v4864 = vunpack.c.h.b16 %v4480
    %v4865 = vunpack.c.l.b16 %v4481
    %v4866 = vunpack.c.h.b16 %v4481
    %v4867 = vunpack.c.l.b16 %v4482
    %v4868 = vunpack.c.h.b16 %v4482
    %v4869 = vunpack.c.l.b16 %v4483
    %v4870 = vunpack.c.h.b16 %v4483
    %v4871 = vunpack.c.l.b16 %v4484
    %v4872 = vunpack.c.h.b16 %v4484
    %v4873 = vunpack.c.l.b16 %v4485
    %v4874 = vunpack.c.h.b16 %v4485
    %v4875 = vunpack.c.l.b16 %v4486
    %v4876 = vunpack.c.h.b16 %v4486
    %v4877 = vunpack.c.l.b16 %v4487
    %v4878 = vunpack.c.h.b16 %v4487
    %v4879 = vunpack.c.l.b16 %v4488
    %v4880 = vunpack.c.h.b16 %v4488
    %v4881 = vunpack.c.l.b16 %v4489
    %v4882 = vunpack.c.h.b16 %v4489
    %v4883 = vunpack.c.l.b16 %v4490
    %v4884 = vunpack.c.h.b16 %v4490
    %v4885 = vunpack.c.l.b16 %v4491
    %v4886 = vunpack.c.h.b16 %v4491
    %v4887 = vunpack.c.l.b16 %v4492
    %v4888 = vunpack.c.h.b16 %v4492
    %v4889 = vunpack.c.l.b16 %v4493
    %v4890 = vunpack.c.h.b16 %v4493
    %v4891 = vunpack.c.l.b16 %v4494
    %v4892 = vunpack.c.h.b16 %v4494
    %v4893 = vunpack.c.l.b16 %v4495
    %v4894 = vunpack.c.h.b16 %v4495
    %v4895 = vunpack.c.l.b16 %v4496
    %v4896 = vunpack.c.h.b16 %v4496
    %v4897 = vunpack.c.l.b16 %v4497
    %v4898 = vunpack.c.h.b16 %v4497
    %v4899 = vunpack.c.l.b16 %v4498
    %v4900 = vunpack.c.h.b16 %v4498
    %v4901 = vunpack.c.l.b16 %v4499
    %v4902 = vunpack.c.h.b16 %v4499
    %v4903 = vunpack.c.l.b16 %v4500
    %v4904 = vunpack.c.h.b16 %v4500
    %v4905 = vunpack.c.l.b16 %v4501
    %v4906 = vunpack.c.h.b16 %v4501
    %v4907 = vunpack.c.l.b16 %v4502
    %v4908 = vunpack.c.h.b16 %v4502
    %v4909 = vpack.c.b16 %v4657, %v4653
    %v4910 = vpack.c.b16 %v4658, %v4654
    %v4911 = vpack.c.b16 %v4659, %v4655
    %v4912 = vpack.c.b16 %v4660, %v4656
    %v4913 = vpack.c.b16 %v4665, %v4661
    %v4914 = vpack.c.b16 %v4666, %v4662
    %v4915 = vpack.c.b16 %v4667, %v4663
    %v4916 = vpack.c.b16 %v4668, %v4664
    %v4917 = vpack.c.b16 %v4673, %v4669
    %v4918 = vpack.c.b16 %v4674, %v4670
    %v4919 = vpack.c.b16 %v4675, %v4671
    %v4920 = vpack.c.b16 %v4676, %v4672
    %v4921 = vpack.c.b16 %v4681, %v4677
    %v4922 = vpack.c.b16 %v4682, %v4678
    %v4923 = vpack.c.b16 %v4683, %v4679
    %v4924 = vpack.c.b16 %v4684, %v4680
    %v4925 = vpack.c.b16 %v4689, %v4685
    %v4926 = vpack.c.b16 %v4690, %v4686
    %v4927 = vpack.c.b16 %v4691, %v4687
    %v4928 = vpack.c.b16 %v4692, %v4688
    %v4929 = vpack.c.b16 %v4697, %v4693
    %v4930 = vpack.c.b16 %v4698, %v4694
    %v4931 = vpack.c.b16 %v4699, %v4695
    %v4932 = vpack.c.b16 %v4700, %v4696
    %v4933 = vpack.c.b16 %v4705, %v4701
    %v4934 = vpack.c.b16 %v4706, %v4702
    %v4935 = vpack.c.b16 %v4707, %v4703
    %v4936 = vpack.c.b16 %v4708, %v4704
    %v4937 = vpack.c.b16 %v4713, %v4709
    %v4938 = vpack.c.b16 %v4714, %v4710
    %v4939 = vpack.c.b16 %v4715, %v4711
    %v4940 = vpack.c.b16 %v4716, %v4712
    %v4941 = vpack.c.b16 %v4721, %v4717
    %v4942 = vpack.c.b16 %v4722, %v4718
    %v4943 = vpack.c.b16 %v4723, %v4719
    %v4944 = vpack.c.b16 %v4724, %v4720
    %v4945 = vpack.c.b16 %v4729, %v4725
    %v4946 = vpack.c.b16 %v4730, %v4726
    %v4947 = vpack.c.b16 %v4731, %v4727
    %v4948 = vpack.c.b16 %v4732, %v4728
    %v4949 = vpack.c.b16 %v4737, %v4733
    %v4950 = vpack.c.b16 %v4738, %v4734
    %v4951 = vpack.c.b16 %v4739, %v4735
    %v4952 = vpack.c.b16 %v4740, %v4736
    %v4953 = vpack.c.b16 %v4745, %v4741
    %v4954 = vpack.c.b16 %v4746, %v4742
    %v4955 = vpack.c.b16 %v4747, %v4743
    %v4956 = vpack.c.b16 %v4748, %v4744
    %v4957 = vpack.c.b16 %v4753, %v4749
    %v4958 = vpack.c.b16 %v4754, %v4750
    %v4959 = vpack.c.b16 %v4755, %v4751
    %v4960 = vpack.c.b16 %v4756, %v4752
    %v4961 = vpack.c.b16 %v4761, %v4757
    %v4962 = vpack.c.b16 %v4762, %v4758
    %v4963 = vpack.c.b16 %v4763, %v4759
    %v4964 = vpack.c.b16 %v4764, %v4760
    %v4965 = vpack.c.b16 %v4769, %v4765
    %v4966 = vpack.c.b16 %v4770, %v4766
    %v4967 = vpack.c.b16 %v4771, %v4767
    %v4968 = vpack.c.b16 %v4772, %v4768
    %v4969 = vpack.c.b16 %v4777, %v4773
    %v4970 = vpack.c.b16 %v4778, %v4774
    %v4971 = vpack.c.b16 %v4779, %v4775
    %v4972 = vpack.c.b16 %v4780, %v4776
    %v4973 = vpack.c.b16 %v4785, %v4781
    %v4974 = vpack.c.b16 %v4786, %v4782
    %v4975 = vpack.c.b16 %v4787, %v4783
    %v4976 = vpack.c.b16 %v4788, %v4784
    %v4977 = vpack.c.b16 %v4793, %v4789
    %v4978 = vpack.c.b16 %v4794, %v4790
    %v4979 = vpack.c.b16 %v4795, %v4791
    %v4980 = vpack.c.b16 %v4796, %v4792
    %v4981 = vpack.c.b16 %v4801, %v4797
    %v4982 = vpack.c.b16 %v4802, %v4798
    %v4983 = vpack.c.b16 %v4803, %v4799
    %v4984 = vpack.c.b16 %v4804, %v4800
    %v4985 = vpack.c.b16 %v4809, %v4805
    %v4986 = vpack.c.b16 %v4810, %v4806
    %v4987 = vpack.c.b16 %v4811, %v4807
    %v4988 = vpack.c.b16 %v4812, %v4808
    %v4989 = vpack.c.b16 %v4817, %v4813
    %v4990 = vpack.c.b16 %v4818, %v4814
    %v4991 = vpack.c.b16 %v4819, %v4815
    %v4992 = vpack.c.b16 %v4820, %v4816
    %v4993 = vpack.c.b16 %v4825, %v4821
    %v4994 = vpack.c.b16 %v4826, %v4822
    %v4995 = vpack.c.b16 %v4827, %v4823
    %v4996 = vpack.c.b16 %v4828, %v4824
    %v4997 = vpack.c.b16 %v4833, %v4829
    %v4998 = vpack.c.b16 %v4834, %v4830
    %v4999 = vpack.c.b16 %v4835, %v4831
    %v5000 = vpack.c.b16 %v4836, %v4832
    %v5001 = vpack.c.b16 %v4841, %v4837
    %v5002 = vpack.c.b16 %v4842, %v4838
    %v5003 = vpack.c.b16 %v4843, %v4839
    %v5004 = vpack.c.b16 %v4844, %v4840
    %v5005 = vpack.c.b16 %v4849, %v4845
    %v5006 = vpack.c.b16 %v4850, %v4846
    %v5007 = vpack.c.b16 %v4851, %v4847
    %v5008 = vpack.c.b16 %v4852, %v4848
    %v5009 = vpack.c.b16 %v4857, %v4853
    %v5010 = vpack.c.b16 %v4858, %v4854
    %v5011 = vpack.c.b16 %v4859, %v4855
    %v5012 = vpack.c.b16 %v4860, %v4856
    %v5013 = vpack.c.b16 %v4865, %v4861
    %v5014 = vpack.c.b16 %v4866, %v4862
    %v5015 = vpack.c.b16 %v4867, %v4863
    %v5016 = vpack.c.b16 %v4868, %v4864
    %v5017 = vpack.c.b16 %v4873, %v4869
    %v5018 = vpack.c.b16 %v4874, %v4870
    %v5019 = vpack.c.b16 %v4875, %v4871
    %v5020 = vpack.c.b16 %v4876, %v4872
    %v5021 = vpack.c.b16 %v4881, %v4877
    %v5022 = vpack.c.b16 %v4882, %v4878
    %v5023 = vpack.c.b16 %v4883, %v4879
    %v5024 = vpack.c.b16 %v4884, %v4880
    %v5025 = vpack.c.b16 %v4889, %v4885
    %v5026 = vpack.c.b16 %v4890, %v4886
    %v5027 = vpack.c.b16 %v4891, %v4887
    %v5028 = vpack.c.b16 %v4892, %v4888
    %v5029 = vpack.c.b16 %v4897, %v4893
    %v5030 = vpack.c.b16 %v4898, %v4894
    %v5031 = vpack.c.b16 %v4899, %v4895
    %v5032 = vpack.c.b16 %v4900, %v4896
    %v5033 = vpack.c.b16 %v4905, %v4901
    %v5034 = vpack.c.b16 %v4906, %v4902
    %v5035 = vpack.c.b16 %v4907, %v4903
    %v5036 = vpack.c.b16 %v4908, %v4904
    %5165 = vmatprep.subr.bf16.mxu0 %v4938
    %5166 = vmatpush1.bf16.msra.mxu0 %v4937
    %5167 = vmatprep.subr.bf16.mxu0 %v4934
    %5168 = vmatpush1.bf16.msra.mxu0 %v4933
    %5169 = vmatprep.subr.bf16.mxu0 %v4930
    %5170 = vmatpush1.bf16.msra.mxu0 %v4929
    %5171 = vmatprep.subr.bf16.mxu0 %v4926
    %5172 = vmatpush1.bf16.msra.mxu0 %v4925
    %5173 = vmatprep.subr.bf16.mxu0 %v4922
    %5174 = vmatpush1.bf16.msra.mxu0 %v4921
    %5175 = vmatprep.subr.bf16.mxu0 %v4918
    %5176 = vmatpush1.bf16.msra.mxu0 %v4917
    %5177 = vmatprep.subr.bf16.mxu0 %v4914
    %5178 = vmatpush1.bf16.msra.mxu0 %v4913
    %5179 = vmatprep.subr.bf16.mxu0 %v4910
    %5180 = vmatpush1.bf16.msra.mxu0 %v4909
    %5181 = vmatprep.subr.bf16.mxu0 %v4970
    %5182 = vmatpush2.bf16.msra.mxu0 %v4969
    %5183 = vmatprep.subr.bf16.mxu0 %v4966
    %5184 = vmatpush2.bf16.msra.mxu0 %v4965
    %5185 = vmatprep.subr.bf16.mxu0 %v4962
    %5186 = vmatpush2.bf16.msra.mxu0 %v4961
    %5187 = vmatprep.subr.bf16.mxu0 %v4958
    %5188 = vmatpush2.bf16.msra.mxu0 %v4957
    %5189 = vmatprep.subr.bf16.mxu0 %v4954
    %5190 = vmatpush2.bf16.msra.mxu0 %v4953
    %5191 = vmatprep.subr.bf16.mxu0 %v4950
    %5192 = vmatpush2.bf16.msra.mxu0 %v4949
    %5193 = vmatprep.subr.bf16.mxu0 %v4946
    %5194 = vmatpush2.bf16.msra.mxu0 %v4945
    %5195 = vmatprep.subr.bf16.mxu0 %v4942
    %5196 = vmatpush2.bf16.msra.mxu0 %v4941
    %5197 = vmatprep.mubr.bf16.mxu0 %v4372
    %5198 = vmatmul.mubr.bf16.gmra.mxu0 %v4371
    %v5199 = vpop.f32.mrf.mxu0
    %v5200 = vadd.f32 %v4508, %v5199
    %v5201 = vpop.f32.mrf.mxu0
    %v5202 = vadd.f32 %v4512, %v5201
    %v5203 = vpop.f32.mrf.mxu0
    %v5204 = vadd.f32 %v4508, %v5203
    %v5205 = vpop.f32.mrf.mxu0
    %v5206 = vadd.f32 %v4512, %v5205
    %5207 = vdwg.mxu0
    %5208 = vmatprep.subr.bf16.mxu0 %v5002
    %5209 = vmatpush1.bf16.msra.mxu0 %v5001
    %5210 = vmatprep.subr.bf16.mxu0 %v4998
    %5211 = vmatpush1.bf16.msra.mxu0 %v4997
    %5212 = vmatprep.subr.bf16.mxu0 %v4994
    %5213 = vmatpush1.bf16.msra.mxu0 %v4993
    %5214 = vmatprep.subr.bf16.mxu0 %v4990
    %5215 = vmatpush1.bf16.msra.mxu0 %v4989
    %5216 = vmatprep.subr.bf16.mxu0 %v4986
    %5217 = vmatpush1.bf16.msra.mxu0 %v4985
    %5218 = vmatprep.subr.bf16.mxu0 %v4982
    %5219 = vmatpush1.bf16.msra.mxu0 %v4981
    %5220 = vmatprep.subr.bf16.mxu0 %v4978
    %5221 = vmatpush1.bf16.msra.mxu0 %v4977
    %5222 = vmatprep.subr.bf16.mxu0 %v4974
    %5223 = vmatpush1.bf16.msra.mxu0 %v4973
    %5224 = vmatprep.subr.bf16.mxu0 %v5034
    %5225 = vmatpush2.bf16.msra.mxu0 %v5033
    %5226 = vmatprep.subr.bf16.mxu0 %v5030
    %5227 = vmatpush2.bf16.msra.mxu0 %v5029
    %5228 = vmatprep.subr.bf16.mxu0 %v5026
    %5229 = vmatpush2.bf16.msra.mxu0 %v5025
    %5230 = vmatprep.subr.bf16.mxu0 %v5022
    %5231 = vmatpush2.bf16.msra.mxu0 %v5021
    %5232 = vmatprep.subr.bf16.mxu0 %v5018
    %5233 = vmatpush2.bf16.msra.mxu0 %v5017
    %5234 = vmatprep.subr.bf16.mxu0 %v5014
    %5235 = vmatpush2.bf16.msra.mxu0 %v5013
    %5236 = vmatprep.subr.bf16.mxu0 %v5010
    %5237 = vmatpush2.bf16.msra.mxu0 %v5009
    %5238 = vmatprep.subr.bf16.mxu0 %v5006
    %5239 = vmatpush2.bf16.msra.mxu0 %v5005
    %5240 = vmatprep.mubr.bf16.mxu0 %v4374
    %5241 = vmatmul.mubr.bf16.gmra.mxu0 %v4373
    %v5242 = vpop.f32.mrf.mxu0
    %v5243 = vadd.f32 %v5200, %v5242
    %v5244 = vpop.f32.mrf.mxu0
    %v5245 = vadd.f32 %v5202, %v5244
    %v5246 = vpop.f32.mrf.mxu0
    %v5247 = vadd.f32 %v5204, %v5246
    %v5248 = vpop.f32.mrf.mxu0
    %v5249 = vadd.f32 %v5206, %v5248
    %5250 = vdwg.mxu0
    %5251 = vmatprep.subr.bf16.mxu0 %v4940
    %5252 = vmatpush1.bf16.msra.mxu0 %v4939
    %5253 = vmatprep.subr.bf16.mxu0 %v4936
    %5254 = vmatpush1.bf16.msra.mxu0 %v4935
    %5255 = vmatprep.subr.bf16.mxu0 %v4932
    %5256 = vmatpush1.bf16.msra.mxu0 %v4931
    %5257 = vmatprep.subr.bf16.mxu0 %v4928
    %5258 = vmatpush1.bf16.msra.mxu0 %v4927
    %5259 = vmatprep.subr.bf16.mxu0 %v4924
    %5260 = vmatpush1.bf16.msra.mxu0 %v4923
    %5261 = vmatprep.subr.bf16.mxu0 %v4920
    %5262 = vmatpush1.bf16.msra.mxu0 %v4919
    %5263 = vmatprep.subr.bf16.mxu0 %v4916
    %5264 = vmatpush1.bf16.msra.mxu0 %v4915
    %5265 = vmatprep.subr.bf16.mxu0 %v4912
    %5266 = vmatpush1.bf16.msra.mxu0 %v4911
    %5267 = vmatprep.subr.bf16.mxu0 %v4972
    %5268 = vmatpush2.bf16.msra.mxu0 %v4971
    %5269 = vmatprep.subr.bf16.mxu0 %v4968
    %5270 = vmatpush2.bf16.msra.mxu0 %v4967
    %5271 = vmatprep.subr.bf16.mxu0 %v4964
    %5272 = vmatpush2.bf16.msra.mxu0 %v4963
    %5273 = vmatprep.subr.bf16.mxu0 %v4960
    %5274 = vmatpush2.bf16.msra.mxu0 %v4959
    %5275 = vmatprep.subr.bf16.mxu0 %v4956
    %5276 = vmatpush2.bf16.msra.mxu0 %v4955
    %5277 = vmatprep.subr.bf16.mxu0 %v4952
    %5278 = vmatpush2.bf16.msra.mxu0 %v4951
    %5279 = vmatprep.subr.bf16.mxu0 %v4948
    %5280 = vmatpush2.bf16.msra.mxu0 %v4947
    %5281 = vmatprep.subr.bf16.mxu0 %v4944
    %5282 = vmatpush2.bf16.msra.mxu0 %v4943
    %5283 = vmatprep.mubr.bf16.mxu0 %v4372
    %5284 = vmatmul.mubr.bf16.gmra.mxu0 %v4371
    %v5285 = vpop.f32.mrf.mxu0
    %v5286 = vadd.f32 %v4516, %v5285
    %v5287 = vpop.f32.mrf.mxu0
    %v5288 = vadd.f32 %v4520, %v5287
    %v5289 = vpop.f32.mrf.mxu0
    %v5290 = vadd.f32 %v4516, %v5289
    %v5291 = vpop.f32.mrf.mxu0
    %v5292 = vadd.f32 %v4520, %v5291
    %5293 = vdwg.mxu0
    %5294 = vmatprep.subr.bf16.mxu0 %v5004
    %5295 = vmatpush1.bf16.msra.mxu0 %v5003
    %5296 = vmatprep.subr.bf16.mxu0 %v5000
    %5297 = vmatpush1.bf16.msra.mxu0 %v4999
    %5298 = vmatprep.subr.bf16.mxu0 %v4996
    %5299 = vmatpush1.bf16.msra.mxu0 %v4995
    %5300 = vmatprep.subr.bf16.mxu0 %v4992
    %5301 = vmatpush1.bf16.msra.mxu0 %v4991
    %5302 = vmatprep.subr.bf16.mxu0 %v4988
    %5303 = vmatpush1.bf16.msra.mxu0 %v4987
    %5304 = vmatprep.subr.bf16.mxu0 %v4984
    %5305 = vmatpush1.bf16.msra.mxu0 %v4983
    %5306 = vmatprep.subr.bf16.mxu0 %v4980
    %5307 = vmatpush1.bf16.msra.mxu0 %v4979
    %5308 = vmatprep.subr.bf16.mxu0 %v4976
    %5309 = vmatpush1.bf16.msra.mxu0 %v4975
    %5310 = vmatprep.subr.bf16.mxu0 %v5036
    %5311 = vmatpush2.bf16.msra.mxu0 %v5035
    %5312 = vmatprep.subr.bf16.mxu0 %v5032
    %5313 = vmatpush2.bf16.msra.mxu0 %v5031
    %5314 = vmatprep.subr.bf16.mxu0 %v5028
    %5315 = vmatpush2.bf16.msra.mxu0 %v5027
    %5316 = vmatprep.subr.bf16.mxu0 %v5024
    %5317 = vmatpush2.bf16.msra.mxu0 %v5023
    %5318 = vmatprep.subr.bf16.mxu0 %v5020
    %5319 = vmatpush2.bf16.msra.mxu0 %v5019
    %5320 = vmatprep.subr.bf16.mxu0 %v5016
    %5321 = vmatpush2.bf16.msra.mxu0 %v5015
    %5322 = vmatprep.subr.bf16.mxu0 %v5012
    %5323 = vmatpush2.bf16.msra.mxu0 %v5011
    %5324 = vmatprep.subr.bf16.mxu0 %v5008
    %5325 = vmatpush2.bf16.msra.mxu0 %v5007
    %5326 = vmatprep.mubr.bf16.mxu0 %v4374
    %5327 = vmatmul.mubr.bf16.gmra.mxu0 %v4373
    %v5328 = vpop.f32.mrf.mxu0
    %v5329 = vadd.f32 %v5286, %v5328
    %v5330 = vpop.f32.mrf.mxu0
    %v5331 = vadd.f32 %v5288, %v5330
    %v5332 = vpop.f32.mrf.mxu0
    %v5333 = vadd.f32 %v5290, %v5332
    %v5334 = vpop.f32.mrf.mxu0
    %v5335 = vadd.f32 %v5292, %v5334
    %5336 = vdwg.mxu0
    %5337 = vst [vmem:[#allocation14] sm:$0xff] %v5243
    %5338 = vst [vmem:[#allocation14 + $0x8] sm:$0xff] %v5245
    %5339 = vst [vmem:[#allocation14 + $0x10] sm:$0xff] %v5329
    %5340 = vst [vmem:[#allocation14 + $0x18] sm:$0xff] %v5331
    %5341 = vst [vmem:[#allocation14 + $0x20] sm:$0xff] %v5247
    %5342 = vst [vmem:[#allocation14 + $0x28] sm:$0xff] %v5249
    %5343 = vst [vmem:[#allocation14 + $0x30] sm:$0xff] %v5333
    %5344 = vst [vmem:[#allocation14 + $0x38] sm:$0xff] %v5335
    // Predicated region
    $region58: #{tpu_custom_call.1} parent=1 // pred_check
      _
    $region59: #{tpu_custom_call.1} parent=1 // pred_check_branch
      %5346 = sbr.rel (0) target = $region61
    $region60: #{tpu_custom_call.1} parent=1 // pred_region
      %s5348 = ssub.s32 1024, 1024
      %5349 = vsyncadd [#allocation4], %s5348
      %s5350 = sshll.u32 [#allocation14], 4
      %s5351 = int_to_ptr.vmem [resolvable:$true] %s5350
      %5356 = dma.vmem_to_hbm [thread:$0]  %s5351, 1024, %s7, [#allocation4], 512, 512, 32
    $region61: #{tpu_custom_call.1} parent=1 // pred_fallthru
      _
    // Predicated region
    $region62: #{tpu_custom_call.1} parent=1 // pred_check
      _
    $region63: #{tpu_custom_call.1} parent=1 // pred_check_branch
      %5358 = sbr.rel (0) target = $region65
    $region64: #{tpu_custom_call.1} parent=1 // pred_region
      %s5360 = ssub.s32 256, 256
      %5361 = vsyncadd [#allocation16], %s5360
      %s5362 = sshll.u32 [#allocation15], 4
      %s5363 = int_to_ptr.vmem [resolvable:$true] %s5362
      %5368 = dma.vmem_to_hbm [thread:$0]  %s5363, 256, %s8, [#allocation16], 128, 128, 8
    $region65: #{tpu_custom_call.1} parent=1 // pred_fallthru
      _
    // Predicated region
    $region66: #{tpu_custom_call.1} parent=1 // pred_check
      _
    $region67: #{tpu_custom_call.1} parent=1 // pred_check_branch
      %5370 = sbr.rel (0) target = $region69
    $region68: #{tpu_custom_call.1} parent=1 // pred_region
      %5371 = dma.done [#allocation4], 1024
    $region69: #{tpu_custom_call.1} parent=1 // pred_fallthru
      _
    // Predicated region
    $region70: #{tpu_custom_call.1} parent=1 // pred_check
      _
    $region71: #{tpu_custom_call.1} parent=1 // pred_check_branch
      %5373 = sbr.rel (0) target = $region73
    $region72: #{tpu_custom_call.1} parent=1 // pred_region
      %5374 = dma.done [#allocation16], 256
    $region73: #{tpu_custom_call.1} parent=1 // pred_fallthru
      _
    %5375 = vsyncpa [#allocation3], 1
    %5376 = vsyncpa [#allocation6], 1
    %5377 = vsyncpa [#allocation9], 1
    %5378 = vsyncpa [#allocation12], 1
    %5379 = vsyncpa [#allocation4], 1
    %5380 = vsyncpa [#allocation16], 1

</llo_original>
